<compile_context>
chip_gen: v5e
topology: v5e:2x2
jax: 0.10.0
libtpu: 0.0.40
codegen_flags: <defaults>
</compile_context>

<pallas_src>
import jax
import jax.numpy as jnp
from jax.experimental import pallas as pl
from jax.experimental.pallas import tpu as pltpu

# ------------------------- small, 128-aligned shapes -------------------------
N = 2            # batch
C_IN = 3         # RGB input channels
H = W = 16       # spatial
PAD = 1          # conv padding
KSIZE = 3        # stand-in conv kernel
C_FEAT = 128     # stand-in for resnet.fc.in_features (2048 real; multiple of 128)
EMBED = 128      # embed_size (multiple of 128 -> lane-dense output stores)
BN_EPS = 1e-5    # nn.BatchNorm1d default


# --------------------- kernel 1: backbone + linear (per image) ---------------------
def backbone_kernel(x_ref, conv_w_ref, lin_w_ref, z_ref, acc_ref):
    # x_ref     : (1, H+2, W+2, C_IN)        bf16  -- one zero-padded image (NHWC)
    # conv_w_ref: (KSIZE*KSIZE, C_IN, C_FEAT) bf16
    # lin_w_ref : (C_FEAT, EMBED)             bf16  (transposed PyTorch Linear weight)
    # z_ref     : (1, 1, EMBED)               f32   -- pre-BN linear features
    # acc_ref   : (H*W, C_FEAT)               f32 VMEM scratch accumulator

    # --- 3x3 conv as 9 shifted matmuls accumulating in f32 (one fused 2D matmul
    #     per tap over all H*W output pixels; no batched einsum, no HBM im2col) ---
    acc_ref[...] = jnp.zeros_like(acc_ref)
    for tap in range(KSIZE * KSIZE):           # static unroll (9 taps)
        dy, dx = tap // KSIZE, tap % KSIZE
        patch = x_ref[0, dy:dy + H, dx:dx + W, :].reshape(H * W, C_IN)  # bf16
        acc_ref[...] += jnp.dot(patch, conv_w_ref[tap],
                                preferred_element_type=jnp.float32)     # (HW, C_FEAT)

    # --- ReLU + global average pool (f32 elementwise; XLU reduce) ---
    feat = jnp.maximum(acc_ref[...], 0.0)                # (HW, C_FEAT) f32
    pooled = jnp.mean(feat, axis=0, keepdims=True)       # (1, C_FEAT)  f32

    # --- Linear (bias applied in the BN kernel together with gamma/beta).
    #     Pooled kept in f32: re-rounding this intermediate to bf16 would be amplified
    #     by the N=2 batch statistics; the weight arrives as bf16 and is upcast here. ---
    z = jnp.dot(pooled, lin_w_ref[...].astype(jnp.float32),
                preferred_element_type=jnp.float32)      # (1, EMBED) f32
    z_ref[0] = z


# --------------------- kernel 2: BatchNorm1d over the full batch -------------------
def batchnorm_kernel(z_ref, params_ref, out_ref):
    # z_ref     : (N, EMBED) f32  -- linear pre-activations (bias not yet added)
    # params_ref: (3, EMBED) f32  -- rows = [lin_b, gamma, beta] packed in one operand
    # out_ref   : (N, EMBED) f32
    z = z_ref[...] + params_ref[0:1, :]
    mean = jnp.mean(z, axis=0, keepdims=True)
    var = jnp.mean((z - mean) ** 2, axis=0, keepdims=True)     # biased (training mode)
    out_ref[...] = ((z - mean) * jax.lax.rsqrt(var + BN_EPS)   # rsqrt -> EUP slot
                    * params_ref[1:2, :] + params_ref[2:3, :])


# --------------------------------- glue (JAX) -------------------------------------
@jax.jit
def encoder_cnn_forward(images_nchw, conv_w, lin_w, lin_b, gamma, beta):
    n = images_nchw.shape[0]
    hp, wp = H + 2 * PAD, W + 2 * PAD

    # NCHW -> NHWC, zero-pad spatial, cast operands to bf16 (frozen backbone).
    x = jnp.transpose(images_nchw, (0, 2, 3, 1))
    x = jnp.pad(x, ((0, 0), (PAD, PAD), (PAD, PAD), (0, 0))).astype(jnp.bfloat16)
    conv_w_b = conv_w.reshape(KSIZE * KSIZE, C_IN, C_FEAT).astype(jnp.bfloat16)
    lin_w_b = lin_w.astype(jnp.bfloat16)

    # Backbone + Linear: grid over batch, "parallel" so v7x shards across its 2 TCs.
    # (At real ResNet scale one would also grid over HW with a pooled-sum accumulator
    #  to bound the (HW, C_FEAT) intermediate against v7x's 64 MiB VMEM.)
    z = pl.pallas_call(
        backbone_kernel,
        out_shape=jax.ShapeDtypeStruct((n, 1, EMBED), jnp.float32),
        grid=(n,),
        in_specs=[
            pl.BlockSpec((1, hp, wp, C_IN), lambda b: (b, 0, 0, 0)),
            pl.BlockSpec((KSIZE * KSIZE, C_IN, C_FEAT), lambda b: (0, 0, 0)),
            pl.BlockSpec((C_FEAT, EMBED), lambda b: (0, 0)),
        ],
        out_specs=pl.BlockSpec((1, 1, EMBED), lambda b: (b, 0, 0)),
        scratch_shapes=[pltpu.VMEM((H * W, C_FEAT), jnp.float32)],
        compiler_params=pltpu.CompilerParams(dimension_semantics=("parallel",)),
    )(x, conv_w_b, lin_w_b)
    z = z.reshape(n, EMBED)

    # BatchNorm1d over the FULL batch (exact batch statistics despite batch tiling above).
    params = jnp.concatenate([lin_b, gamma, beta], axis=0)     # (3, EMBED)
    return pl.pallas_call(
        batchnorm_kernel,
        out_shape=jax.ShapeDtypeStruct((n, EMBED), jnp.float32),
        in_specs=[pl.BlockSpec(memory_space=pltpu.MemorySpace.VMEM)] * 2,
        out_specs=pl.BlockSpec(memory_space=pltpu.MemorySpace.VMEM),
    )(z, params)


# ------------------------------ pure-JAX reference ---------------------------------
def reference_forward(images_nchw, conv_w, lin_w, lin_b, gamma, beta):
    x = jnp.transpose(images_nchw, (0, 2, 3, 1))
    x = jnp.pad(x, ((0, 0), (PAD, PAD), (PAD, PAD), (0, 0)))
    x = x.astype(jnp.bfloat16).astype(jnp.float32)             # same bf16 rounding
    cw = conv_w.astype(jnp.bfloat16).astype(jnp.float32)
    lw = lin_w.astype(jnp.bfloat16).astype(jnp.float32)

    cols = []
    for dy in range(KSIZE):
        for dx in range(KSIZE):
            cols.append(x[:, dy:dy + H, dx:dx + W, :])          # (N, H, W, C)
    p = jnp.stack(cols, axis=-2).reshape(x.shape[0], H * W, KSIZE * KSIZE * C_IN)

    feat = jnp.maximum(jnp.einsum("nhk,kc->nhc", p, cw,
                                  preferred_element_type=jnp.float32), 0.0)
    pooled = jnp.mean(feat, axis=1)                             # (N, C_FEAT)
    z = jnp.dot(pooled, lw, preferred_element_type=jnp.float32) + lin_b
    mean = jnp.mean(z, axis=0, keepdims=True)
    var = jnp.mean((z - mean) ** 2, axis=0, keepdims=True)
    return (z - mean) / jnp.sqrt(var + BN_EPS) * gamma + beta


# ---------------------------------- main ------------------------------------------
if __name__ == "__main__":
    key = jax.random.PRNGKey(0)
    k_img, k_conv, k_lw, k_lb, k_g, k_b = jax.random.split(key, 6)

    images = jax.random.normal(k_img, (N, C_IN, H, W), dtype=jnp.float32)

    K = KSIZE * KSIZE * C_IN
    conv_w = jax.random.normal(k_conv, (K, C_FEAT), dtype=jnp.float32) * 0.1
    # nn.Linear(resnet.fc.in_features, embed_size): stored transposed for x @ W^T.
    lin_w = jax.random.normal(k_lw, (C_FEAT, EMBED), dtype=jnp.float32) * 0.05
    lin_b = jax.random.normal(k_lb, (1, EMBED), dtype=jnp.float32) * 0.05
    # nn.BatchNorm1d(embed_size): gamma ~1, beta ~0 (perturbed to exercise the affine).
    gamma = 1.0 + 0.1 * jax.random.normal(k_g, (1, EMBED), dtype=jnp.float32)
    beta = 0.1 * jax.random.normal(k_b, (1, EMBED), dtype=jnp.float32)

    out = jax.block_until_ready(
        encoder_cnn_forward(images, conv_w, lin_w, lin_b, gamma, beta))
    ref = reference_forward(images, conv_w, lin_w, lin_b, gamma, beta)

    assert out.shape == (N, EMBED), out.shape
    assert jnp.allclose(out, ref, atol=5e-4, rtol=5e-4), \
        float(jnp.max(jnp.abs(out - ref)))

    print("KERNEL_OK")
</pallas_src>

<mosaic_0001>
module attributes {stable_mosaic.version = 11 : i64} {
  func.func @backbone_kernel(%arg0: i32, %arg1: memref<1x18x18x3xbf16, #tpu.memory_space<vmem>>, %arg2: memref<9x3x128xbf16, #tpu.memory_space<vmem>>, %arg3: memref<128x128xbf16, #tpu.memory_space<vmem>>, %arg4: memref<1x1x128xf32, #tpu.memory_space<vmem>>, %arg5: memref<256x128xf32, #tpu.memory_space<vmem>>) attributes {dimension_semantics = [#tpu.dimension_semantics<parallel>], iteration_bounds = array<i64: 2>, scalar_prefetch = 0 : i64, scratch_operands = 1 : i64, tpu.core_type = #tpu.core_type<tc>, window_params = [{transform_indices = @transform_0, window_bounds = array<i64: 1, 18, 18, 3>}, {pipeline_mode = #tpu.pipeline_mode<synchronous>, transform_indices = @transform_1, window_bounds = array<i64: 9, 3, 128>}, {pipeline_mode = #tpu.pipeline_mode<synchronous>, transform_indices = @transform_2, window_bounds = array<i64: 128, 128>}, {transform_indices = @transform_3, window_bounds = array<i64: 1, 1, 128>}]} {
    %cst = arith.constant 0.000000e+00 : f32
    %0 = vector.broadcast %cst : f32 to vector<256x128xf32>
    %c0 = arith.constant 0 : index
    %c0_0 = arith.constant 0 : index
    %1 = vector.load %arg5[%c0, %c0_0] : memref<256x128xf32, #tpu.memory_space<vmem>>, vector<256x128xf32>
    tpu.vector_store %arg5[%c0, %c0_0], %0 {strides = array<i32>} : memref<256x128xf32, #tpu.memory_space<vmem>>, vector<256x128xf32>,
    %c0_1 = arith.constant 0 : index
    %c0_2 = arith.constant 0 : index
    %c0_3 = arith.constant 0 : index
    %c0_4 = arith.constant 0 : index
    %2 = vector.load %arg1[%c0_1, %c0_2, %c0_3, %c0_4] : memref<1x18x18x3xbf16, #tpu.memory_space<vmem>>, vector<1x16x16x3xbf16>
    %3 = vector.shape_cast %2 : vector<1x16x16x3xbf16> to vector<16x16x3xbf16>
    %4 = vector.shape_cast %3 : vector<16x16x3xbf16> to vector<256x3xbf16>
    %c0_5 = arith.constant 0 : index
    %c0_6 = arith.constant 0 : index
    %5 = vector.load %arg5[%c0_5, %c0_6] : memref<256x128xf32, #tpu.memory_space<vmem>>, vector<256x128xf32>
    %c0_7 = arith.constant 0 : index
    %c0_8 = arith.constant 0 : index
    %c0_9 = arith.constant 0 : index
    %6 = vector.load %arg2[%c0_7, %c0_8, %c0_9] : memref<9x3x128xbf16, #tpu.memory_space<vmem>>, vector<1x3x128xbf16>
    %7 = vector.shape_cast %6 : vector<1x3x128xbf16> to vector<3x128xbf16>
    %cst_10 = arith.constant dense<0.000000e+00> : vector<256x128xf32>
    %8 = tpu.matmul %4, %7, %cst_10 {dimension_numbers = #tpu.dot_dimension_numbers<[1], [0], [0], [1], [0, 0, 1, 1], [], []>} : vector<256x3xbf16>, vector<3x128xbf16>, vector<256x128xf32> -> vector<256x128xf32>
    %9 = arith.addf %5, %8 : vector<256x128xf32>
    %c0_11 = arith.constant 0 : index
    %c0_12 = arith.constant 0 : index
    %10 = vector.load %arg5[%c0_11, %c0_12] : memref<256x128xf32, #tpu.memory_space<vmem>>, vector<256x128xf32>
    tpu.vector_store %arg5[%c0_11, %c0_12], %9 {strides = array<i32>} : memref<256x128xf32, #tpu.memory_space<vmem>>, vector<256x128xf32>,
    %c0_13 = arith.constant 0 : index
    %c0_14 = arith.constant 0 : index
    %c1 = arith.constant 1 : index
    %c0_15 = arith.constant 0 : index
    %11 = vector.load %arg1[%c0_13, %c0_14, %c1, %c0_15] : memref<1x18x18x3xbf16, #tpu.memory_space<vmem>>, vector<1x16x16x3xbf16>
    %12 = vector.shape_cast %11 : vector<1x16x16x3xbf16> to vector<16x16x3xbf16>
    %13 = vector.shape_cast %12 : vector<16x16x3xbf16> to vector<256x3xbf16>
    %c0_16 = arith.constant 0 : index
    %c0_17 = arith.constant 0 : index
    %14 = vector.load %arg5[%c0_16, %c0_17] : memref<256x128xf32, #tpu.memory_space<vmem>>, vector<256x128xf32>
    %c1_18 = arith.constant 1 : index
    %c0_19 = arith.constant 0 : index
    %c0_20 = arith.constant 0 : index
    %15 = vector.load %arg2[%c1_18, %c0_19, %c0_20] : memref<9x3x128xbf16, #tpu.memory_space<vmem>>, vector<1x3x128xbf16>
    %16 = vector.shape_cast %15 : vector<1x3x128xbf16> to vector<3x128xbf16>
    %cst_21 = arith.constant dense<0.000000e+00> : vector<256x128xf32>
    %17 = tpu.matmul %13, %16, %cst_21 {dimension_numbers = #tpu.dot_dimension_numbers<[1], [0], [0], [1], [0, 0, 1, 1], [], []>} : vector<256x3xbf16>, vector<3x128xbf16>, vector<256x128xf32> -> vector<256x128xf32>
    %18 = arith.addf %14, %17 : vector<256x128xf32>
    %c0_22 = arith.constant 0 : index
    %c0_23 = arith.constant 0 : index
    %19 = vector.load %arg5[%c0_22, %c0_23] : memref<256x128xf32, #tpu.memory_space<vmem>>, vector<256x128xf32>
    tpu.vector_store %arg5[%c0_22, %c0_23], %18 {strides = array<i32>} : memref<256x128xf32, #tpu.memory_space<vmem>>, vector<256x128xf32>,
    %c0_24 = arith.constant 0 : index
    %c0_25 = arith.constant 0 : index
    %c2 = arith.constant 2 : index
    %c0_26 = arith.constant 0 : index
    %20 = vector.load %arg1[%c0_24, %c0_25, %c2, %c0_26] : memref<1x18x18x3xbf16, #tpu.memory_space<vmem>>, vector<1x16x16x3xbf16>
    %21 = vector.shape_cast %20 : vector<1x16x16x3xbf16> to vector<16x16x3xbf16>
    %22 = vector.shape_cast %21 : vector<16x16x3xbf16> to vector<256x3xbf16>
    %c0_27 = arith.constant 0 : index
    %c0_28 = arith.constant 0 : index
    %23 = vector.load %arg5[%c0_27, %c0_28] : memref<256x128xf32, #tpu.memory_space<vmem>>, vector<256x128xf32>
    %c2_29 = arith.constant 2 : index
    %c0_30 = arith.constant 0 : index
    %c0_31 = arith.constant 0 : index
    %24 = vector.load %arg2[%c2_29, %c0_30, %c0_31] : memref<9x3x128xbf16, #tpu.memory_space<vmem>>, vector<1x3x128xbf16>
    %25 = vector.shape_cast %24 : vector<1x3x128xbf16> to vector<3x128xbf16>
    %cst_32 = arith.constant dense<0.000000e+00> : vector<256x128xf32>
    %26 = tpu.matmul %22, %25, %cst_32 {dimension_numbers = #tpu.dot_dimension_numbers<[1], [0], [0], [1], [0, 0, 1, 1], [], []>} : vector<256x3xbf16>, vector<3x128xbf16>, vector<256x128xf32> -> vector<256x128xf32>
    %27 = arith.addf %23, %26 : vector<256x128xf32>
    %c0_33 = arith.constant 0 : index
    %c0_34 = arith.constant 0 : index
    %28 = vector.load %arg5[%c0_33, %c0_34] : memref<256x128xf32, #tpu.memory_space<vmem>>, vector<256x128xf32>
    tpu.vector_store %arg5[%c0_33, %c0_34], %27 {strides = array<i32>} : memref<256x128xf32, #tpu.memory_space<vmem>>, vector<256x128xf32>,
    %c0_35 = arith.constant 0 : index
    %c1_36 = arith.constant 1 : index
    %c0_37 = arith.constant 0 : index
    %c0_38 = arith.constant 0 : index
    %29 = vector.load %arg1[%c0_35, %c1_36, %c0_37, %c0_38] : memref<1x18x18x3xbf16, #tpu.memory_space<vmem>>, vector<1x16x16x3xbf16>
    %30 = vector.shape_cast %29 : vector<1x16x16x3xbf16> to vector<16x16x3xbf16>
    %31 = vector.shape_cast %30 : vector<16x16x3xbf16> to vector<256x3xbf16>
    %c0_39 = arith.constant 0 : index
    %c0_40 = arith.constant 0 : index
    %32 = vector.load %arg5[%c0_39, %c0_40] : memref<256x128xf32, #tpu.memory_space<vmem>>, vector<256x128xf32>
    %c3 = arith.constant 3 : index
    %c0_41 = arith.constant 0 : index
    %c0_42 = arith.constant 0 : index
    %33 = vector.load %arg2[%c3, %c0_41, %c0_42] : memref<9x3x128xbf16, #tpu.memory_space<vmem>>, vector<1x3x128xbf16>
    %34 = vector.shape_cast %33 : vector<1x3x128xbf16> to vector<3x128xbf16>
    %cst_43 = arith.constant dense<0.000000e+00> : vector<256x128xf32>
    %35 = tpu.matmul %31, %34, %cst_43 {dimension_numbers = #tpu.dot_dimension_numbers<[1], [0], [0], [1], [0, 0, 1, 1], [], []>} : vector<256x3xbf16>, vector<3x128xbf16>, vector<256x128xf32> -> vector<256x128xf32>
    %36 = arith.addf %32, %35 : vector<256x128xf32>
    %c0_44 = arith.constant 0 : index
    %c0_45 = arith.constant 0 : index
    %37 = vector.load %arg5[%c0_44, %c0_45] : memref<256x128xf32, #tpu.memory_space<vmem>>, vector<256x128xf32>
    tpu.vector_store %arg5[%c0_44, %c0_45], %36 {strides = array<i32>} : memref<256x128xf32, #tpu.memory_space<vmem>>, vector<256x128xf32>,
    %c0_46 = arith.constant 0 : index
    %c1_47 = arith.constant 1 : index
    %c1_48 = arith.constant 1 : index
    %c0_49 = arith.constant 0 : index
    %38 = vector.load %arg1[%c0_46, %c1_47, %c1_48, %c0_49] : memref<1x18x18x3xbf16, #tpu.memory_space<vmem>>, vector<1x16x16x3xbf16>
    %39 = vector.shape_cast %38 : vector<1x16x16x3xbf16> to vector<16x16x3xbf16>
    %40 = vector.shape_cast %39 : vector<16x16x3xbf16> to vector<256x3xbf16>
    %c0_50 = arith.constant 0 : index
    %c0_51 = arith.constant 0 : index
    %41 = vector.load %arg5[%c0_50, %c0_51] : memref<256x128xf32, #tpu.memory_space<vmem>>, vector<256x128xf32>
    %c4 = arith.constant 4 : index
    %c0_52 = arith.constant 0 : index
    %c0_53 = arith.constant 0 : index
    %42 = vector.load %arg2[%c4, %c0_52, %c0_53] : memref<9x3x128xbf16, #tpu.memory_space<vmem>>, vector<1x3x128xbf16>
    %43 = vector.shape_cast %42 : vector<1x3x128xbf16> to vector<3x128xbf16>
    %cst_54 = arith.constant dense<0.000000e+00> : vector<256x128xf32>
    %44 = tpu.matmul %40, %43, %cst_54 {dimension_numbers = #tpu.dot_dimension_numbers<[1], [0], [0], [1], [0, 0, 1, 1], [], []>} : vector<256x3xbf16>, vector<3x128xbf16>, vector<256x128xf32> -> vector<256x128xf32>
    %45 = arith.addf %41, %44 : vector<256x128xf32>
    %c0_55 = arith.constant 0 : index
    %c0_56 = arith.constant 0 : index
    %46 = vector.load %arg5[%c0_55, %c0_56] : memref<256x128xf32, #tpu.memory_space<vmem>>, vector<256x128xf32>
    tpu.vector_store %arg5[%c0_55, %c0_56], %45 {strides = array<i32>} : memref<256x128xf32, #tpu.memory_space<vmem>>, vector<256x128xf32>,
    %c0_57 = arith.constant 0 : index
    %c1_58 = arith.constant 1 : index
    %c2_59 = arith.constant 2 : index
    %c0_60 = arith.constant 0 : index
    %47 = vector.load %arg1[%c0_57, %c1_58, %c2_59, %c0_60] : memref<1x18x18x3xbf16, #tpu.memory_space<vmem>>, vector<1x16x16x3xbf16>
    %48 = vector.shape_cast %47 : vector<1x16x16x3xbf16> to vector<16x16x3xbf16>
    %49 = vector.shape_cast %48 : vector<16x16x3xbf16> to vector<256x3xbf16>
    %c0_61 = arith.constant 0 : index
    %c0_62 = arith.constant 0 : index
    %50 = vector.load %arg5[%c0_61, %c0_62] : memref<256x128xf32, #tpu.memory_space<vmem>>, vector<256x128xf32>
    %c5 = arith.constant 5 : index
    %c0_63 = arith.constant 0 : index
    %c0_64 = arith.constant 0 : index
    %51 = vector.load %arg2[%c5, %c0_63, %c0_64] : memref<9x3x128xbf16, #tpu.memory_space<vmem>>, vector<1x3x128xbf16>
    %52 = vector.shape_cast %51 : vector<1x3x128xbf16> to vector<3x128xbf16>
    %cst_65 = arith.constant dense<0.000000e+00> : vector<256x128xf32>
    %53 = tpu.matmul %49, %52, %cst_65 {dimension_numbers = #tpu.dot_dimension_numbers<[1], [0], [0], [1], [0, 0, 1, 1], [], []>} : vector<256x3xbf16>, vector<3x128xbf16>, vector<256x128xf32> -> vector<256x128xf32>
    %54 = arith.addf %50, %53 : vector<256x128xf32>
    %c0_66 = arith.constant 0 : index
    %c0_67 = arith.constant 0 : index
    %55 = vector.load %arg5[%c0_66, %c0_67] : memref<256x128xf32, #tpu.memory_space<vmem>>, vector<256x128xf32>
    tpu.vector_store %arg5[%c0_66, %c0_67], %54 {strides = array<i32>} : memref<256x128xf32, #tpu.memory_space<vmem>>, vector<256x128xf32>,
    %c0_68 = arith.constant 0 : index
    %c2_69 = arith.constant 2 : index
    %c0_70 = arith.constant 0 : index
    %c0_71 = arith.constant 0 : index
    %56 = vector.load %arg1[%c0_68, %c2_69, %c0_70, %c0_71] : memref<1x18x18x3xbf16, #tpu.memory_space<vmem>>, vector<1x16x16x3xbf16>
    %57 = vector.shape_cast %56 : vector<1x16x16x3xbf16> to vector<16x16x3xbf16>
    %58 = vector.shape_cast %57 : vector<16x16x3xbf16> to vector<256x3xbf16>
    %c0_72 = arith.constant 0 : index
    %c0_73 = arith.constant 0 : index
    %59 = vector.load %arg5[%c0_72, %c0_73] : memref<256x128xf32, #tpu.memory_space<vmem>>, vector<256x128xf32>
    %c6 = arith.constant 6 : index
    %c0_74 = arith.constant 0 : index
    %c0_75 = arith.constant 0 : index
    %60 = vector.load %arg2[%c6, %c0_74, %c0_75] : memref<9x3x128xbf16, #tpu.memory_space<vmem>>, vector<1x3x128xbf16>
    %61 = vector.shape_cast %60 : vector<1x3x128xbf16> to vector<3x128xbf16>
    %cst_76 = arith.constant dense<0.000000e+00> : vector<256x128xf32>
    %62 = tpu.matmul %58, %61, %cst_76 {dimension_numbers = #tpu.dot_dimension_numbers<[1], [0], [0], [1], [0, 0, 1, 1], [], []>} : vector<256x3xbf16>, vector<3x128xbf16>, vector<256x128xf32> -> vector<256x128xf32>
    %63 = arith.addf %59, %62 : vector<256x128xf32>
    %c0_77 = arith.constant 0 : index
    %c0_78 = arith.constant 0 : index
    %64 = vector.load %arg5[%c0_77, %c0_78] : memref<256x128xf32, #tpu.memory_space<vmem>>, vector<256x128xf32>
    tpu.vector_store %arg5[%c0_77, %c0_78], %63 {strides = array<i32>} : memref<256x128xf32, #tpu.memory_space<vmem>>, vector<256x128xf32>,
    %c0_79 = arith.constant 0 : index
    %c2_80 = arith.constant 2 : index
    %c1_81 = arith.constant 1 : index
    %c0_82 = arith.constant 0 : index
    %65 = vector.load %arg1[%c0_79, %c2_80, %c1_81, %c0_82] : memref<1x18x18x3xbf16, #tpu.memory_space<vmem>>, vector<1x16x16x3xbf16>
    %66 = vector.shape_cast %65 : vector<1x16x16x3xbf16> to vector<16x16x3xbf16>
    %67 = vector.shape_cast %66 : vector<16x16x3xbf16> to vector<256x3xbf16>
    %c0_83 = arith.constant 0 : index
    %c0_84 = arith.constant 0 : index
    %68 = vector.load %arg5[%c0_83, %c0_84] : memref<256x128xf32, #tpu.memory_space<vmem>>, vector<256x128xf32>
    %c7 = arith.constant 7 : index
    %c0_85 = arith.constant 0 : index
    %c0_86 = arith.constant 0 : index
    %69 = vector.load %arg2[%c7, %c0_85, %c0_86] : memref<9x3x128xbf16, #tpu.memory_space<vmem>>, vector<1x3x128xbf16>
    %70 = vector.shape_cast %69 : vector<1x3x128xbf16> to vector<3x128xbf16>
    %cst_87 = arith.constant dense<0.000000e+00> : vector<256x128xf32>
    %71 = tpu.matmul %67, %70, %cst_87 {dimension_numbers = #tpu.dot_dimension_numbers<[1], [0], [0], [1], [0, 0, 1, 1], [], []>} : vector<256x3xbf16>, vector<3x128xbf16>, vector<256x128xf32> -> vector<256x128xf32>
    %72 = arith.addf %68, %71 : vector<256x128xf32>
    %c0_88 = arith.constant 0 : index
    %c0_89 = arith.constant 0 : index
    %73 = vector.load %arg5[%c0_88, %c0_89] : memref<256x128xf32, #tpu.memory_space<vmem>>, vector<256x128xf32>
    tpu.vector_store %arg5[%c0_88, %c0_89], %72 {strides = array<i32>} : memref<256x128xf32, #tpu.memory_space<vmem>>, vector<256x128xf32>,
    %c0_90 = arith.constant 0 : index
    %c2_91 = arith.constant 2 : index
    %c2_92 = arith.constant 2 : index
    %c0_93 = arith.constant 0 : index
    %74 = vector.load %arg1[%c0_90, %c2_91, %c2_92, %c0_93] : memref<1x18x18x3xbf16, #tpu.memory_space<vmem>>, vector<1x16x16x3xbf16>
    %75 = vector.shape_cast %74 : vector<1x16x16x3xbf16> to vector<16x16x3xbf16>
    %76 = vector.shape_cast %75 : vector<16x16x3xbf16> to vector<256x3xbf16>
    %c0_94 = arith.constant 0 : index
    %c0_95 = arith.constant 0 : index
    %77 = vector.load %arg5[%c0_94, %c0_95] : memref<256x128xf32, #tpu.memory_space<vmem>>, vector<256x128xf32>
    %c8 = arith.constant 8 : index
    %c0_96 = arith.constant 0 : index
    %c0_97 = arith.constant 0 : index
    %78 = vector.load %arg2[%c8, %c0_96, %c0_97] : memref<9x3x128xbf16, #tpu.memory_space<vmem>>, vector<1x3x128xbf16>
    %79 = vector.shape_cast %78 : vector<1x3x128xbf16> to vector<3x128xbf16>
    %cst_98 = arith.constant dense<0.000000e+00> : vector<256x128xf32>
    %80 = tpu.matmul %76, %79, %cst_98 {dimension_numbers = #tpu.dot_dimension_numbers<[1], [0], [0], [1], [0, 0, 1, 1], [], []>} : vector<256x3xbf16>, vector<3x128xbf16>, vector<256x128xf32> -> vector<256x128xf32>
    %81 = arith.addf %77, %80 : vector<256x128xf32>
    %c0_99 = arith.constant 0 : index
    %c0_100 = arith.constant 0 : index
    %82 = vector.load %arg5[%c0_99, %c0_100] : memref<256x128xf32, #tpu.memory_space<vmem>>, vector<256x128xf32>
    tpu.vector_store %arg5[%c0_99, %c0_100], %81 {strides = array<i32>} : memref<256x128xf32, #tpu.memory_space<vmem>>, vector<256x128xf32>,
    %c0_101 = arith.constant 0 : index
    %c0_102 = arith.constant 0 : index
    %83 = vector.load %arg5[%c0_101, %c0_102] : memref<256x128xf32, #tpu.memory_space<vmem>>, vector<256x128xf32>
    %cst_103 = arith.constant 0.000000e+00 : f32
    %84 = vector.broadcast %cst_103 : f32 to vector<256x128xf32>
    %85 = arith.maximumf %83, %84 : vector<256x128xf32>
    %cst_104 = arith.constant dense<0.000000e+00> : vector<128xf32>
    %86 = vector.multi_reduction <add>, %85, %cst_104 [0] : vector<256x128xf32> to vector<128xf32>
    %87 = vector.shape_cast %86 : vector<128xf32> to vector<1x128xf32>
    %cst_105 = arith.constant 2.560000e+02 : f32
    %88 = vector.broadcast %cst_105 : f32 to vector<1x128xf32>
    %89 = arith.divf %87, %88 : vector<1x128xf32>
    %c0_106 = arith.constant 0 : index
    %c0_107 = arith.constant 0 : index
    %90 = vector.load %arg3[%c0_106, %c0_107] : memref<128x128xbf16, #tpu.memory_space<vmem>>, vector<128x128xbf16>
    %91 = arith.extf %90 : vector<128x128xbf16> to vector<128x128xf32>
    %cst_108 = arith.constant dense<0.000000e+00> : vector<1x128xf32>
    %92 = tpu.matmul %89, %91, %cst_108 {dimension_numbers = #tpu.dot_dimension_numbers<[1], [0], [0], [1], [0, 0, 1, 1], [], []>} : vector<1x128xf32>, vector<128x128xf32>, vector<1x128xf32> -> vector<1x128xf32>
    %c0_109 = arith.constant 0 : index
    %c0_110 = arith.constant 0 : index
    %c0_111 = arith.constant 0 : index
    %93 = vector.load %arg4[%c0_109, %c0_110, %c0_111] : memref<1x1x128xf32, #tpu.memory_space<vmem>>, vector<1x1x128xf32>
    %94 = vector.shape_cast %93 : vector<1x1x128xf32> to vector<1x128xf32>
    %95 = vector.shape_cast %92 : vector<1x128xf32> to vector<1x1x128xf32>
    tpu.vector_store %arg4[%c0_109, %c0_110, %c0_111], %95 {strides = array<i32>} : memref<1x1x128xf32, #tpu.memory_space<vmem>>, vector<1x1x128xf32>,
    return
  }
  func.func @transform_0(%arg0: i32) -> (i32, i32, i32, i32) {
    %c0_i32 = arith.constant 0 : i32
    %c0_i32_0 = arith.constant 0 : i32
    %c0_i32_1 = arith.constant 0 : i32
    %c0_i32_2 = arith.constant 0 : i32
    return %arg0, %c0_i32, %c0_i32_0, %c0_i32_1 : i32, i32, i32, i32
  }
  func.func @transform_1(%arg0: i32) -> (i32, i32, i32) {
    %c0_i32 = arith.constant 0 : i32
    %c0_i32_0 = arith.constant 0 : i32
    %c0_i32_1 = arith.constant 0 : i32
    %c0_i32_2 = arith.constant 0 : i32
    return %c0_i32, %c0_i32_0, %c0_i32_1 : i32, i32, i32
  }
  func.func @transform_2(%arg0: i32) -> (i32, i32) {
    %c0_i32 = arith.constant 0 : i32
    %c0_i32_0 = arith.constant 0 : i32
    %c0_i32_1 = arith.constant 0 : i32
    return %c0_i32, %c0_i32_0 : i32, i32
  }
  func.func @transform_3(%arg0: i32) -> (i32, i32, i32) {
    %c0_i32 = arith.constant 0 : i32
    %c0_i32_0 = arith.constant 0 : i32
    %c0_i32_1 = arith.constant 0 : i32
    return %arg0, %c0_i32, %c0_i32_0 : i32, i32, i32
  }
}

module attributes {stable_mosaic.version = 11 : i64} {
  func.func @batchnorm_kernel(%arg0: memref<2x128xf32, #tpu.memory_space<vmem>>, %arg1: memref<3x128xf32, #tpu.memory_space<vmem>>, %arg2: memref<2x128xf32, #tpu.memory_space<vmem>>) attributes {dimension_semantics = [], scalar_prefetch = 0 : i64, scratch_operands = 0 : i64, tpu.core_type = #tpu.core_type<tc>} {
    %c0 = arith.constant 0 : index
    %c0_0 = arith.constant 0 : index
    %0 = vector.load %arg0[%c0, %c0_0] : memref<2x128xf32, #tpu.memory_space<vmem>>, vector<2x128xf32>
    %c0_1 = arith.constant 0 : index
    %c0_2 = arith.constant 0 : index
    %1 = vector.load %arg1[%c0_1, %c0_2] : memref<3x128xf32, #tpu.memory_space<vmem>>, vector<1x128xf32>
    %2 = vector.broadcast %1 : vector<1x128xf32> to vector<2x128xf32>
    %3 = arith.addf %0, %2 : vector<2x128xf32>
    %cst = arith.constant dense<0.000000e+00> : vector<128xf32>
    %4 = vector.multi_reduction <add>, %3, %cst [0] : vector<2x128xf32> to vector<128xf32>
    %5 = vector.shape_cast %4 : vector<128xf32> to vector<1x128xf32>
    %cst_3 = arith.constant 2.000000e+00 : f32
    %6 = vector.broadcast %cst_3 : f32 to vector<1x128xf32>
    %7 = arith.divf %5, %6 : vector<1x128xf32>
    %8 = vector.broadcast %7 : vector<1x128xf32> to vector<2x128xf32>
    %9 = arith.subf %3, %8 : vector<2x128xf32>
    %10 = arith.mulf %9, %9 : vector<2x128xf32>
    %cst_4 = arith.constant dense<0.000000e+00> : vector<128xf32>
    %11 = vector.multi_reduction <add>, %10, %cst_4 [0] : vector<2x128xf32> to vector<128xf32>
    %12 = vector.shape_cast %11 : vector<128xf32> to vector<1x128xf32>
    %cst_5 = arith.constant 2.000000e+00 : f32
    %13 = vector.broadcast %cst_5 : f32 to vector<1x128xf32>
    %14 = arith.divf %12, %13 : vector<1x128xf32>
    %15 = vector.broadcast %7 : vector<1x128xf32> to vector<2x128xf32>
    %16 = arith.subf %3, %15 : vector<2x128xf32>
    %cst_6 = arith.constant 9.99999974E-6 : f32
    %17 = vector.broadcast %cst_6 : f32 to vector<1x128xf32>
    %18 = arith.addf %14, %17 : vector<1x128xf32>
    %19 = math.rsqrt %18 : vector<1x128xf32>
    %20 = vector.broadcast %19 : vector<1x128xf32> to vector<2x128xf32>
    %21 = arith.mulf %16, %20 : vector<2x128xf32>
    %c1 = arith.constant 1 : index
    %c0_7 = arith.constant 0 : index
    %22 = vector.load %arg1[%c1, %c0_7] : memref<3x128xf32, #tpu.memory_space<vmem>>, vector<1x128xf32>
    %23 = vector.broadcast %22 : vector<1x128xf32> to vector<2x128xf32>
    %24 = arith.mulf %21, %23 : vector<2x128xf32>
    %c2 = arith.constant 2 : index
    %c0_8 = arith.constant 0 : index
    %25 = vector.load %arg1[%c2, %c0_8] : memref<3x128xf32, #tpu.memory_space<vmem>>, vector<1x128xf32>
    %26 = vector.broadcast %25 : vector<1x128xf32> to vector<2x128xf32>
    %27 = arith.addf %24, %26 : vector<2x128xf32>
    %c0_9 = arith.constant 0 : index
    %c0_10 = arith.constant 0 : index
    %28 = vector.load %arg2[%c0_9, %c0_10] : memref<2x128xf32, #tpu.memory_space<vmem>>, vector<2x128xf32>
    tpu.vector_store %arg2[%c0_9, %c0_10], %27 {strides = array<i32>} : memref<2x128xf32, #tpu.memory_space<vmem>>, vector<2x128xf32>,
    return
  }
}

</mosaic_0001>

<llo_original>
// kernel: encoder_cnn_forward.3
$region0: #{encoder_cnn_forward.3}
  #allocation0 [shape = 'u32[]', space=smem, size = 0x4, offset = 0x4, fixed_abs, tag = 'smem constant byte address 0x4 - core index']
  #allocation1 [shape = 'u32[72,128]{1,0:T(1,128)}', space=vmem, size = 0x9000, scoped, tag = 'internal scratch']
  %s0 = inlined_call_operand.vmem [shape: f32[2,128], index: 0, kind: input, shape index: {}]
  %s1 = inlined_call_operand.vmem [shape: f32[3,128], index: 1, kind: input, shape index: {}]
  %s2 = inlined_call_operand.hbm [shape: f32[2,128], index: 2, kind: output, shape index: {}]
  %s3 = sld [smem:[#allocation0]]
  $region18: #{encoder_cnn_forward.3} parent=0
    _
  %s5 = ssub.s32 1, %s3
  %s6 = scalar_select 0, %s5, %s3
  $region1: #{encoder_cnn_forward.3} parent=0
    #allocation2 [shape = 'u8[1024]{0}', space=vmem, size = 0x400, scoped, tag = 'output window, operand 0, single buffered']
    #allocation3 [shape = 's32[1]{0}', space=sflag, size = 0x4, scoped, tag = 'scoped memory for encoder_cnn_forward.3']
    %7 = vsyncpa [#allocation3], 0
    // Predicated region
    $region2: #{encoder_cnn_forward.3} parent=1 // pred_check
      _
    $region3: #{encoder_cnn_forward.3} parent=1 // pred_check_branch
      %9 = sbr.rel (0) target = $region5
    $region4: #{encoder_cnn_forward.3} parent=1 // pred_region
      _
    $region5: #{encoder_cnn_forward.3} parent=1 // pred_fallthru
      _
    // Predicated region
    $region6: #{encoder_cnn_forward.3} parent=1 // pred_check
      _
    $region7: #{encoder_cnn_forward.3} parent=1 // pred_check_branch
      %11 = sbr.rel (0) target = $region9
    $region8: #{encoder_cnn_forward.3} parent=1 // pred_region
      _
    $region9: #{encoder_cnn_forward.3} parent=1 // pred_fallthru
      _
    %v12 = vld [vmem:[%s0] sm:$0x3]
    %v13 = vld [vmem:[%s1] sm:$0x1]
    %v14 = vperm.slane %v13, 0
    %v15 = vadd.f32 %v12, %v14
    %vm16 = vcmask 1041408
    %v17 = vsel %vm16, %v15, 0.0
    %v18 = vrot.slane %v17, 4
    %v19 = vadd.f32 %v17, %v18
    %v20 = vrot.slane %v19, 2
    %v21 = vadd.f32 %v19, %v20
    %v22 = vrot.slane %v21, 1
    %v23 = vadd.f32 %v21, %v22
    %v24 = vrcp.pop 2.0
    %v25 = vmul.f32 2.0, %v24
    %v26 = vsub.f32 1.0, %v25
    %v27 = vmul.f32 %v24, %v26
    %v28 = vadd.f32 %v24, %v27
    %vm29 = vweird.f32 %v24
    %v30 = vsel %vm29, %v24, %v28
    %v31 = vmul.f32 %v23, %v30
    %v32 = vsub.f32 %v15, %v31
    %v33 = vmul.f32 %v32, %v32
    %v34 = vsel %vm16, %v33, 0.0
    %v35 = vrot.slane %v34, 4
    %v36 = vadd.f32 %v34, %v35
    %v37 = vrot.slane %v36, 2
    %v38 = vadd.f32 %v36, %v37
    %v39 = vrot.slane %v38, 1
    %v40 = vadd.f32 %v38, %v39
    %v41 = vmul.f32 %v40, %v30
    %v42 = vadd.f32 %v41, 1e-05
    %v43 = vrsqrt.pop %v42
    %v44 = vmul.f32 %v43, %v42
    %v45 = vmul.f32 %v44, %v43
    %v46 = vmul.f32 0.5, %v45
    %v47 = vsub.f32 1.5, %v46
    %v48 = vmul.f32 %v43, %v47
    %vm49 = vweird.f32 %v42
    %vm50 = vweird.f32 %v43
    %vm51 = vmor %vm49, %vm50
    %v52 = vsel %vm51, %v43, %v48
    %v53 = vmul.f32 %v32, %v52
    %v54 = vld [vmem:[%s1 + $0x1] sm:$0x1]
    %v55 = vperm.slane %v54, 0
    %v56 = vmul.f32 %v53, %v55
    %v57 = vld [vmem:[%s1 + $0x2] sm:$0x1]
    %v58 = vperm.slane %v57, 0
    %v59 = vadd.f32 %v56, %v58
    %60 = vst [vmem:[#allocation2] sm:$0x3] %v59
    // Predicated region
    $region10: #{encoder_cnn_forward.3} parent=1 // pred_check
      _
    $region11: #{encoder_cnn_forward.3} parent=1 // pred_check_branch
      %62 = sbr.rel (0) target = $region13
    $region12: #{encoder_cnn_forward.3} parent=1 // pred_region
      %64 = vsyncadd [#allocation3], 0
      %s66 = sshll.u32 [#allocation2], 4
      %s67 = int_to_ptr.vmem [resolvable:$true] %s66
      %s68 = sshll.u32 %s2, 4
      %s69 = int_to_ptr.hbm [resolvable:$true] %s68
      %71 = dma.vmem_to_hbm [thread:$0]  %s67, 32, %s69, [#allocation3]
    $region13: #{encoder_cnn_forward.3} parent=1 // pred_fallthru
      _
    // Predicated region
    $region14: #{encoder_cnn_forward.3} parent=1 // pred_check
      _
    $region15: #{encoder_cnn_forward.3} parent=1 // pred_check_branch
      %73 = sbr.rel (0) target = $region17
    $region16: #{encoder_cnn_forward.3} parent=1 // pred_region
      %75 = dma.done [#allocation3], 32
    $region17: #{encoder_cnn_forward.3} parent=1 // pred_fallthru
      _
    %76 = vsyncpa [#allocation3], 1

// kernel: encoder_cnn_forward.2
$region0: #{encoder_cnn_forward.2}
  #allocation0 [shape = 'u32[]', space=smem, size = 0x4, offset = 0x4, fixed_abs, tag = 'smem constant byte address 0x4 - core index']
  #allocation1 [shape = 'u32[72,128]{1,0:T(1,128)}', space=vmem, size = 0x9000, scoped, tag = 'internal scratch']
  #allocation2 [shape = 'f32[256,128]{1,0:T(8,128)}', space=vmem, size = 0x20000, scoped, tag = 'scratch operand']
  %s0 = inlined_call_operand.vmem [shape: bf16[2,18,18,3], index: 0, kind: input, shape index: {}]
  %s1 = inlined_call_operand.vmem [shape: bf16[9,3,128], index: 1, kind: input, shape index: {}]
  %s2 = inlined_call_operand.vmem [shape: bf16[128,128], index: 2, kind: input, shape index: {}]
  %s3 = inlined_call_operand.vmem [shape: f32[2,1,128], index: 3, kind: output, shape index: {}]
  %s4 = sld [smem:[#allocation0]]
  $region45: #{encoder_cnn_forward.2} parent=0
    _
  %s6 = ssub.s32 1, %s4
  %s7 = scalar_select 0, %s6, %s4
  loop: start=0, step=1, limit=4
  $region2: #{encoder_cnn_forward.2} parent=0 // loop_pre_header
    _
  $region3: #{encoder_cnn_forward.2} parent=0 // loop_header
    %s9 = sphi 0, %s13
    %p10 = scmp.ge.s32.totalorder %s9, 4
    %s19 = sphi 0, %s21
    %s22 = sphi 0, %s19
    %s23 = sphi 0, %s22
    %s39 = sphi 0, %s23
    %s43 = sphi 0, %s43
    %s45 = sphi 0, %s43
    %s46 = sphi 0, %s45
    %s60 = sphi 0, %s46
    %s64 = sphi 0, %s64
    %s66 = sphi 0, %s64
    %s67 = sphi 0, %s66
    %s81 = sphi 0, %s67
    %s87 = sphi 0, %s89
    %s90 = sphi 0, %s87
    %s91 = sphi 0, %s90
    %s107 = sphi 0, %s91
  $region4: #{encoder_cnn_forward.2} parent=0 // loop_header_branch
    %12 = sbr.rel (%p10) target = $region8
  $region5: #{encoder_cnn_forward.2} parent=0 // loop_body
    %s14 = ssub.s32 %s9, 1
    %s15 = ssub.s32 %s9, 2
    %s16 = sadd.s32 %s9, 1
    %s17 = ssub.s32 %s9, %s16
    %p18 = scmp.eq.s32.totalorder %s17, 0
    %s20 = sadd.s32 %s19, 1
    %s21 = scalar_select %p18, %s19, %s20
    %p24 = pneg %p18
    %p25 = scmp.eq.s32.totalorder %s9, 1
    %p26 = por %p24, %p25
    %p27 = scmp.ne.s32.totalorder %s19, %s22
    %p28 = scmp.eq.s32.totalorder %s9, 0
    %p29 = por %p27, %p28
    %p30 = scmp.ne.s32.totalorder %s19, %s22
    %p31 = scmp.eq.s32.totalorder %s14, 1
    %p32 = por %p30, %p31
    %p33 = scmp.ne.s32.totalorder %s22, %s23
    %p34 = scmp.eq.s32.totalorder %s14, 0
    %p35 = por %p33, %p34
    %p36 = scmp.ne.s32.totalorder %s22, %s23
    %p37 = scmp.eq.s32.totalorder %s15, 1
    %p38 = por %p36, %p37
    %p40 = scmp.ne.s32.totalorder %s23, %s39
    %p41 = scmp.eq.s32.totalorder %s15, 0
    %p42 = por %p40, %p41
    %s44 = sadd.s32 %s43, 1
    %p47 = scmp.eq.s32.totalorder %s9, 1
    %p48 = scmp.ne.s32.totalorder %s43, %s45
    %p49 = scmp.eq.s32.totalorder %s9, 0
    %p50 = por %p48, %p49
    %p51 = scmp.ne.s32.totalorder %s43, %s45
    %p52 = scmp.eq.s32.totalorder %s14, 1
    %p53 = por %p51, %p52
    %p54 = scmp.ne.s32.totalorder %s45, %s46
    %p55 = scmp.eq.s32.totalorder %s14, 0
    %p56 = por %p54, %p55
    %p57 = scmp.ne.s32.totalorder %s45, %s46
    %p58 = scmp.eq.s32.totalorder %s15, 1
    %p59 = por %p57, %p58
    %p61 = scmp.ne.s32.totalorder %s46, %s60
    %p62 = scmp.eq.s32.totalorder %s15, 0
    %p63 = por %p61, %p62
    %s65 = sadd.s32 %s64, 1
    %p68 = scmp.eq.s32.totalorder %s9, 1
    %p69 = scmp.ne.s32.totalorder %s64, %s66
    %p70 = scmp.eq.s32.totalorder %s9, 0
    %p71 = por %p69, %p70
    %p72 = scmp.ne.s32.totalorder %s64, %s66
    %p73 = scmp.eq.s32.totalorder %s14, 1
    %p74 = por %p72, %p73
    %p75 = scmp.ne.s32.totalorder %s66, %s67
    %p76 = scmp.eq.s32.totalorder %s14, 0
    %p77 = por %p75, %p76
    %p78 = scmp.ne.s32.totalorder %s66, %s67
    %p79 = scmp.eq.s32.totalorder %s15, 1
    %p80 = por %p78, %p79
    %p82 = scmp.ne.s32.totalorder %s67, %s81
    %p83 = scmp.eq.s32.totalorder %s15, 0
    %p84 = por %p82, %p83
    %s85 = ssub.s32 %s9, %s16
    %p86 = scmp.eq.s32.totalorder %s85, 0
    %s88 = sadd.s32 %s87, 1
    %s89 = scalar_select %p86, %s87, %s88
    %p92 = pneg %p86
    %p93 = scmp.eq.s32.totalorder %s9, 1
    %p94 = por %p92, %p93
    %p95 = scmp.ne.s32.totalorder %s87, %s90
    %p96 = scmp.eq.s32.totalorder %s9, 0
    %p97 = por %p95, %p96
    %p98 = scmp.ne.s32.totalorder %s87, %s90
    %p99 = scmp.eq.s32.totalorder %s14, 1
    %p100 = por %p98, %p99
    %p101 = scmp.ne.s32.totalorder %s90, %s91
    %p102 = scmp.eq.s32.totalorder %s14, 0
    %p103 = por %p101, %p102
    %p104 = scmp.ne.s32.totalorder %s90, %s91
    %p105 = scmp.eq.s32.totalorder %s15, 1
    %p106 = por %p104, %p105
    %p108 = scmp.ne.s32.totalorder %s91, %s107
    %p109 = scmp.eq.s32.totalorder %s15, 0
    %p110 = por %p108, %p109
    %p111 = scmp.le.s32.totalorder 1, %s9
    %p112 = scmp.lt.s32.totalorder %s9, 3
    %p113 = pnand %p111, %p112
    %p114 = pneg %p113
    // Predicated region
    $region9: #{encoder_cnn_forward.2} parent=5 // pred_check
      _
    $region10: #{encoder_cnn_forward.2} parent=5 // pred_check_branch
      %116 = sbr.rel (%p113) target = $region12
    $region11: #{encoder_cnn_forward.2} parent=5 // pred_region
      %s117 = ssub.s32 %s9, 1
      // Predicated region
      $region13: #{encoder_cnn_forward.2} parent=11 // pred_check
        %p118 = pneg %p56
      $region14: #{encoder_cnn_forward.2} parent=11 // pred_check_branch
        %120 = sbr.rel (%p118) target = $region16
      $region15: #{encoder_cnn_forward.2} parent=11 // pred_region
        _
      $region16: #{encoder_cnn_forward.2} parent=11 // pred_fallthru
        _
      // Predicated region
      $region17: #{encoder_cnn_forward.2} parent=11 // pred_check
        %p121 = pneg %p77
      $region18: #{encoder_cnn_forward.2} parent=11 // pred_check_branch
        %123 = sbr.rel (%p121) target = $region20
      $region19: #{encoder_cnn_forward.2} parent=11 // pred_region
        _
      $region20: #{encoder_cnn_forward.2} parent=11 // pred_fallthru
        _
    $region12: #{encoder_cnn_forward.2} parent=5 // pred_fallthru
      _
    %p124 = scmp.lt.s32.totalorder %s9, 2
    // Predicated region
    $region21: #{encoder_cnn_forward.2} parent=5 // pred_check
      %p125 = pneg %p124
    $region22: #{encoder_cnn_forward.2} parent=5 // pred_check_branch
      %127 = sbr.rel (%p125) target = $region24
    $region23: #{encoder_cnn_forward.2} parent=5 // pred_region
      // Predicated region
      $region25: #{encoder_cnn_forward.2} parent=23 // pred_check
        %p128 = pneg %p29
      $region26: #{encoder_cnn_forward.2} parent=23 // pred_check_branch
        %130 = sbr.rel (%p128) target = $region28
      $region27: #{encoder_cnn_forward.2} parent=23 // pred_region
        %p131 = scmp.lt.s32.totalorder %s9, 1
        %s132 = scalar_select %p131, %s9, 1
        %s133 = smul.addr %s132, 54
        %s134 = smul.addr %s133, 4
        %s135 = scalar_lea.vmem %s0, %s134
      $region28: #{encoder_cnn_forward.2} parent=23 // pred_fallthru
        _
    $region24: #{encoder_cnn_forward.2} parent=5 // pred_fallthru
      _
    %p136 = scmp.le.s32.totalorder 1, %s9
    %p137 = scmp.lt.s32.totalorder %s9, 3
    %p138 = pnand %p136, %p137
    %p139 = pneg %p138
    // Predicated region
    $region29: #{encoder_cnn_forward.2} parent=5 // pred_check
      _
    $region30: #{encoder_cnn_forward.2} parent=5 // pred_check_branch
      %141 = sbr.rel (%p138) target = $region32
    $region31: #{encoder_cnn_forward.2} parent=5 // pred_region
      %s142 = ssub.s32 %s9, 1
      %p143 = scmp.lt.s32.totalorder %s14, 1
      %s144 = scalar_select %p143, %s14, 1
      %s145 = smul.addr %s144, 54
      %s146 = smul.addr %s145, 4
      %s147 = scalar_lea.vmem %s0, %s146
      %p148 = pneg %p35
      %p149 = pneg %p32
      %p150 = pneg %p56
      %p151 = pneg %p53
      %p152 = pneg %p77
      %p153 = pneg %p74
      %p154 = pneg %p103
      %p155 = pneg %p100
      %p156 = scmp.lt.s32.totalorder %s14, 1
      %s157 = scalar_select %p156, %s14, 1
      %s158 = scalar_lea.vmem %s3, %s157
      %p159 = scmp.lt.s32.totalorder %s14, 1
      %s160 = scalar_select %p159, %s14, 1
      %s161 = smul.addr %s160, 54
      %s162 = smul.addr %s161, 4
      %s163 = scalar_lea.vmem %s0, %s162
      %p164 = scmp.lt.s32.totalorder %s14, 1
      %s165 = scalar_select %p164, %s14, 1
      %s166 = scalar_lea.vmem %s3, %s165
      %168 = vst [vmem:[#allocation2] sm:$0xff] 0.0
      %169 = vst [vmem:[#allocation2 + $0x8] sm:$0xff] 0.0
      %170 = vst [vmem:[#allocation2 + $0x10] sm:$0xff] 0.0
      %171 = vst [vmem:[#allocation2 + $0x18] sm:$0xff] 0.0
      %172 = vst [vmem:[#allocation2 + $0x20] sm:$0xff] 0.0
      %173 = vst [vmem:[#allocation2 + $0x28] sm:$0xff] 0.0
      %174 = vst [vmem:[#allocation2 + $0x30] sm:$0xff] 0.0
      %175 = vst [vmem:[#allocation2 + $0x38] sm:$0xff] 0.0
      %176 = vst [vmem:[#allocation2 + $0x40] sm:$0xff] 0.0
      %177 = vst [vmem:[#allocation2 + $0x48] sm:$0xff] 0.0
      %178 = vst [vmem:[#allocation2 + $0x50] sm:$0xff] 0.0
      %179 = vst [vmem:[#allocation2 + $0x58] sm:$0xff] 0.0
      %180 = vst [vmem:[#allocation2 + $0x60] sm:$0xff] 0.0
      %181 = vst [vmem:[#allocation2 + $0x68] sm:$0xff] 0.0
      %182 = vst [vmem:[#allocation2 + $0x70] sm:$0xff] 0.0
      %183 = vst [vmem:[#allocation2 + $0x78] sm:$0xff] 0.0
      %184 = vst [vmem:[#allocation2 + $0x80] sm:$0xff] 0.0
      %185 = vst [vmem:[#allocation2 + $0x88] sm:$0xff] 0.0
      %186 = vst [vmem:[#allocation2 + $0x90] sm:$0xff] 0.0
      %187 = vst [vmem:[#allocation2 + $0x98] sm:$0xff] 0.0
      %188 = vst [vmem:[#allocation2 + $0xa0] sm:$0xff] 0.0
      %189 = vst [vmem:[#allocation2 + $0xa8] sm:$0xff] 0.0
      %190 = vst [vmem:[#allocation2 + $0xb0] sm:$0xff] 0.0
      %191 = vst [vmem:[#allocation2 + $0xb8] sm:$0xff] 0.0
      %192 = vst [vmem:[#allocation2 + $0xc0] sm:$0xff] 0.0
      %193 = vst [vmem:[#allocation2 + $0xc8] sm:$0xff] 0.0
      %194 = vst [vmem:[#allocation2 + $0xd0] sm:$0xff] 0.0
      %195 = vst [vmem:[#allocation2 + $0xd8] sm:$0xff] 0.0
      %196 = vst [vmem:[#allocation2 + $0xe0] sm:$0xff] 0.0
      %197 = vst [vmem:[#allocation2 + $0xe8] sm:$0xff] 0.0
      %198 = vst [vmem:[#allocation2 + $0xf0] sm:$0xff] 0.0
      %199 = vst [vmem:[#allocation2 + $0xf8] sm:$0xff] 0.0
      %v200 = vld [vmem:[%s163] sm:$0xf]
      %v201 = vld [vmem:[%s163 + $0x4] sm:$0xf]
      %v202 = vld [vmem:[%s163 + $0xc] sm:$0xf]
      %v203 = vld [vmem:[%s163 + $0x10] sm:$0xf]
      %v204 = vld [vmem:[%s163 + $0x18] sm:$0xf]
      %v205 = vld [vmem:[%s163 + $0x1c] sm:$0xf]
      %v206 = vld [vmem:[%s163 + $0x24] sm:$0xf]
      %v207 = vld [vmem:[%s163 + $0x28] sm:$0xf]
      %v208 = vld [vmem:[%s163 + $0x30] sm:$0xf]
      %v209 = vld [vmem:[%s163 + $0x34] sm:$0xf]
      %v210 = vld [vmem:[%s163 + $0x3c] sm:$0xf]
      %v211 = vld [vmem:[%s163 + $0x40] sm:$0xf]
      %v212 = vld [vmem:[%s163 + $0x48] sm:$0xf]
      %v213 = vld [vmem:[%s163 + $0x4c] sm:$0xf]
      %v214 = vld [vmem:[%s163 + $0x54] sm:$0xf]
      %v215 = vld [vmem:[%s163 + $0x58] sm:$0xf]
      %v216 = vld [vmem:[%s163 + $0x60] sm:$0xf]
      %v217 = vld [vmem:[%s163 + $0x64] sm:$0xf]
      %v218 = vld [vmem:[%s163 + $0x6c] sm:$0xf]
      %v219 = vld [vmem:[%s163 + $0x70] sm:$0xf]
      %v220 = vld [vmem:[%s163 + $0x78] sm:$0xf]
      %v221 = vld [vmem:[%s163 + $0x7c] sm:$0xf]
      %v222 = vld [vmem:[%s163 + $0x84] sm:$0xf]
      %v223 = vld [vmem:[%s163 + $0x88] sm:$0xf]
      %v224 = vld [vmem:[%s163 + $0x90] sm:$0xf]
      %v225 = vld [vmem:[%s163 + $0x94] sm:$0xf]
      %v226 = vld [vmem:[%s163 + $0x9c] sm:$0xf]
      %v227 = vld [vmem:[%s163 + $0xa0] sm:$0xf]
      %v228 = vld [vmem:[%s163 + $0xa8] sm:$0xf]
      %v229 = vld [vmem:[%s163 + $0xac] sm:$0xf]
      %v230 = vld [vmem:[%s163 + $0xb4] sm:$0xf]
      %v231 = vld [vmem:[%s163 + $0xb8] sm:$0xf]
      %v232 = vld [vmem:[#allocation2] sm:$0xff]
      %v233 = vld [vmem:[#allocation2 + $0x8] sm:$0xff]
      %v234 = vld [vmem:[#allocation2 + $0x10] sm:$0xff]
      %v235 = vld [vmem:[#allocation2 + $0x18] sm:$0xff]
      %v236 = vld [vmem:[#allocation2 + $0x20] sm:$0xff]
      %v237 = vld [vmem:[#allocation2 + $0x28] sm:$0xff]
      %v238 = vld [vmem:[#allocation2 + $0x30] sm:$0xff]
      %v239 = vld [vmem:[#allocation2 + $0x38] sm:$0xff]
      %v240 = vld [vmem:[#allocation2 + $0x40] sm:$0xff]
      %v241 = vld [vmem:[#allocation2 + $0x48] sm:$0xff]
      %v242 = vld [vmem:[#allocation2 + $0x50] sm:$0xff]
      %v243 = vld [vmem:[#allocation2 + $0x58] sm:$0xff]
      %v244 = vld [vmem:[#allocation2 + $0x60] sm:$0xff]
      %v245 = vld [vmem:[#allocation2 + $0x68] sm:$0xff]
      %v246 = vld [vmem:[#allocation2 + $0x70] sm:$0xff]
      %v247 = vld [vmem:[#allocation2 + $0x78] sm:$0xff]
      %v248 = vld [vmem:[#allocation2 + $0x80] sm:$0xff]
      %v249 = vld [vmem:[#allocation2 + $0x88] sm:$0xff]
      %v250 = vld [vmem:[#allocation2 + $0x90] sm:$0xff]
      %v251 = vld [vmem:[#allocation2 + $0x98] sm:$0xff]
      %v252 = vld [vmem:[#allocation2 + $0xa0] sm:$0xff]
      %v253 = vld [vmem:[#allocation2 + $0xa8] sm:$0xff]
      %v254 = vld [vmem:[#allocation2 + $0xb0] sm:$0xff]
      %v255 = vld [vmem:[#allocation2 + $0xb8] sm:$0xff]
      %v256 = vld [vmem:[#allocation2 + $0xc0] sm:$0xff]
      %v257 = vld [vmem:[#allocation2 + $0xc8] sm:$0xff]
      %v258 = vld [vmem:[#allocation2 + $0xd0] sm:$0xff]
      %v259 = vld [vmem:[#allocation2 + $0xd8] sm:$0xff]
      %v260 = vld [vmem:[#allocation2 + $0xe0] sm:$0xff]
      %v261 = vld [vmem:[#allocation2 + $0xe8] sm:$0xff]
      %v262 = vld [vmem:[#allocation2 + $0xf0] sm:$0xff]
      %v263 = vld [vmem:[#allocation2 + $0xf8] sm:$0xff]
      %v264 = vld [vmem:[%s1] sm:$0x3]
      %v297 = vunpack.c.l.b16 %v200
      %v298 = vunpack.c.l.b16 %v201
      %v299 = vunpack.c.l.b16 %v202
      %v300 = vunpack.c.l.b16 %v203
      %v301 = vunpack.c.l.b16 %v204
      %v302 = vunpack.c.l.b16 %v205
      %v303 = vunpack.c.l.b16 %v206
      %v304 = vunpack.c.l.b16 %v207
      %v305 = vunpack.c.l.b16 %v208
      %v306 = vunpack.c.l.b16 %v209
      %v307 = vunpack.c.l.b16 %v210
      %v308 = vunpack.c.l.b16 %v211
      %v309 = vunpack.c.l.b16 %v212
      %v310 = vunpack.c.l.b16 %v213
      %v311 = vunpack.c.l.b16 %v214
      %v312 = vunpack.c.l.b16 %v215
      %v313 = vunpack.c.l.b16 %v216
      %v314 = vunpack.c.l.b16 %v217
      %v315 = vunpack.c.l.b16 %v218
      %v316 = vunpack.c.l.b16 %v219
      %v317 = vunpack.c.l.b16 %v220
      %v318 = vunpack.c.l.b16 %v221
      %v319 = vunpack.c.l.b16 %v222
      %v320 = vunpack.c.l.b16 %v223
      %v321 = vunpack.c.l.b16 %v224
      %v322 = vunpack.c.l.b16 %v225
      %v323 = vunpack.c.l.b16 %v226
      %v324 = vunpack.c.l.b16 %v227
      %v325 = vunpack.c.l.b16 %v228
      %v326 = vunpack.c.l.b16 %v229
      %v327 = vunpack.c.l.b16 %v230
      %v328 = vunpack.c.l.b16 %v231
      %v329 = vpack.c.b16 %v298, %v297
      %v330 = vpack.c.b16 %v300, %v299
      %v331 = vpack.c.b16 %v302, %v301
      %v332 = vpack.c.b16 %v304, %v303
      %v333 = vpack.c.b16 %v306, %v305
      %v334 = vpack.c.b16 %v308, %v307
      %v335 = vpack.c.b16 %v310, %v309
      %v336 = vpack.c.b16 %v312, %v311
      %v337 = vpack.c.b16 %v314, %v313
      %v338 = vpack.c.b16 %v316, %v315
      %v339 = vpack.c.b16 %v318, %v317
      %v340 = vpack.c.b16 %v320, %v319
      %v341 = vpack.c.b16 %v322, %v321
      %v342 = vpack.c.b16 %v324, %v323
      %v343 = vpack.c.b16 %v326, %v325
      %v344 = vpack.c.b16 %v328, %v327
      %vm345 = vcmask 23552
      %v347 = vsel %vm345, %v329, 0
      %v350 = vsel %vm345, %v330, 0
      %v353 = vsel %vm345, %v331, 0
      %v356 = vsel %vm345, %v332, 0
      %v359 = vsel %vm345, %v333, 0
      %v362 = vsel %vm345, %v334, 0
      %v365 = vsel %vm345, %v335, 0
      %v368 = vsel %vm345, %v336, 0
      %v371 = vsel %vm345, %v337, 0
      %v374 = vsel %vm345, %v338, 0
      %v377 = vsel %vm345, %v339, 0
      %v380 = vsel %vm345, %v340, 0
      %v383 = vsel %vm345, %v341, 0
      %v386 = vsel %vm345, %v342, 0
      %v389 = vsel %vm345, %v343, 0
      %v392 = vsel %vm345, %v344, 0
      %vm394 = vcmask 1040384
      %vm395 = vcmask 1041408
      %v396 = vsel %vm394, 4294967295, 65535
      %v397 = vsel %vm395, %v396, 0
      %v399 = vand.u32 %v264, %v397
      %401 = vmatpush.bf16.msra.mxu0 0
      %402 = vmatpush.bf16.msra.mxu0 0
      %403 = vmatpush.bf16.msra.mxu0 0
      %404 = vmatpush.bf16.msra.mxu0 0
      %405 = vmatpush.bf16.msra.mxu0 0
      %406 = vmatpush.bf16.msra.mxu0 0
      %407 = vmatpush.bf16.msra.mxu0 0
      %408 = vmatpush.bf16.msra.mxu0 %v399
      %409 = vmatmul.bf16.gmra.mxu0 %v347
      %v410 = vpop.f32.mrf.mxu0
      %v411 = vadd.f32 0.0, %v410
      %v412 = vpop.f32.mrf.mxu0
      %v413 = vadd.f32 0.0, %v412
      %414 = vmatmul.bf16.gmra.mxu0 %v350
      %v415 = vpop.f32.mrf.mxu0
      %v416 = vadd.f32 0.0, %v415
      %v417 = vpop.f32.mrf.mxu0
      %v418 = vadd.f32 0.0, %v417
      %419 = vmatmul.bf16.gmra.mxu0 %v353
      %v420 = vpop.f32.mrf.mxu0
      %v421 = vadd.f32 0.0, %v420
      %v422 = vpop.f32.mrf.mxu0
      %v423 = vadd.f32 0.0, %v422
      %424 = vmatmul.bf16.gmra.mxu0 %v356
      %v425 = vpop.f32.mrf.mxu0
      %v426 = vadd.f32 0.0, %v425
      %v427 = vpop.f32.mrf.mxu0
      %v428 = vadd.f32 0.0, %v427
      %429 = vmatmul.bf16.gmra.mxu0 %v359
      %v430 = vpop.f32.mrf.mxu0
      %v431 = vadd.f32 0.0, %v430
      %v432 = vpop.f32.mrf.mxu0
      %v433 = vadd.f32 0.0, %v432
      %434 = vmatmul.bf16.gmra.mxu0 %v362
      %v435 = vpop.f32.mrf.mxu0
      %v436 = vadd.f32 0.0, %v435
      %v437 = vpop.f32.mrf.mxu0
      %v438 = vadd.f32 0.0, %v437
      %439 = vmatmul.bf16.gmra.mxu0 %v365
      %v440 = vpop.f32.mrf.mxu0
      %v441 = vadd.f32 0.0, %v440
      %v442 = vpop.f32.mrf.mxu0
      %v443 = vadd.f32 0.0, %v442
      %444 = vmatmul.bf16.gmra.mxu0 %v368
      %v445 = vpop.f32.mrf.mxu0
      %v446 = vadd.f32 0.0, %v445
      %v447 = vpop.f32.mrf.mxu0
      %v448 = vadd.f32 0.0, %v447
      %449 = vmatmul.bf16.gmra.mxu0 %v371
      %v450 = vpop.f32.mrf.mxu0
      %v451 = vadd.f32 0.0, %v450
      %v452 = vpop.f32.mrf.mxu0
      %v453 = vadd.f32 0.0, %v452
      %454 = vmatmul.bf16.gmra.mxu0 %v374
      %v455 = vpop.f32.mrf.mxu0
      %v456 = vadd.f32 0.0, %v455
      %v457 = vpop.f32.mrf.mxu0
      %v458 = vadd.f32 0.0, %v457
      %459 = vmatmul.bf16.gmra.mxu0 %v377
      %v460 = vpop.f32.mrf.mxu0
      %v461 = vadd.f32 0.0, %v460
      %v462 = vpop.f32.mrf.mxu0
      %v463 = vadd.f32 0.0, %v462
      %464 = vmatmul.bf16.gmra.mxu0 %v380
      %v465 = vpop.f32.mrf.mxu0
      %v466 = vadd.f32 0.0, %v465
      %v467 = vpop.f32.mrf.mxu0
      %v468 = vadd.f32 0.0, %v467
      %469 = vmatmul.bf16.gmra.mxu0 %v383
      %v470 = vpop.f32.mrf.mxu0
      %v471 = vadd.f32 0.0, %v470
      %v472 = vpop.f32.mrf.mxu0
      %v473 = vadd.f32 0.0, %v472
      %474 = vmatmul.bf16.gmra.mxu0 %v386
      %v475 = vpop.f32.mrf.mxu0
      %v476 = vadd.f32 0.0, %v475
      %v477 = vpop.f32.mrf.mxu0
      %v478 = vadd.f32 0.0, %v477
      %479 = vmatmul.bf16.gmra.mxu0 %v389
      %v480 = vpop.f32.mrf.mxu0
      %v481 = vadd.f32 0.0, %v480
      %v482 = vpop.f32.mrf.mxu0
      %v483 = vadd.f32 0.0, %v482
      %484 = vmatmul.bf16.gmra.mxu0 %v392
      %v485 = vpop.f32.mrf.mxu0
      %v486 = vadd.f32 0.0, %v485
      %v487 = vpop.f32.mrf.mxu0
      %v488 = vadd.f32 0.0, %v487
      %489 = vdwg.mxu0
      %v490 = vadd.f32 %v232, %v411
      %v491 = vadd.f32 %v233, %v413
      %v492 = vadd.f32 %v234, %v416
      %v493 = vadd.f32 %v235, %v418
      %v494 = vadd.f32 %v236, %v421
      %v495 = vadd.f32 %v237, %v423
      %v496 = vadd.f32 %v238, %v426
      %v497 = vadd.f32 %v239, %v428
      %v498 = vadd.f32 %v240, %v431
      %v499 = vadd.f32 %v241, %v433
      %v500 = vadd.f32 %v242, %v436
      %v501 = vadd.f32 %v243, %v438
      %v502 = vadd.f32 %v244, %v441
      %v503 = vadd.f32 %v245, %v443
      %v504 = vadd.f32 %v246, %v446
      %v505 = vadd.f32 %v247, %v448
      %v506 = vadd.f32 %v248, %v451
      %v507 = vadd.f32 %v249, %v453
      %v508 = vadd.f32 %v250, %v456
      %v509 = vadd.f32 %v251, %v458
      %v510 = vadd.f32 %v252, %v461
      %v511 = vadd.f32 %v253, %v463
      %v512 = vadd.f32 %v254, %v466
      %v513 = vadd.f32 %v255, %v468
      %v514 = vadd.f32 %v256, %v471
      %v515 = vadd.f32 %v257, %v473
      %v516 = vadd.f32 %v258, %v476
      %v517 = vadd.f32 %v259, %v478
      %v518 = vadd.f32 %v260, %v481
      %v519 = vadd.f32 %v261, %v483
      %v520 = vadd.f32 %v262, %v486
      %v521 = vadd.f32 %v263, %v488
      %522 = vst [vmem:[#allocation2] sm:$0xff] %v490
      %523 = vst [vmem:[#allocation2 + $0x8] sm:$0xff] %v491
      %524 = vst [vmem:[#allocation2 + $0x10] sm:$0xff] %v492
      %525 = vst [vmem:[#allocation2 + $0x18] sm:$0xff] %v493
      %526 = vst [vmem:[#allocation2 + $0x20] sm:$0xff] %v494
      %527 = vst [vmem:[#allocation2 + $0x28] sm:$0xff] %v495
      %528 = vst [vmem:[#allocation2 + $0x30] sm:$0xff] %v496
      %529 = vst [vmem:[#allocation2 + $0x38] sm:$0xff] %v497
      %530 = vst [vmem:[#allocation2 + $0x40] sm:$0xff] %v498
      %531 = vst [vmem:[#allocation2 + $0x48] sm:$0xff] %v499
      %532 = vst [vmem:[#allocation2 + $0x50] sm:$0xff] %v500
      %533 = vst [vmem:[#allocation2 + $0x58] sm:$0xff] %v501
      %534 = vst [vmem:[#allocation2 + $0x60] sm:$0xff] %v502
      %535 = vst [vmem:[#allocation2 + $0x68] sm:$0xff] %v503
      %536 = vst [vmem:[#allocation2 + $0x70] sm:$0xff] %v504
      %537 = vst [vmem:[#allocation2 + $0x78] sm:$0xff] %v505
      %538 = vst [vmem:[#allocation2 + $0x80] sm:$0xff] %v506
      %539 = vst [vmem:[#allocation2 + $0x88] sm:$0xff] %v507
      %540 = vst [vmem:[#allocation2 + $0x90] sm:$0xff] %v508
      %541 = vst [vmem:[#allocation2 + $0x98] sm:$0xff] %v509
      %542 = vst [vmem:[#allocation2 + $0xa0] sm:$0xff] %v510
      %543 = vst [vmem:[#allocation2 + $0xa8] sm:$0xff] %v511
      %544 = vst [vmem:[#allocation2 + $0xb0] sm:$0xff] %v512
      %545 = vst [vmem:[#allocation2 + $0xb8] sm:$0xff] %v513
      %546 = vst [vmem:[#allocation2 + $0xc0] sm:$0xff] %v514
      %547 = vst [vmem:[#allocation2 + $0xc8] sm:$0xff] %v515
      %548 = vst [vmem:[#allocation2 + $0xd0] sm:$0xff] %v516
      %549 = vst [vmem:[#allocation2 + $0xd8] sm:$0xff] %v517
      %550 = vst [vmem:[#allocation2 + $0xe0] sm:$0xff] %v518
      %551 = vst [vmem:[#allocation2 + $0xe8] sm:$0xff] %v519
      %552 = vst [vmem:[#allocation2 + $0xf0] sm:$0xff] %v520
      %553 = vst [vmem:[#allocation2 + $0xf8] sm:$0xff] %v521
      %v554 = vld [vmem:[%s163] sm:$0xf]
      %v555 = vld [vmem:[%s163 + $0x4] sm:$0xf]
      %v556 = vld [vmem:[%s163 + $0x8] sm:$0x1]
      %v557 = vld [vmem:[%s163 + $0xc] sm:$0xf]
      %v558 = vld [vmem:[%s163 + $0x10] sm:$0xf]
      %v559 = vld [vmem:[%s163 + $0x14] sm:$0x1]
      %v560 = vld [vmem:[%s163 + $0x18] sm:$0xf]
      %v561 = vld [vmem:[%s163 + $0x1c] sm:$0xf]
      %v562 = vld [vmem:[%s163 + $0x20] sm:$0x1]
      %v563 = vld [vmem:[%s163 + $0x24] sm:$0xf]
      %v564 = vld [vmem:[%s163 + $0x28] sm:$0xf]
      %v565 = vld [vmem:[%s163 + $0x2c] sm:$0x1]
      %v566 = vld [vmem:[%s163 + $0x30] sm:$0xf]
      %v567 = vld [vmem:[%s163 + $0x34] sm:$0xf]
      %v568 = vld [vmem:[%s163 + $0x38] sm:$0x1]
      %v569 = vld [vmem:[%s163 + $0x3c] sm:$0xf]
      %v570 = vld [vmem:[%s163 + $0x40] sm:$0xf]
      %v571 = vld [vmem:[%s163 + $0x44] sm:$0x1]
      %v572 = vld [vmem:[%s163 + $0x48] sm:$0xf]
      %v573 = vld [vmem:[%s163 + $0x4c] sm:$0xf]
      %v574 = vld [vmem:[%s163 + $0x50] sm:$0x1]
      %v575 = vld [vmem:[%s163 + $0x54] sm:$0xf]
      %v576 = vld [vmem:[%s163 + $0x58] sm:$0xf]
      %v577 = vld [vmem:[%s163 + $0x5c] sm:$0x1]
      %v578 = vld [vmem:[%s163 + $0x60] sm:$0xf]
      %v579 = vld [vmem:[%s163 + $0x64] sm:$0xf]
      %v580 = vld [vmem:[%s163 + $0x68] sm:$0x1]
      %v581 = vld [vmem:[%s163 + $0x6c] sm:$0xf]
      %v582 = vld [vmem:[%s163 + $0x70] sm:$0xf]
      %v583 = vld [vmem:[%s163 + $0x74] sm:$0x1]
      %v584 = vld [vmem:[%s163 + $0x78] sm:$0xf]
      %v585 = vld [vmem:[%s163 + $0x7c] sm:$0xf]
      %v586 = vld [vmem:[%s163 + $0x80] sm:$0x1]
      %v587 = vld [vmem:[%s163 + $0x84] sm:$0xf]
      %v588 = vld [vmem:[%s163 + $0x88] sm:$0xf]
      %v589 = vld [vmem:[%s163 + $0x8c] sm:$0x1]
      %v590 = vld [vmem:[%s163 + $0x90] sm:$0xf]
      %v591 = vld [vmem:[%s163 + $0x94] sm:$0xf]
      %v592 = vld [vmem:[%s163 + $0x98] sm:$0x1]
      %v593 = vld [vmem:[%s163 + $0x9c] sm:$0xf]
      %v594 = vld [vmem:[%s163 + $0xa0] sm:$0xf]
      %v595 = vld [vmem:[%s163 + $0xa4] sm:$0x1]
      %v596 = vld [vmem:[%s163 + $0xa8] sm:$0xf]
      %v597 = vld [vmem:[%s163 + $0xac] sm:$0xf]
      %v598 = vld [vmem:[%s163 + $0xb0] sm:$0x1]
      %v599 = vld [vmem:[%s163 + $0xb4] sm:$0xf]
      %v600 = vld [vmem:[%s163 + $0xb8] sm:$0xf]
      %v601 = vld [vmem:[%s163 + $0xbc] sm:$0x1]
      %vm602 = vsmask.f32 3328
      %vm603 = vsmask.f32 7440
      %vm604 = vmor %vm602, %vm603
      %v606 = vshrl.u32 %v554, 16
      %v608 = vrot.slane %v606, 4
      %v609 = vshll.u32 %v554, 16
      %v611 = vrot.slane %v609, 5
      %v612 = vor.u32 %v608, %v611
      %v613 = vrot.slane %v612, 4
      %v615 = vshll.u32 %v555, 16
      %v617 = vrot.slane %v615, 5
      %v618 = vsel %vm604, %v613, %v617
      %v619 = vshrl.u32 %v555, 16
      %v621 = vrot.slane %v619, 4
      %v622 = vor.u32 %v621, %v617
      %v623 = vrot.slane %v622, 4
      %v625 = vshll.u32 %v556, 16
      %v627 = vrot.slane %v625, 5
      %v628 = vsel %vm604, %v623, %v627
      %v630 = vshrl.u32 %v557, 16
      %v632 = vrot.slane %v630, 4
      %v633 = vshll.u32 %v557, 16
      %v635 = vrot.slane %v633, 5
      %v636 = vor.u32 %v632, %v635
      %v637 = vrot.slane %v636, 4
      %v639 = vshll.u32 %v558, 16
      %v641 = vrot.slane %v639, 5
      %v642 = vsel %vm604, %v637, %v641
      %v643 = vshrl.u32 %v558, 16
      %v645 = vrot.slane %v643, 4
      %v646 = vor.u32 %v645, %v641
      %v647 = vrot.slane %v646, 4
      %v649 = vshll.u32 %v559, 16
      %v651 = vrot.slane %v649, 5
      %v652 = vsel %vm604, %v647, %v651
      %v654 = vshrl.u32 %v560, 16
      %v656 = vrot.slane %v654, 4
      %v657 = vshll.u32 %v560, 16
      %v659 = vrot.slane %v657, 5
      %v660 = vor.u32 %v656, %v659
      %v661 = vrot.slane %v660, 4
      %v663 = vshll.u32 %v561, 16
      %v665 = vrot.slane %v663, 5
      %v666 = vsel %vm604, %v661, %v665
      %v667 = vshrl.u32 %v561, 16
      %v669 = vrot.slane %v667, 4
      %v670 = vor.u32 %v669, %v665
      %v671 = vrot.slane %v670, 4
      %v673 = vshll.u32 %v562, 16
      %v675 = vrot.slane %v673, 5
      %v676 = vsel %vm604, %v671, %v675
      %v678 = vshrl.u32 %v563, 16
      %v680 = vrot.slane %v678, 4
      %v681 = vshll.u32 %v563, 16
      %v683 = vrot.slane %v681, 5
      %v684 = vor.u32 %v680, %v683
      %v685 = vrot.slane %v684, 4
      %v687 = vshll.u32 %v564, 16
      %v689 = vrot.slane %v687, 5
      %v690 = vsel %vm604, %v685, %v689
      %v691 = vshrl.u32 %v564, 16
      %v693 = vrot.slane %v691, 4
      %v694 = vor.u32 %v693, %v689
      %v695 = vrot.slane %v694, 4
      %v697 = vshll.u32 %v565, 16
      %v699 = vrot.slane %v697, 5
      %v700 = vsel %vm604, %v695, %v699
      %v702 = vshrl.u32 %v566, 16
      %v704 = vrot.slane %v702, 4
      %v705 = vshll.u32 %v566, 16
      %v707 = vrot.slane %v705, 5
      %v708 = vor.u32 %v704, %v707
      %v709 = vrot.slane %v708, 4
      %v711 = vshll.u32 %v567, 16
      %v713 = vrot.slane %v711, 5
      %v714 = vsel %vm604, %v709, %v713
      %v715 = vshrl.u32 %v567, 16
      %v717 = vrot.slane %v715, 4
      %v718 = vor.u32 %v717, %v713
      %v719 = vrot.slane %v718, 4
      %v721 = vshll.u32 %v568, 16
      %v723 = vrot.slane %v721, 5
      %v724 = vsel %vm604, %v719, %v723
      %v726 = vshrl.u32 %v569, 16
      %v728 = vrot.slane %v726, 4
      %v729 = vshll.u32 %v569, 16
      %v731 = vrot.slane %v729, 5
      %v732 = vor.u32 %v728, %v731
      %v733 = vrot.slane %v732, 4
      %v735 = vshll.u32 %v570, 16
      %v737 = vrot.slane %v735, 5
      %v738 = vsel %vm604, %v733, %v737
      %v739 = vshrl.u32 %v570, 16
      %v741 = vrot.slane %v739, 4
      %v742 = vor.u32 %v741, %v737
      %v743 = vrot.slane %v742, 4
      %v745 = vshll.u32 %v571, 16
      %v747 = vrot.slane %v745, 5
      %v748 = vsel %vm604, %v743, %v747
      %v750 = vshrl.u32 %v572, 16
      %v752 = vrot.slane %v750, 4
      %v753 = vshll.u32 %v572, 16
      %v755 = vrot.slane %v753, 5
      %v756 = vor.u32 %v752, %v755
      %v757 = vrot.slane %v756, 4
      %v759 = vshll.u32 %v573, 16
      %v761 = vrot.slane %v759, 5
      %v762 = vsel %vm604, %v757, %v761
      %v763 = vshrl.u32 %v573, 16
      %v765 = vrot.slane %v763, 4
      %v766 = vor.u32 %v765, %v761
      %v767 = vrot.slane %v766, 4
      %v769 = vshll.u32 %v574, 16
      %v771 = vrot.slane %v769, 5
      %v772 = vsel %vm604, %v767, %v771
      %v774 = vshrl.u32 %v575, 16
      %v776 = vrot.slane %v774, 4
      %v777 = vshll.u32 %v575, 16
      %v779 = vrot.slane %v777, 5
      %v780 = vor.u32 %v776, %v779
      %v781 = vrot.slane %v780, 4
      %v783 = vshll.u32 %v576, 16
      %v785 = vrot.slane %v783, 5
      %v786 = vsel %vm604, %v781, %v785
      %v787 = vshrl.u32 %v576, 16
      %v789 = vrot.slane %v787, 4
      %v790 = vor.u32 %v789, %v785
      %v791 = vrot.slane %v790, 4
      %v793 = vshll.u32 %v577, 16
      %v795 = vrot.slane %v793, 5
      %v796 = vsel %vm604, %v791, %v795
      %v798 = vshrl.u32 %v578, 16
      %v800 = vrot.slane %v798, 4
      %v801 = vshll.u32 %v578, 16
      %v803 = vrot.slane %v801, 5
      %v804 = vor.u32 %v800, %v803
      %v805 = vrot.slane %v804, 4
      %v807 = vshll.u32 %v579, 16
      %v809 = vrot.slane %v807, 5
      %v810 = vsel %vm604, %v805, %v809
      %v811 = vshrl.u32 %v579, 16
      %v813 = vrot.slane %v811, 4
      %v814 = vor.u32 %v813, %v809
      %v815 = vrot.slane %v814, 4
      %v817 = vshll.u32 %v580, 16
      %v819 = vrot.slane %v817, 5
      %v820 = vsel %vm604, %v815, %v819
      %v822 = vshrl.u32 %v581, 16
      %v824 = vrot.slane %v822, 4
      %v825 = vshll.u32 %v581, 16
      %v827 = vrot.slane %v825, 5
      %v828 = vor.u32 %v824, %v827
      %v829 = vrot.slane %v828, 4
      %v831 = vshll.u32 %v582, 16
      %v833 = vrot.slane %v831, 5
      %v834 = vsel %vm604, %v829, %v833
      %v835 = vshrl.u32 %v582, 16
      %v837 = vrot.slane %v835, 4
      %v838 = vor.u32 %v837, %v833
      %v839 = vrot.slane %v838, 4
      %v841 = vshll.u32 %v583, 16
      %v843 = vrot.slane %v841, 5
      %v844 = vsel %vm604, %v839, %v843
      %v846 = vshrl.u32 %v584, 16
      %v848 = vrot.slane %v846, 4
      %v849 = vshll.u32 %v584, 16
      %v851 = vrot.slane %v849, 5
      %v852 = vor.u32 %v848, %v851
      %v853 = vrot.slane %v852, 4
      %v855 = vshll.u32 %v585, 16
      %v857 = vrot.slane %v855, 5
      %v858 = vsel %vm604, %v853, %v857
      %v859 = vshrl.u32 %v585, 16
      %v861 = vrot.slane %v859, 4
      %v862 = vor.u32 %v861, %v857
      %v863 = vrot.slane %v862, 4
      %v865 = vshll.u32 %v586, 16
      %v867 = vrot.slane %v865, 5
      %v868 = vsel %vm604, %v863, %v867
      %v870 = vshrl.u32 %v587, 16
      %v872 = vrot.slane %v870, 4
      %v873 = vshll.u32 %v587, 16
      %v875 = vrot.slane %v873, 5
      %v876 = vor.u32 %v872, %v875
      %v877 = vrot.slane %v876, 4
      %v879 = vshll.u32 %v588, 16
      %v881 = vrot.slane %v879, 5
      %v882 = vsel %vm604, %v877, %v881
      %v883 = vshrl.u32 %v588, 16
      %v885 = vrot.slane %v883, 4
      %v886 = vor.u32 %v885, %v881
      %v887 = vrot.slane %v886, 4
      %v889 = vshll.u32 %v589, 16
      %v891 = vrot.slane %v889, 5
      %v892 = vsel %vm604, %v887, %v891
      %v894 = vshrl.u32 %v590, 16
      %v896 = vrot.slane %v894, 4
      %v897 = vshll.u32 %v590, 16
      %v899 = vrot.slane %v897, 5
      %v900 = vor.u32 %v896, %v899
      %v901 = vrot.slane %v900, 4
      %v903 = vshll.u32 %v591, 16
      %v905 = vrot.slane %v903, 5
      %v906 = vsel %vm604, %v901, %v905
      %v907 = vshrl.u32 %v591, 16
      %v909 = vrot.slane %v907, 4
      %v910 = vor.u32 %v909, %v905
      %v911 = vrot.slane %v910, 4
      %v913 = vshll.u32 %v592, 16
      %v915 = vrot.slane %v913, 5
      %v916 = vsel %vm604, %v911, %v915
      %v918 = vshrl.u32 %v593, 16
      %v920 = vrot.slane %v918, 4
      %v921 = vshll.u32 %v593, 16
      %v923 = vrot.slane %v921, 5
      %v924 = vor.u32 %v920, %v923
      %v925 = vrot.slane %v924, 4
      %v927 = vshll.u32 %v594, 16
      %v929 = vrot.slane %v927, 5
      %v930 = vsel %vm604, %v925, %v929
      %v931 = vshrl.u32 %v594, 16
      %v933 = vrot.slane %v931, 4
      %v934 = vor.u32 %v933, %v929
      %v935 = vrot.slane %v934, 4
      %v937 = vshll.u32 %v595, 16
      %v939 = vrot.slane %v937, 5
      %v940 = vsel %vm604, %v935, %v939
      %v942 = vshrl.u32 %v596, 16
      %v944 = vrot.slane %v942, 4
      %v945 = vshll.u32 %v596, 16
      %v947 = vrot.slane %v945, 5
      %v948 = vor.u32 %v944, %v947
      %v949 = vrot.slane %v948, 4
      %v951 = vshll.u32 %v597, 16
      %v953 = vrot.slane %v951, 5
      %v954 = vsel %vm604, %v949, %v953
      %v955 = vshrl.u32 %v597, 16
      %v957 = vrot.slane %v955, 4
      %v958 = vor.u32 %v957, %v953
      %v959 = vrot.slane %v958, 4
      %v961 = vshll.u32 %v598, 16
      %v963 = vrot.slane %v961, 5
      %v964 = vsel %vm604, %v959, %v963
      %v966 = vshrl.u32 %v599, 16
      %v968 = vrot.slane %v966, 4
      %v969 = vshll.u32 %v599, 16
      %v971 = vrot.slane %v969, 5
      %v972 = vor.u32 %v968, %v971
      %v973 = vrot.slane %v972, 4
      %v975 = vshll.u32 %v600, 16
      %v977 = vrot.slane %v975, 5
      %v978 = vsel %vm604, %v973, %v977
      %v979 = vshrl.u32 %v600, 16
      %v981 = vrot.slane %v979, 4
      %v982 = vor.u32 %v981, %v977
      %v983 = vrot.slane %v982, 4
      %v985 = vshll.u32 %v601, 16
      %v987 = vrot.slane %v985, 5
      %v988 = vsel %vm604, %v983, %v987
      %v989 = vld [vmem:[#allocation2] sm:$0xff]
      %v990 = vld [vmem:[#allocation2 + $0x8] sm:$0xff]
      %v991 = vld [vmem:[#allocation2 + $0x10] sm:$0xff]
      %v992 = vld [vmem:[#allocation2 + $0x18] sm:$0xff]
      %v993 = vld [vmem:[#allocation2 + $0x20] sm:$0xff]
      %v994 = vld [vmem:[#allocation2 + $0x28] sm:$0xff]
      %v995 = vld [vmem:[#allocation2 + $0x30] sm:$0xff]
      %v996 = vld [vmem:[#allocation2 + $0x38] sm:$0xff]
      %v997 = vld [vmem:[#allocation2 + $0x40] sm:$0xff]
      %v998 = vld [vmem:[#allocation2 + $0x48] sm:$0xff]
      %v999 = vld [vmem:[#allocation2 + $0x50] sm:$0xff]
      %v1000 = vld [vmem:[#allocation2 + $0x58] sm:$0xff]
      %v1001 = vld [vmem:[#allocation2 + $0x60] sm:$0xff]
      %v1002 = vld [vmem:[#allocation2 + $0x68] sm:$0xff]
      %v1003 = vld [vmem:[#allocation2 + $0x70] sm:$0xff]
      %v1004 = vld [vmem:[#allocation2 + $0x78] sm:$0xff]
      %v1005 = vld [vmem:[#allocation2 + $0x80] sm:$0xff]
      %v1006 = vld [vmem:[#allocation2 + $0x88] sm:$0xff]
      %v1007 = vld [vmem:[#allocation2 + $0x90] sm:$0xff]
      %v1008 = vld [vmem:[#allocation2 + $0x98] sm:$0xff]
      %v1009 = vld [vmem:[#allocation2 + $0xa0] sm:$0xff]
      %v1010 = vld [vmem:[#allocation2 + $0xa8] sm:$0xff]
      %v1011 = vld [vmem:[#allocation2 + $0xb0] sm:$0xff]
      %v1012 = vld [vmem:[#allocation2 + $0xb8] sm:$0xff]
      %v1013 = vld [vmem:[#allocation2 + $0xc0] sm:$0xff]
      %v1014 = vld [vmem:[#allocation2 + $0xc8] sm:$0xff]
      %v1015 = vld [vmem:[#allocation2 + $0xd0] sm:$0xff]
      %v1016 = vld [vmem:[#allocation2 + $0xd8] sm:$0xff]
      %v1017 = vld [vmem:[#allocation2 + $0xe0] sm:$0xff]
      %v1018 = vld [vmem:[#allocation2 + $0xe8] sm:$0xff]
      %v1019 = vld [vmem:[#allocation2 + $0xf0] sm:$0xff]
      %v1020 = vld [vmem:[#allocation2 + $0xf8] sm:$0xff]
      %s1021 = scalar_lea.vmem %s1, 2
      %v1022 = vld [vmem:[%s1021] sm:$0x3]
      %v1023 = vunpack.c.l.b16 %v618
      %v1024 = vunpack.c.l.b16 %v628
      %v1025 = vunpack.c.l.b16 %v642
      %v1026 = vunpack.c.l.b16 %v652
      %v1027 = vunpack.c.l.b16 %v666
      %v1028 = vunpack.c.l.b16 %v676
      %v1029 = vunpack.c.l.b16 %v690
      %v1030 = vunpack.c.l.b16 %v700
      %v1031 = vunpack.c.l.b16 %v714
      %v1032 = vunpack.c.l.b16 %v724
      %v1033 = vunpack.c.l.b16 %v738
      %v1034 = vunpack.c.l.b16 %v748
      %v1035 = vunpack.c.l.b16 %v762
      %v1036 = vunpack.c.l.b16 %v772
      %v1037 = vunpack.c.l.b16 %v786
      %v1038 = vunpack.c.l.b16 %v796
      %v1039 = vunpack.c.l.b16 %v810
      %v1040 = vunpack.c.l.b16 %v820
      %v1041 = vunpack.c.l.b16 %v834
      %v1042 = vunpack.c.l.b16 %v844
      %v1043 = vunpack.c.l.b16 %v858
      %v1044 = vunpack.c.l.b16 %v868
      %v1045 = vunpack.c.l.b16 %v882
      %v1046 = vunpack.c.l.b16 %v892
      %v1047 = vunpack.c.l.b16 %v906
      %v1048 = vunpack.c.l.b16 %v916
      %v1049 = vunpack.c.l.b16 %v930
      %v1050 = vunpack.c.l.b16 %v940
      %v1051 = vunpack.c.l.b16 %v954
      %v1052 = vunpack.c.l.b16 %v964
      %v1053 = vunpack.c.l.b16 %v978
      %v1054 = vunpack.c.l.b16 %v988
      %v1055 = vpack.c.b16 %v1024, %v1023
      %v1056 = vpack.c.b16 %v1026, %v1025
      %v1057 = vpack.c.b16 %v1028, %v1027
      %v1058 = vpack.c.b16 %v1030, %v1029
      %v1059 = vpack.c.b16 %v1032, %v1031
      %v1060 = vpack.c.b16 %v1034, %v1033
      %v1061 = vpack.c.b16 %v1036, %v1035
      %v1062 = vpack.c.b16 %v1038, %v1037
      %v1063 = vpack.c.b16 %v1040, %v1039
      %v1064 = vpack.c.b16 %v1042, %v1041
      %v1065 = vpack.c.b16 %v1044, %v1043
      %v1066 = vpack.c.b16 %v1046, %v1045
      %v1067 = vpack.c.b16 %v1048, %v1047
      %v1068 = vpack.c.b16 %v1050, %v1049
      %v1069 = vpack.c.b16 %v1052, %v1051
      %v1070 = vpack.c.b16 %v1054, %v1053
      %v1072 = vsel %vm345, %v1055, 0
      %v1075 = vsel %vm345, %v1056, 0
      %v1078 = vsel %vm345, %v1057, 0
      %v1081 = vsel %vm345, %v1058, 0
      %v1084 = vsel %vm345, %v1059, 0
      %v1087 = vsel %vm345, %v1060, 0
      %v1090 = vsel %vm345, %v1061, 0
      %v1093 = vsel %vm345, %v1062, 0
      %v1096 = vsel %vm345, %v1063, 0
      %v1099 = vsel %vm345, %v1064, 0
      %v1102 = vsel %vm345, %v1065, 0
      %v1105 = vsel %vm345, %v1066, 0
      %v1108 = vsel %vm345, %v1067, 0
      %v1111 = vsel %vm345, %v1068, 0
      %v1114 = vsel %vm345, %v1069, 0
      %v1117 = vsel %vm345, %v1070, 0
      %v1120 = vand.u32 %v1022, %v397
      %1122 = vmatpush.bf16.msra.mxu0 0
      %1123 = vmatpush.bf16.msra.mxu0 0
      %1124 = vmatpush.bf16.msra.mxu0 0
      %1125 = vmatpush.bf16.msra.mxu0 0
      %1126 = vmatpush.bf16.msra.mxu0 0
      %1127 = vmatpush.bf16.msra.mxu0 0
      %1128 = vmatpush.bf16.msra.mxu0 0
      %1129 = vmatpush.bf16.msra.mxu0 %v1120
      %1130 = vmatmul.bf16.gmra.mxu0 %v1072
      %v1131 = vpop.f32.mrf.mxu0
      %v1132 = vadd.f32 0.0, %v1131
      %v1133 = vpop.f32.mrf.mxu0
      %v1134 = vadd.f32 0.0, %v1133
      %1135 = vmatmul.bf16.gmra.mxu0 %v1075
      %v1136 = vpop.f32.mrf.mxu0
      %v1137 = vadd.f32 0.0, %v1136
      %v1138 = vpop.f32.mrf.mxu0
      %v1139 = vadd.f32 0.0, %v1138
      %1140 = vmatmul.bf16.gmra.mxu0 %v1078
      %v1141 = vpop.f32.mrf.mxu0
      %v1142 = vadd.f32 0.0, %v1141
      %v1143 = vpop.f32.mrf.mxu0
      %v1144 = vadd.f32 0.0, %v1143
      %1145 = vmatmul.bf16.gmra.mxu0 %v1081
      %v1146 = vpop.f32.mrf.mxu0
      %v1147 = vadd.f32 0.0, %v1146
      %v1148 = vpop.f32.mrf.mxu0
      %v1149 = vadd.f32 0.0, %v1148
      %1150 = vmatmul.bf16.gmra.mxu0 %v1084
      %v1151 = vpop.f32.mrf.mxu0
      %v1152 = vadd.f32 0.0, %v1151
      %v1153 = vpop.f32.mrf.mxu0
      %v1154 = vadd.f32 0.0, %v1153
      %1155 = vmatmul.bf16.gmra.mxu0 %v1087
      %v1156 = vpop.f32.mrf.mxu0
      %v1157 = vadd.f32 0.0, %v1156
      %v1158 = vpop.f32.mrf.mxu0
      %v1159 = vadd.f32 0.0, %v1158
      %1160 = vmatmul.bf16.gmra.mxu0 %v1090
      %v1161 = vpop.f32.mrf.mxu0
      %v1162 = vadd.f32 0.0, %v1161
      %v1163 = vpop.f32.mrf.mxu0
      %v1164 = vadd.f32 0.0, %v1163
      %1165 = vmatmul.bf16.gmra.mxu0 %v1093
      %v1166 = vpop.f32.mrf.mxu0
      %v1167 = vadd.f32 0.0, %v1166
      %v1168 = vpop.f32.mrf.mxu0
      %v1169 = vadd.f32 0.0, %v1168
      %1170 = vmatmul.bf16.gmra.mxu0 %v1096
      %v1171 = vpop.f32.mrf.mxu0
      %v1172 = vadd.f32 0.0, %v1171
      %v1173 = vpop.f32.mrf.mxu0
      %v1174 = vadd.f32 0.0, %v1173
      %1175 = vmatmul.bf16.gmra.mxu0 %v1099
      %v1176 = vpop.f32.mrf.mxu0
      %v1177 = vadd.f32 0.0, %v1176
      %v1178 = vpop.f32.mrf.mxu0
      %v1179 = vadd.f32 0.0, %v1178
      %1180 = vmatmul.bf16.gmra.mxu0 %v1102
      %v1181 = vpop.f32.mrf.mxu0
      %v1182 = vadd.f32 0.0, %v1181
      %v1183 = vpop.f32.mrf.mxu0
      %v1184 = vadd.f32 0.0, %v1183
      %1185 = vmatmul.bf16.gmra.mxu0 %v1105
      %v1186 = vpop.f32.mrf.mxu0
      %v1187 = vadd.f32 0.0, %v1186
      %v1188 = vpop.f32.mrf.mxu0
      %v1189 = vadd.f32 0.0, %v1188
      %1190 = vmatmul.bf16.gmra.mxu0 %v1108
      %v1191 = vpop.f32.mrf.mxu0
      %v1192 = vadd.f32 0.0, %v1191
      %v1193 = vpop.f32.mrf.mxu0
      %v1194 = vadd.f32 0.0, %v1193
      %1195 = vmatmul.bf16.gmra.mxu0 %v1111
      %v1196 = vpop.f32.mrf.mxu0
      %v1197 = vadd.f32 0.0, %v1196
      %v1198 = vpop.f32.mrf.mxu0
      %v1199 = vadd.f32 0.0, %v1198
      %1200 = vmatmul.bf16.gmra.mxu0 %v1114
      %v1201 = vpop.f32.mrf.mxu0
      %v1202 = vadd.f32 0.0, %v1201
      %v1203 = vpop.f32.mrf.mxu0
      %v1204 = vadd.f32 0.0, %v1203
      %1205 = vmatmul.bf16.gmra.mxu0 %v1117
      %v1206 = vpop.f32.mrf.mxu0
      %v1207 = vadd.f32 0.0, %v1206
      %v1208 = vpop.f32.mrf.mxu0
      %v1209 = vadd.f32 0.0, %v1208
      %1210 = vdwg.mxu0
      %v1211 = vadd.f32 %v989, %v1132
      %v1212 = vadd.f32 %v990, %v1134
      %v1213 = vadd.f32 %v991, %v1137
      %v1214 = vadd.f32 %v992, %v1139
      %v1215 = vadd.f32 %v993, %v1142
      %v1216 = vadd.f32 %v994, %v1144
      %v1217 = vadd.f32 %v995, %v1147
      %v1218 = vadd.f32 %v996, %v1149
      %v1219 = vadd.f32 %v997, %v1152
      %v1220 = vadd.f32 %v998, %v1154
      %v1221 = vadd.f32 %v999, %v1157
      %v1222 = vadd.f32 %v1000, %v1159
      %v1223 = vadd.f32 %v1001, %v1162
      %v1224 = vadd.f32 %v1002, %v1164
      %v1225 = vadd.f32 %v1003, %v1167
      %v1226 = vadd.f32 %v1004, %v1169
      %v1227 = vadd.f32 %v1005, %v1172
      %v1228 = vadd.f32 %v1006, %v1174
      %v1229 = vadd.f32 %v1007, %v1177
      %v1230 = vadd.f32 %v1008, %v1179
      %v1231 = vadd.f32 %v1009, %v1182
      %v1232 = vadd.f32 %v1010, %v1184
      %v1233 = vadd.f32 %v1011, %v1187
      %v1234 = vadd.f32 %v1012, %v1189
      %v1235 = vadd.f32 %v1013, %v1192
      %v1236 = vadd.f32 %v1014, %v1194
      %v1237 = vadd.f32 %v1015, %v1197
      %v1238 = vadd.f32 %v1016, %v1199
      %v1239 = vadd.f32 %v1017, %v1202
      %v1240 = vadd.f32 %v1018, %v1204
      %v1241 = vadd.f32 %v1019, %v1207
      %v1242 = vadd.f32 %v1020, %v1209
      %1243 = vst [vmem:[#allocation2] sm:$0xff] %v1211
      %1244 = vst [vmem:[#allocation2 + $0x8] sm:$0xff] %v1212
      %1245 = vst [vmem:[#allocation2 + $0x10] sm:$0xff] %v1213
      %1246 = vst [vmem:[#allocation2 + $0x18] sm:$0xff] %v1214
      %1247 = vst [vmem:[#allocation2 + $0x20] sm:$0xff] %v1215
      %1248 = vst [vmem:[#allocation2 + $0x28] sm:$0xff] %v1216
      %1249 = vst [vmem:[#allocation2 + $0x30] sm:$0xff] %v1217
      %1250 = vst [vmem:[#allocation2 + $0x38] sm:$0xff] %v1218
      %1251 = vst [vmem:[#allocation2 + $0x40] sm:$0xff] %v1219
      %1252 = vst [vmem:[#allocation2 + $0x48] sm:$0xff] %v1220
      %1253 = vst [vmem:[#allocation2 + $0x50] sm:$0xff] %v1221
      %1254 = vst [vmem:[#allocation2 + $0x58] sm:$0xff] %v1222
      %1255 = vst [vmem:[#allocation2 + $0x60] sm:$0xff] %v1223
      %1256 = vst [vmem:[#allocation2 + $0x68] sm:$0xff] %v1224
      %1257 = vst [vmem:[#allocation2 + $0x70] sm:$0xff] %v1225
      %1258 = vst [vmem:[#allocation2 + $0x78] sm:$0xff] %v1226
      %1259 = vst [vmem:[#allocation2 + $0x80] sm:$0xff] %v1227
      %1260 = vst [vmem:[#allocation2 + $0x88] sm:$0xff] %v1228
      %1261 = vst [vmem:[#allocation2 + $0x90] sm:$0xff] %v1229
      %1262 = vst [vmem:[#allocation2 + $0x98] sm:$0xff] %v1230
      %1263 = vst [vmem:[#allocation2 + $0xa0] sm:$0xff] %v1231
      %1264 = vst [vmem:[#allocation2 + $0xa8] sm:$0xff] %v1232
      %1265 = vst [vmem:[#allocation2 + $0xb0] sm:$0xff] %v1233
      %1266 = vst [vmem:[#allocation2 + $0xb8] sm:$0xff] %v1234
      %1267 = vst [vmem:[#allocation2 + $0xc0] sm:$0xff] %v1235
      %1268 = vst [vmem:[#allocation2 + $0xc8] sm:$0xff] %v1236
      %1269 = vst [vmem:[#allocation2 + $0xd0] sm:$0xff] %v1237
      %1270 = vst [vmem:[#allocation2 + $0xd8] sm:$0xff] %v1238
      %1271 = vst [vmem:[#allocation2 + $0xe0] sm:$0xff] %v1239
      %1272 = vst [vmem:[#allocation2 + $0xe8] sm:$0xff] %v1240
      %1273 = vst [vmem:[#allocation2 + $0xf0] sm:$0xff] %v1241
      %1274 = vst [vmem:[#allocation2 + $0xf8] sm:$0xff] %v1242
      %v1275 = vld [vmem:[%s163] sm:$0xe]
      %v1276 = vld [vmem:[%s163 + $0x4] sm:$0xf]
      %v1277 = vld [vmem:[%s163 + $0x8] sm:$0x1]
      %v1278 = vld [vmem:[%s163 + $0xc] sm:$0xe]
      %v1279 = vld [vmem:[%s163 + $0x10] sm:$0xf]
      %v1280 = vld [vmem:[%s163 + $0x14] sm:$0x1]
      %v1281 = vld [vmem:[%s163 + $0x18] sm:$0xe]
      %v1282 = vld [vmem:[%s163 + $0x1c] sm:$0xf]
      %v1283 = vld [vmem:[%s163 + $0x20] sm:$0x1]
      %v1284 = vld [vmem:[%s163 + $0x24] sm:$0xe]
      %v1285 = vld [vmem:[%s163 + $0x28] sm:$0xf]
      %v1286 = vld [vmem:[%s163 + $0x2c] sm:$0x1]
      %v1287 = vld [vmem:[%s163 + $0x30] sm:$0xe]
      %v1288 = vld [vmem:[%s163 + $0x34] sm:$0xf]
      %v1289 = vld [vmem:[%s163 + $0x38] sm:$0x1]
      %v1290 = vld [vmem:[%s163 + $0x3c] sm:$0xe]
      %v1291 = vld [vmem:[%s163 + $0x40] sm:$0xf]
      %v1292 = vld [vmem:[%s163 + $0x44] sm:$0x1]
      %v1293 = vld [vmem:[%s163 + $0x48] sm:$0xe]
      %v1294 = vld [vmem:[%s163 + $0x4c] sm:$0xf]
      %v1295 = vld [vmem:[%s163 + $0x50] sm:$0x1]
      %v1296 = vld [vmem:[%s163 + $0x54] sm:$0xe]
      %v1297 = vld [vmem:[%s163 + $0x58] sm:$0xf]
      %v1298 = vld [vmem:[%s163 + $0x5c] sm:$0x1]
      %v1299 = vld [vmem:[%s163 + $0x60] sm:$0xe]
      %v1300 = vld [vmem:[%s163 + $0x64] sm:$0xf]
      %v1301 = vld [vmem:[%s163 + $0x68] sm:$0x1]
      %v1302 = vld [vmem:[%s163 + $0x6c] sm:$0xe]
      %v1303 = vld [vmem:[%s163 + $0x70] sm:$0xf]
      %v1304 = vld [vmem:[%s163 + $0x74] sm:$0x1]
      %v1305 = vld [vmem:[%s163 + $0x78] sm:$0xe]
      %v1306 = vld [vmem:[%s163 + $0x7c] sm:$0xf]
      %v1307 = vld [vmem:[%s163 + $0x80] sm:$0x1]
      %v1308 = vld [vmem:[%s163 + $0x84] sm:$0xe]
      %v1309 = vld [vmem:[%s163 + $0x88] sm:$0xf]
      %v1310 = vld [vmem:[%s163 + $0x8c] sm:$0x1]
      %v1311 = vld [vmem:[%s163 + $0x90] sm:$0xe]
      %v1312 = vld [vmem:[%s163 + $0x94] sm:$0xf]
      %v1313 = vld [vmem:[%s163 + $0x98] sm:$0x1]
      %v1314 = vld [vmem:[%s163 + $0x9c] sm:$0xe]
      %v1315 = vld [vmem:[%s163 + $0xa0] sm:$0xf]
      %v1316 = vld [vmem:[%s163 + $0xa4] sm:$0x1]
      %v1317 = vld [vmem:[%s163 + $0xa8] sm:$0xe]
      %v1318 = vld [vmem:[%s163 + $0xac] sm:$0xf]
      %v1319 = vld [vmem:[%s163 + $0xb0] sm:$0x1]
      %v1320 = vld [vmem:[%s163 + $0xb4] sm:$0xe]
      %v1321 = vld [vmem:[%s163 + $0xb8] sm:$0xf]
      %v1322 = vld [vmem:[%s163 + $0xbc] sm:$0x1]
      %vm1371 = vcmask 1042432
      %vm1372 = vcmask 1046532
      %vm1373 = vmor %vm1371, %vm1372
      %v1374 = vrot.slane %v1275, 5
      %v1375 = vrot.slane %v1374, 4
      %v1376 = vrot.slane %v1276, 5
      %v1377 = vsel %vm1373, %v1375, %v1376
      %v1378 = vrot.slane %v1376, 4
      %v1379 = vrot.slane %v1277, 5
      %v1380 = vsel %vm1373, %v1378, %v1379
      %v1381 = vrot.slane %v1278, 5
      %v1382 = vrot.slane %v1381, 4
      %v1383 = vrot.slane %v1279, 5
      %v1384 = vsel %vm1373, %v1382, %v1383
      %v1385 = vrot.slane %v1383, 4
      %v1386 = vrot.slane %v1280, 5
      %v1387 = vsel %vm1373, %v1385, %v1386
      %v1388 = vrot.slane %v1281, 5
      %v1389 = vrot.slane %v1388, 4
      %v1390 = vrot.slane %v1282, 5
      %v1391 = vsel %vm1373, %v1389, %v1390
      %v1392 = vrot.slane %v1390, 4
      %v1393 = vrot.slane %v1283, 5
      %v1394 = vsel %vm1373, %v1392, %v1393
      %v1395 = vrot.slane %v1284, 5
      %v1396 = vrot.slane %v1395, 4
      %v1397 = vrot.slane %v1285, 5
      %v1398 = vsel %vm1373, %v1396, %v1397
      %v1399 = vrot.slane %v1397, 4
      %v1400 = vrot.slane %v1286, 5
      %v1401 = vsel %vm1373, %v1399, %v1400
      %v1402 = vrot.slane %v1287, 5
      %v1403 = vrot.slane %v1402, 4
      %v1404 = vrot.slane %v1288, 5
      %v1405 = vsel %vm1373, %v1403, %v1404
      %v1406 = vrot.slane %v1404, 4
      %v1407 = vrot.slane %v1289, 5
      %v1408 = vsel %vm1373, %v1406, %v1407
      %v1409 = vrot.slane %v1290, 5
      %v1410 = vrot.slane %v1409, 4
      %v1411 = vrot.slane %v1291, 5
      %v1412 = vsel %vm1373, %v1410, %v1411
      %v1413 = vrot.slane %v1411, 4
      %v1414 = vrot.slane %v1292, 5
      %v1415 = vsel %vm1373, %v1413, %v1414
      %v1416 = vrot.slane %v1293, 5
      %v1417 = vrot.slane %v1416, 4
      %v1418 = vrot.slane %v1294, 5
      %v1419 = vsel %vm1373, %v1417, %v1418
      %v1420 = vrot.slane %v1418, 4
      %v1421 = vrot.slane %v1295, 5
      %v1422 = vsel %vm1373, %v1420, %v1421
      %v1423 = vrot.slane %v1296, 5
      %v1424 = vrot.slane %v1423, 4
      %v1425 = vrot.slane %v1297, 5
      %v1426 = vsel %vm1373, %v1424, %v1425
      %v1427 = vrot.slane %v1425, 4
      %v1428 = vrot.slane %v1298, 5
      %v1429 = vsel %vm1373, %v1427, %v1428
      %v1430 = vrot.slane %v1299, 5
      %v1431 = vrot.slane %v1430, 4
      %v1432 = vrot.slane %v1300, 5
      %v1433 = vsel %vm1373, %v1431, %v1432
      %v1434 = vrot.slane %v1432, 4
      %v1435 = vrot.slane %v1301, 5
      %v1436 = vsel %vm1373, %v1434, %v1435
      %v1437 = vrot.slane %v1302, 5
      %v1438 = vrot.slane %v1437, 4
      %v1439 = vrot.slane %v1303, 5
      %v1440 = vsel %vm1373, %v1438, %v1439
      %v1441 = vrot.slane %v1439, 4
      %v1442 = vrot.slane %v1304, 5
      %v1443 = vsel %vm1373, %v1441, %v1442
      %v1444 = vrot.slane %v1305, 5
      %v1445 = vrot.slane %v1444, 4
      %v1446 = vrot.slane %v1306, 5
      %v1447 = vsel %vm1373, %v1445, %v1446
      %v1448 = vrot.slane %v1446, 4
      %v1449 = vrot.slane %v1307, 5
      %v1450 = vsel %vm1373, %v1448, %v1449
      %v1451 = vrot.slane %v1308, 5
      %v1452 = vrot.slane %v1451, 4
      %v1453 = vrot.slane %v1309, 5
      %v1454 = vsel %vm1373, %v1452, %v1453
      %v1455 = vrot.slane %v1453, 4
      %v1456 = vrot.slane %v1310, 5
      %v1457 = vsel %vm1373, %v1455, %v1456
      %v1458 = vrot.slane %v1311, 5
      %v1459 = vrot.slane %v1458, 4
      %v1460 = vrot.slane %v1312, 5
      %v1461 = vsel %vm1373, %v1459, %v1460
      %v1462 = vrot.slane %v1460, 4
      %v1463 = vrot.slane %v1313, 5
      %v1464 = vsel %vm1373, %v1462, %v1463
      %v1465 = vrot.slane %v1314, 5
      %v1466 = vrot.slane %v1465, 4
      %v1467 = vrot.slane %v1315, 5
      %v1468 = vsel %vm1373, %v1466, %v1467
      %v1469 = vrot.slane %v1467, 4
      %v1470 = vrot.slane %v1316, 5
      %v1471 = vsel %vm1373, %v1469, %v1470
      %v1472 = vrot.slane %v1317, 5
      %v1473 = vrot.slane %v1472, 4
      %v1474 = vrot.slane %v1318, 5
      %v1475 = vsel %vm1373, %v1473, %v1474
      %v1476 = vrot.slane %v1474, 4
      %v1477 = vrot.slane %v1319, 5
      %v1478 = vsel %vm1373, %v1476, %v1477
      %v1479 = vrot.slane %v1320, 5
      %v1480 = vrot.slane %v1479, 4
      %v1481 = vrot.slane %v1321, 5
      %v1482 = vsel %vm1373, %v1480, %v1481
      %v1483 = vrot.slane %v1481, 4
      %v1484 = vrot.slane %v1322, 5
      %v1485 = vsel %vm1373, %v1483, %v1484
      %v1486 = vld [vmem:[#allocation2] sm:$0xff]
      %v1487 = vld [vmem:[#allocation2 + $0x8] sm:$0xff]
      %v1488 = vld [vmem:[#allocation2 + $0x10] sm:$0xff]
      %v1489 = vld [vmem:[#allocation2 + $0x18] sm:$0xff]
      %v1490 = vld [vmem:[#allocation2 + $0x20] sm:$0xff]
      %v1491 = vld [vmem:[#allocation2 + $0x28] sm:$0xff]
      %v1492 = vld [vmem:[#allocation2 + $0x30] sm:$0xff]
      %v1493 = vld [vmem:[#allocation2 + $0x38] sm:$0xff]
      %v1494 = vld [vmem:[#allocation2 + $0x40] sm:$0xff]
      %v1495 = vld [vmem:[#allocation2 + $0x48] sm:$0xff]
      %v1496 = vld [vmem:[#allocation2 + $0x50] sm:$0xff]
      %v1497 = vld [vmem:[#allocation2 + $0x58] sm:$0xff]
      %v1498 = vld [vmem:[#allocation2 + $0x60] sm:$0xff]
      %v1499 = vld [vmem:[#allocation2 + $0x68] sm:$0xff]
      %v1500 = vld [vmem:[#allocation2 + $0x70] sm:$0xff]
      %v1501 = vld [vmem:[#allocation2 + $0x78] sm:$0xff]
      %v1502 = vld [vmem:[#allocation2 + $0x80] sm:$0xff]
      %v1503 = vld [vmem:[#allocation2 + $0x88] sm:$0xff]
      %v1504 = vld [vmem:[#allocation2 + $0x90] sm:$0xff]
      %v1505 = vld [vmem:[#allocation2 + $0x98] sm:$0xff]
      %v1506 = vld [vmem:[#allocation2 + $0xa0] sm:$0xff]
      %v1507 = vld [vmem:[#allocation2 + $0xa8] sm:$0xff]
      %v1508 = vld [vmem:[#allocation2 + $0xb0] sm:$0xff]
      %v1509 = vld [vmem:[#allocation2 + $0xb8] sm:$0xff]
      %v1510 = vld [vmem:[#allocation2 + $0xc0] sm:$0xff]
      %v1511 = vld [vmem:[#allocation2 + $0xc8] sm:$0xff]
      %v1512 = vld [vmem:[#allocation2 + $0xd0] sm:$0xff]
      %v1513 = vld [vmem:[#allocation2 + $0xd8] sm:$0xff]
      %v1514 = vld [vmem:[#allocation2 + $0xe0] sm:$0xff]
      %v1515 = vld [vmem:[#allocation2 + $0xe8] sm:$0xff]
      %v1516 = vld [vmem:[#allocation2 + $0xf0] sm:$0xff]
      %v1517 = vld [vmem:[#allocation2 + $0xf8] sm:$0xff]
      %s1518 = scalar_lea.vmem %s1, 4
      %v1519 = vld [vmem:[%s1518] sm:$0x3]
      %v1520 = vunpack.c.l.b16 %v1377
      %v1521 = vunpack.c.l.b16 %v1380
      %v1522 = vunpack.c.l.b16 %v1384
      %v1523 = vunpack.c.l.b16 %v1387
      %v1524 = vunpack.c.l.b16 %v1391
      %v1525 = vunpack.c.l.b16 %v1394
      %v1526 = vunpack.c.l.b16 %v1398
      %v1527 = vunpack.c.l.b16 %v1401
      %v1528 = vunpack.c.l.b16 %v1405
      %v1529 = vunpack.c.l.b16 %v1408
      %v1530 = vunpack.c.l.b16 %v1412
      %v1531 = vunpack.c.l.b16 %v1415
      %v1532 = vunpack.c.l.b16 %v1419
      %v1533 = vunpack.c.l.b16 %v1422
      %v1534 = vunpack.c.l.b16 %v1426
      %v1535 = vunpack.c.l.b16 %v1429
      %v1536 = vunpack.c.l.b16 %v1433
      %v1537 = vunpack.c.l.b16 %v1436
      %v1538 = vunpack.c.l.b16 %v1440
      %v1539 = vunpack.c.l.b16 %v1443
      %v1540 = vunpack.c.l.b16 %v1447
      %v1541 = vunpack.c.l.b16 %v1450
      %v1542 = vunpack.c.l.b16 %v1454
      %v1543 = vunpack.c.l.b16 %v1457
      %v1544 = vunpack.c.l.b16 %v1461
      %v1545 = vunpack.c.l.b16 %v1464
      %v1546 = vunpack.c.l.b16 %v1468
      %v1547 = vunpack.c.l.b16 %v1471
      %v1548 = vunpack.c.l.b16 %v1475
      %v1549 = vunpack.c.l.b16 %v1478
      %v1550 = vunpack.c.l.b16 %v1482
      %v1551 = vunpack.c.l.b16 %v1485
      %v1552 = vpack.c.b16 %v1521, %v1520
      %v1553 = vpack.c.b16 %v1523, %v1522
      %v1554 = vpack.c.b16 %v1525, %v1524
      %v1555 = vpack.c.b16 %v1527, %v1526
      %v1556 = vpack.c.b16 %v1529, %v1528
      %v1557 = vpack.c.b16 %v1531, %v1530
      %v1558 = vpack.c.b16 %v1533, %v1532
      %v1559 = vpack.c.b16 %v1535, %v1534
      %v1560 = vpack.c.b16 %v1537, %v1536
      %v1561 = vpack.c.b16 %v1539, %v1538
      %v1562 = vpack.c.b16 %v1541, %v1540
      %v1563 = vpack.c.b16 %v1543, %v1542
      %v1564 = vpack.c.b16 %v1545, %v1544
      %v1565 = vpack.c.b16 %v1547, %v1546
      %v1566 = vpack.c.b16 %v1549, %v1548
      %v1567 = vpack.c.b16 %v1551, %v1550
      %v1569 = vsel %vm345, %v1552, 0
      %v1572 = vsel %vm345, %v1553, 0
      %v1575 = vsel %vm345, %v1554, 0
      %v1578 = vsel %vm345, %v1555, 0
      %v1581 = vsel %vm345, %v1556, 0
      %v1584 = vsel %vm345, %v1557, 0
      %v1587 = vsel %vm345, %v1558, 0
      %v1590 = vsel %vm345, %v1559, 0
      %v1593 = vsel %vm345, %v1560, 0
      %v1596 = vsel %vm345, %v1561, 0
      %v1599 = vsel %vm345, %v1562, 0
      %v1602 = vsel %vm345, %v1563, 0
      %v1605 = vsel %vm345, %v1564, 0
      %v1608 = vsel %vm345, %v1565, 0
      %v1611 = vsel %vm345, %v1566, 0
      %v1614 = vsel %vm345, %v1567, 0
      %v1617 = vand.u32 %v1519, %v397
      %1619 = vmatpush.bf16.msra.mxu0 0
      %1620 = vmatpush.bf16.msra.mxu0 0
      %1621 = vmatpush.bf16.msra.mxu0 0
      %1622 = vmatpush.bf16.msra.mxu0 0
      %1623 = vmatpush.bf16.msra.mxu0 0
      %1624 = vmatpush.bf16.msra.mxu0 0
      %1625 = vmatpush.bf16.msra.mxu0 0
      %1626 = vmatpush.bf16.msra.mxu0 %v1617
      %1627 = vmatmul.bf16.gmra.mxu0 %v1569
      %v1628 = vpop.f32.mrf.mxu0
      %v1629 = vadd.f32 0.0, %v1628
      %v1630 = vpop.f32.mrf.mxu0
      %v1631 = vadd.f32 0.0, %v1630
      %1632 = vmatmul.bf16.gmra.mxu0 %v1572
      %v1633 = vpop.f32.mrf.mxu0
      %v1634 = vadd.f32 0.0, %v1633
      %v1635 = vpop.f32.mrf.mxu0
      %v1636 = vadd.f32 0.0, %v1635
      %1637 = vmatmul.bf16.gmra.mxu0 %v1575
      %v1638 = vpop.f32.mrf.mxu0
      %v1639 = vadd.f32 0.0, %v1638
      %v1640 = vpop.f32.mrf.mxu0
      %v1641 = vadd.f32 0.0, %v1640
      %1642 = vmatmul.bf16.gmra.mxu0 %v1578
      %v1643 = vpop.f32.mrf.mxu0
      %v1644 = vadd.f32 0.0, %v1643
      %v1645 = vpop.f32.mrf.mxu0
      %v1646 = vadd.f32 0.0, %v1645
      %1647 = vmatmul.bf16.gmra.mxu0 %v1581
      %v1648 = vpop.f32.mrf.mxu0
      %v1649 = vadd.f32 0.0, %v1648
      %v1650 = vpop.f32.mrf.mxu0
      %v1651 = vadd.f32 0.0, %v1650
      %1652 = vmatmul.bf16.gmra.mxu0 %v1584
      %v1653 = vpop.f32.mrf.mxu0
      %v1654 = vadd.f32 0.0, %v1653
      %v1655 = vpop.f32.mrf.mxu0
      %v1656 = vadd.f32 0.0, %v1655
      %1657 = vmatmul.bf16.gmra.mxu0 %v1587
      %v1658 = vpop.f32.mrf.mxu0
      %v1659 = vadd.f32 0.0, %v1658
      %v1660 = vpop.f32.mrf.mxu0
      %v1661 = vadd.f32 0.0, %v1660
      %1662 = vmatmul.bf16.gmra.mxu0 %v1590
      %v1663 = vpop.f32.mrf.mxu0
      %v1664 = vadd.f32 0.0, %v1663
      %v1665 = vpop.f32.mrf.mxu0
      %v1666 = vadd.f32 0.0, %v1665
      %1667 = vmatmul.bf16.gmra.mxu0 %v1593
      %v1668 = vpop.f32.mrf.mxu0
      %v1669 = vadd.f32 0.0, %v1668
      %v1670 = vpop.f32.mrf.mxu0
      %v1671 = vadd.f32 0.0, %v1670
      %1672 = vmatmul.bf16.gmra.mxu0 %v1596
      %v1673 = vpop.f32.mrf.mxu0
      %v1674 = vadd.f32 0.0, %v1673
      %v1675 = vpop.f32.mrf.mxu0
      %v1676 = vadd.f32 0.0, %v1675
      %1677 = vmatmul.bf16.gmra.mxu0 %v1599
      %v1678 = vpop.f32.mrf.mxu0
      %v1679 = vadd.f32 0.0, %v1678
      %v1680 = vpop.f32.mrf.mxu0
      %v1681 = vadd.f32 0.0, %v1680
      %1682 = vmatmul.bf16.gmra.mxu0 %v1602
      %v1683 = vpop.f32.mrf.mxu0
      %v1684 = vadd.f32 0.0, %v1683
      %v1685 = vpop.f32.mrf.mxu0
      %v1686 = vadd.f32 0.0, %v1685
      %1687 = vmatmul.bf16.gmra.mxu0 %v1605
      %v1688 = vpop.f32.mrf.mxu0
      %v1689 = vadd.f32 0.0, %v1688
      %v1690 = vpop.f32.mrf.mxu0
      %v1691 = vadd.f32 0.0, %v1690
      %1692 = vmatmul.bf16.gmra.mxu0 %v1608
      %v1693 = vpop.f32.mrf.mxu0
      %v1694 = vadd.f32 0.0, %v1693
      %v1695 = vpop.f32.mrf.mxu0
      %v1696 = vadd.f32 0.0, %v1695
      %1697 = vmatmul.bf16.gmra.mxu0 %v1611
      %v1698 = vpop.f32.mrf.mxu0
      %v1699 = vadd.f32 0.0, %v1698
      %v1700 = vpop.f32.mrf.mxu0
      %v1701 = vadd.f32 0.0, %v1700
      %1702 = vmatmul.bf16.gmra.mxu0 %v1614
      %v1703 = vpop.f32.mrf.mxu0
      %v1704 = vadd.f32 0.0, %v1703
      %v1705 = vpop.f32.mrf.mxu0
      %v1706 = vadd.f32 0.0, %v1705
      %1707 = vdwg.mxu0
      %v1708 = vadd.f32 %v1486, %v1629
      %v1709 = vadd.f32 %v1487, %v1631
      %v1710 = vadd.f32 %v1488, %v1634
      %v1711 = vadd.f32 %v1489, %v1636
      %v1712 = vadd.f32 %v1490, %v1639
      %v1713 = vadd.f32 %v1491, %v1641
      %v1714 = vadd.f32 %v1492, %v1644
      %v1715 = vadd.f32 %v1493, %v1646
      %v1716 = vadd.f32 %v1494, %v1649
      %v1717 = vadd.f32 %v1495, %v1651
      %v1718 = vadd.f32 %v1496, %v1654
      %v1719 = vadd.f32 %v1497, %v1656
      %v1720 = vadd.f32 %v1498, %v1659
      %v1721 = vadd.f32 %v1499, %v1661
      %v1722 = vadd.f32 %v1500, %v1664
      %v1723 = vadd.f32 %v1501, %v1666
      %v1724 = vadd.f32 %v1502, %v1669
      %v1725 = vadd.f32 %v1503, %v1671
      %v1726 = vadd.f32 %v1504, %v1674
      %v1727 = vadd.f32 %v1505, %v1676
      %v1728 = vadd.f32 %v1506, %v1679
      %v1729 = vadd.f32 %v1507, %v1681
      %v1730 = vadd.f32 %v1508, %v1684
      %v1731 = vadd.f32 %v1509, %v1686
      %v1732 = vadd.f32 %v1510, %v1689
      %v1733 = vadd.f32 %v1511, %v1691
      %v1734 = vadd.f32 %v1512, %v1694
      %v1735 = vadd.f32 %v1513, %v1696
      %v1736 = vadd.f32 %v1514, %v1699
      %v1737 = vadd.f32 %v1515, %v1701
      %v1738 = vadd.f32 %v1516, %v1704
      %v1739 = vadd.f32 %v1517, %v1706
      %1740 = vst [vmem:[#allocation2] sm:$0xff] %v1708
      %1741 = vst [vmem:[#allocation2 + $0x8] sm:$0xff] %v1709
      %1742 = vst [vmem:[#allocation2 + $0x10] sm:$0xff] %v1710
      %1743 = vst [vmem:[#allocation2 + $0x18] sm:$0xff] %v1711
      %1744 = vst [vmem:[#allocation2 + $0x20] sm:$0xff] %v1712
      %1745 = vst [vmem:[#allocation2 + $0x28] sm:$0xff] %v1713
      %1746 = vst [vmem:[#allocation2 + $0x30] sm:$0xff] %v1714
      %1747 = vst [vmem:[#allocation2 + $0x38] sm:$0xff] %v1715
      %1748 = vst [vmem:[#allocation2 + $0x40] sm:$0xff] %v1716
      %1749 = vst [vmem:[#allocation2 + $0x48] sm:$0xff] %v1717
      %1750 = vst [vmem:[#allocation2 + $0x50] sm:$0xff] %v1718
      %1751 = vst [vmem:[#allocation2 + $0x58] sm:$0xff] %v1719
      %1752 = vst [vmem:[#allocation2 + $0x60] sm:$0xff] %v1720
      %1753 = vst [vmem:[#allocation2 + $0x68] sm:$0xff] %v1721
      %1754 = vst [vmem:[#allocation2 + $0x70] sm:$0xff] %v1722
      %1755 = vst [vmem:[#allocation2 + $0x78] sm:$0xff] %v1723
      %1756 = vst [vmem:[#allocation2 + $0x80] sm:$0xff] %v1724
      %1757 = vst [vmem:[#allocation2 + $0x88] sm:$0xff] %v1725
      %1758 = vst [vmem:[#allocation2 + $0x90] sm:$0xff] %v1726
      %1759 = vst [vmem:[#allocation2 + $0x98] sm:$0xff] %v1727
      %1760 = vst [vmem:[#allocation2 + $0xa0] sm:$0xff] %v1728
      %1761 = vst [vmem:[#allocation2 + $0xa8] sm:$0xff] %v1729
      %1762 = vst [vmem:[#allocation2 + $0xb0] sm:$0xff] %v1730
      %1763 = vst [vmem:[#allocation2 + $0xb8] sm:$0xff] %v1731
      %1764 = vst [vmem:[#allocation2 + $0xc0] sm:$0xff] %v1732
      %1765 = vst [vmem:[#allocation2 + $0xc8] sm:$0xff] %v1733
      %1766 = vst [vmem:[#allocation2 + $0xd0] sm:$0xff] %v1734
      %1767 = vst [vmem:[#allocation2 + $0xd8] sm:$0xff] %v1735
      %1768 = vst [vmem:[#allocation2 + $0xe0] sm:$0xff] %v1736
      %1769 = vst [vmem:[#allocation2 + $0xe8] sm:$0xff] %v1737
      %1770 = vst [vmem:[#allocation2 + $0xf0] sm:$0xff] %v1738
      %1771 = vst [vmem:[#allocation2 + $0xf8] sm:$0xff] %v1739
      %s1772 = scalar_lea.vmem %s163, 12
      %v1773 = vld [vmem:[%s1772] sm:$0xf]
      %v1774 = vld [vmem:[%s1772 + $0x4] sm:$0xf]
      %v1775 = vld [vmem:[%s1772 + $0xc] sm:$0xf]
      %v1776 = vld [vmem:[%s1772 + $0x10] sm:$0xf]
      %v1777 = vld [vmem:[%s1772 + $0x18] sm:$0xf]
      %v1778 = vld [vmem:[%s1772 + $0x1c] sm:$0xf]
      %v1779 = vld [vmem:[%s1772 + $0x24] sm:$0xf]
      %v1780 = vld [vmem:[%s1772 + $0x28] sm:$0xf]
      %v1781 = vld [vmem:[%s1772 + $0x30] sm:$0xf]
      %v1782 = vld [vmem:[%s1772 + $0x34] sm:$0xf]
      %v1783 = vld [vmem:[%s1772 + $0x3c] sm:$0xf]
      %v1784 = vld [vmem:[%s1772 + $0x40] sm:$0xf]
      %v1785 = vld [vmem:[%s1772 + $0x48] sm:$0xf]
      %v1786 = vld [vmem:[%s1772 + $0x4c] sm:$0xf]
      %v1787 = vld [vmem:[%s1772 + $0x54] sm:$0xf]
      %v1788 = vld [vmem:[%s1772 + $0x58] sm:$0xf]
      %v1789 = vld [vmem:[%s1772 + $0x60] sm:$0xf]
      %v1790 = vld [vmem:[%s1772 + $0x64] sm:$0xf]
      %v1791 = vld [vmem:[%s1772 + $0x6c] sm:$0xf]
      %v1792 = vld [vmem:[%s1772 + $0x70] sm:$0xf]
      %v1793 = vld [vmem:[%s1772 + $0x78] sm:$0xf]
      %v1794 = vld [vmem:[%s1772 + $0x7c] sm:$0xf]
      %v1795 = vld [vmem:[%s1772 + $0x84] sm:$0xf]
      %v1796 = vld [vmem:[%s1772 + $0x88] sm:$0xf]
      %v1797 = vld [vmem:[%s1772 + $0x90] sm:$0xf]
      %v1798 = vld [vmem:[%s1772 + $0x94] sm:$0xf]
      %v1799 = vld [vmem:[%s1772 + $0x9c] sm:$0xf]
      %v1800 = vld [vmem:[%s1772 + $0xa0] sm:$0xf]
      %v1801 = vld [vmem:[%s1772 + $0xa8] sm:$0xf]
      %v1802 = vld [vmem:[%s1772 + $0xac] sm:$0xf]
      %v1803 = vld [vmem:[%s1772 + $0xb4] sm:$0xf]
      %v1804 = vld [vmem:[%s1772 + $0xb8] sm:$0xf]
      %v1805 = vld [vmem:[#allocation2] sm:$0xff]
      %v1806 = vld [vmem:[#allocation2 + $0x8] sm:$0xff]
      %v1807 = vld [vmem:[#allocation2 + $0x10] sm:$0xff]
      %v1808 = vld [vmem:[#allocation2 + $0x18] sm:$0xff]
      %v1809 = vld [vmem:[#allocation2 + $0x20] sm:$0xff]
      %v1810 = vld [vmem:[#allocation2 + $0x28] sm:$0xff]
      %v1811 = vld [vmem:[#allocation2 + $0x30] sm:$0xff]
      %v1812 = vld [vmem:[#allocation2 + $0x38] sm:$0xff]
      %v1813 = vld [vmem:[#allocation2 + $0x40] sm:$0xff]
      %v1814 = vld [vmem:[#allocation2 + $0x48] sm:$0xff]
      %v1815 = vld [vmem:[#allocation2 + $0x50] sm:$0xff]
      %v1816 = vld [vmem:[#allocation2 + $0x58] sm:$0xff]
      %v1817 = vld [vmem:[#allocation2 + $0x60] sm:$0xff]
      %v1818 = vld [vmem:[#allocation2 + $0x68] sm:$0xff]
      %v1819 = vld [vmem:[#allocation2 + $0x70] sm:$0xff]
      %v1820 = vld [vmem:[#allocation2 + $0x78] sm:$0xff]
      %v1821 = vld [vmem:[#allocation2 + $0x80] sm:$0xff]
      %v1822 = vld [vmem:[#allocation2 + $0x88] sm:$0xff]
      %v1823 = vld [vmem:[#allocation2 + $0x90] sm:$0xff]
      %v1824 = vld [vmem:[#allocation2 + $0x98] sm:$0xff]
      %v1825 = vld [vmem:[#allocation2 + $0xa0] sm:$0xff]
      %v1826 = vld [vmem:[#allocation2 + $0xa8] sm:$0xff]
      %v1827 = vld [vmem:[#allocation2 + $0xb0] sm:$0xff]
      %v1828 = vld [vmem:[#allocation2 + $0xb8] sm:$0xff]
      %v1829 = vld [vmem:[#allocation2 + $0xc0] sm:$0xff]
      %v1830 = vld [vmem:[#allocation2 + $0xc8] sm:$0xff]
      %v1831 = vld [vmem:[#allocation2 + $0xd0] sm:$0xff]
      %v1832 = vld [vmem:[#allocation2 + $0xd8] sm:$0xff]
      %v1833 = vld [vmem:[#allocation2 + $0xe0] sm:$0xff]
      %v1834 = vld [vmem:[#allocation2 + $0xe8] sm:$0xff]
      %v1835 = vld [vmem:[#allocation2 + $0xf0] sm:$0xff]
      %v1836 = vld [vmem:[#allocation2 + $0xf8] sm:$0xff]
      %s1837 = scalar_lea.vmem %s1, 6
      %v1838 = vld [vmem:[%s1837] sm:$0x3]
      %v1871 = vunpack.c.l.b16 %v1773
      %v1872 = vunpack.c.l.b16 %v1774
      %v1873 = vunpack.c.l.b16 %v1775
      %v1874 = vunpack.c.l.b16 %v1776
      %v1875 = vunpack.c.l.b16 %v1777
      %v1876 = vunpack.c.l.b16 %v1778
      %v1877 = vunpack.c.l.b16 %v1779
      %v1878 = vunpack.c.l.b16 %v1780
      %v1879 = vunpack.c.l.b16 %v1781
      %v1880 = vunpack.c.l.b16 %v1782
      %v1881 = vunpack.c.l.b16 %v1783
      %v1882 = vunpack.c.l.b16 %v1784
      %v1883 = vunpack.c.l.b16 %v1785
      %v1884 = vunpack.c.l.b16 %v1786
      %v1885 = vunpack.c.l.b16 %v1787
      %v1886 = vunpack.c.l.b16 %v1788
      %v1887 = vunpack.c.l.b16 %v1789
      %v1888 = vunpack.c.l.b16 %v1790
      %v1889 = vunpack.c.l.b16 %v1791
      %v1890 = vunpack.c.l.b16 %v1792
      %v1891 = vunpack.c.l.b16 %v1793
      %v1892 = vunpack.c.l.b16 %v1794
      %v1893 = vunpack.c.l.b16 %v1795
      %v1894 = vunpack.c.l.b16 %v1796
      %v1895 = vunpack.c.l.b16 %v1797
      %v1896 = vunpack.c.l.b16 %v1798
      %v1897 = vunpack.c.l.b16 %v1799
      %v1898 = vunpack.c.l.b16 %v1800
      %v1899 = vunpack.c.l.b16 %v1801
      %v1900 = vunpack.c.l.b16 %v1802
      %v1901 = vunpack.c.l.b16 %v1803
      %v1902 = vunpack.c.l.b16 %v1804
      %v1903 = vpack.c.b16 %v1872, %v1871
      %v1904 = vpack.c.b16 %v1874, %v1873
      %v1905 = vpack.c.b16 %v1876, %v1875
      %v1906 = vpack.c.b16 %v1878, %v1877
      %v1907 = vpack.c.b16 %v1880, %v1879
      %v1908 = vpack.c.b16 %v1882, %v1881
      %v1909 = vpack.c.b16 %v1884, %v1883
      %v1910 = vpack.c.b16 %v1886, %v1885
      %v1911 = vpack.c.b16 %v1888, %v1887
      %v1912 = vpack.c.b16 %v1890, %v1889
      %v1913 = vpack.c.b16 %v1892, %v1891
      %v1914 = vpack.c.b16 %v1894, %v1893
      %v1915 = vpack.c.b16 %v1896, %v1895
      %v1916 = vpack.c.b16 %v1898, %v1897
      %v1917 = vpack.c.b16 %v1900, %v1899
      %v1918 = vpack.c.b16 %v1902, %v1901
      %v1920 = vsel %vm345, %v1903, 0
      %v1923 = vsel %vm345, %v1904, 0
      %v1926 = vsel %vm345, %v1905, 0
      %v1929 = vsel %vm345, %v1906, 0
      %v1932 = vsel %vm345, %v1907, 0
      %v1935 = vsel %vm345, %v1908, 0
      %v1938 = vsel %vm345, %v1909, 0
      %v1941 = vsel %vm345, %v1910, 0
      %v1944 = vsel %vm345, %v1911, 0
      %v1947 = vsel %vm345, %v1912, 0
      %v1950 = vsel %vm345, %v1913, 0
      %v1953 = vsel %vm345, %v1914, 0
      %v1956 = vsel %vm345, %v1915, 0
      %v1959 = vsel %vm345, %v1916, 0
      %v1962 = vsel %vm345, %v1917, 0
      %v1965 = vsel %vm345, %v1918, 0
      %v1968 = vand.u32 %v1838, %v397
      %1970 = vmatpush.bf16.msra.mxu0 0
      %1971 = vmatpush.bf16.msra.mxu0 0
      %1972 = vmatpush.bf16.msra.mxu0 0
      %1973 = vmatpush.bf16.msra.mxu0 0
      %1974 = vmatpush.bf16.msra.mxu0 0
      %1975 = vmatpush.bf16.msra.mxu0 0
      %1976 = vmatpush.bf16.msra.mxu0 0
      %1977 = vmatpush.bf16.msra.mxu0 %v1968
      %1978 = vmatmul.bf16.gmra.mxu0 %v1920
      %v1979 = vpop.f32.mrf.mxu0
      %v1980 = vadd.f32 0.0, %v1979
      %v1981 = vpop.f32.mrf.mxu0
      %v1982 = vadd.f32 0.0, %v1981
      %1983 = vmatmul.bf16.gmra.mxu0 %v1923
      %v1984 = vpop.f32.mrf.mxu0
      %v1985 = vadd.f32 0.0, %v1984
      %v1986 = vpop.f32.mrf.mxu0
      %v1987 = vadd.f32 0.0, %v1986
      %1988 = vmatmul.bf16.gmra.mxu0 %v1926
      %v1989 = vpop.f32.mrf.mxu0
      %v1990 = vadd.f32 0.0, %v1989
      %v1991 = vpop.f32.mrf.mxu0
      %v1992 = vadd.f32 0.0, %v1991
      %1993 = vmatmul.bf16.gmra.mxu0 %v1929
      %v1994 = vpop.f32.mrf.mxu0
      %v1995 = vadd.f32 0.0, %v1994
      %v1996 = vpop.f32.mrf.mxu0
      %v1997 = vadd.f32 0.0, %v1996
      %1998 = vmatmul.bf16.gmra.mxu0 %v1932
      %v1999 = vpop.f32.mrf.mxu0
      %v2000 = vadd.f32 0.0, %v1999
      %v2001 = vpop.f32.mrf.mxu0
      %v2002 = vadd.f32 0.0, %v2001
      %2003 = vmatmul.bf16.gmra.mxu0 %v1935
      %v2004 = vpop.f32.mrf.mxu0
      %v2005 = vadd.f32 0.0, %v2004
      %v2006 = vpop.f32.mrf.mxu0
      %v2007 = vadd.f32 0.0, %v2006
      %2008 = vmatmul.bf16.gmra.mxu0 %v1938
      %v2009 = vpop.f32.mrf.mxu0
      %v2010 = vadd.f32 0.0, %v2009
      %v2011 = vpop.f32.mrf.mxu0
      %v2012 = vadd.f32 0.0, %v2011
      %2013 = vmatmul.bf16.gmra.mxu0 %v1941
      %v2014 = vpop.f32.mrf.mxu0
      %v2015 = vadd.f32 0.0, %v2014
      %v2016 = vpop.f32.mrf.mxu0
      %v2017 = vadd.f32 0.0, %v2016
      %2018 = vmatmul.bf16.gmra.mxu0 %v1944
      %v2019 = vpop.f32.mrf.mxu0
      %v2020 = vadd.f32 0.0, %v2019
      %v2021 = vpop.f32.mrf.mxu0
      %v2022 = vadd.f32 0.0, %v2021
      %2023 = vmatmul.bf16.gmra.mxu0 %v1947
      %v2024 = vpop.f32.mrf.mxu0
      %v2025 = vadd.f32 0.0, %v2024
      %v2026 = vpop.f32.mrf.mxu0
      %v2027 = vadd.f32 0.0, %v2026
      %2028 = vmatmul.bf16.gmra.mxu0 %v1950
      %v2029 = vpop.f32.mrf.mxu0
      %v2030 = vadd.f32 0.0, %v2029
      %v2031 = vpop.f32.mrf.mxu0
      %v2032 = vadd.f32 0.0, %v2031
      %2033 = vmatmul.bf16.gmra.mxu0 %v1953
      %v2034 = vpop.f32.mrf.mxu0
      %v2035 = vadd.f32 0.0, %v2034
      %v2036 = vpop.f32.mrf.mxu0
      %v2037 = vadd.f32 0.0, %v2036
      %2038 = vmatmul.bf16.gmra.mxu0 %v1956
      %v2039 = vpop.f32.mrf.mxu0
      %v2040 = vadd.f32 0.0, %v2039
      %v2041 = vpop.f32.mrf.mxu0
      %v2042 = vadd.f32 0.0, %v2041
      %2043 = vmatmul.bf16.gmra.mxu0 %v1959
      %v2044 = vpop.f32.mrf.mxu0
      %v2045 = vadd.f32 0.0, %v2044
      %v2046 = vpop.f32.mrf.mxu0
      %v2047 = vadd.f32 0.0, %v2046
      %2048 = vmatmul.bf16.gmra.mxu0 %v1962
      %v2049 = vpop.f32.mrf.mxu0
      %v2050 = vadd.f32 0.0, %v2049
      %v2051 = vpop.f32.mrf.mxu0
      %v2052 = vadd.f32 0.0, %v2051
      %2053 = vmatmul.bf16.gmra.mxu0 %v1965
      %v2054 = vpop.f32.mrf.mxu0
      %v2055 = vadd.f32 0.0, %v2054
      %v2056 = vpop.f32.mrf.mxu0
      %v2057 = vadd.f32 0.0, %v2056
      %2058 = vdwg.mxu0
      %v2059 = vadd.f32 %v1805, %v1980
      %v2060 = vadd.f32 %v1806, %v1982
      %v2061 = vadd.f32 %v1807, %v1985
      %v2062 = vadd.f32 %v1808, %v1987
      %v2063 = vadd.f32 %v1809, %v1990
      %v2064 = vadd.f32 %v1810, %v1992
      %v2065 = vadd.f32 %v1811, %v1995
      %v2066 = vadd.f32 %v1812, %v1997
      %v2067 = vadd.f32 %v1813, %v2000
      %v2068 = vadd.f32 %v1814, %v2002
      %v2069 = vadd.f32 %v1815, %v2005
      %v2070 = vadd.f32 %v1816, %v2007
      %v2071 = vadd.f32 %v1817, %v2010
      %v2072 = vadd.f32 %v1818, %v2012
      %v2073 = vadd.f32 %v1819, %v2015
      %v2074 = vadd.f32 %v1820, %v2017
      %v2075 = vadd.f32 %v1821, %v2020
      %v2076 = vadd.f32 %v1822, %v2022
      %v2077 = vadd.f32 %v1823, %v2025
      %v2078 = vadd.f32 %v1824, %v2027
      %v2079 = vadd.f32 %v1825, %v2030
      %v2080 = vadd.f32 %v1826, %v2032
      %v2081 = vadd.f32 %v1827, %v2035
      %v2082 = vadd.f32 %v1828, %v2037
      %v2083 = vadd.f32 %v1829, %v2040
      %v2084 = vadd.f32 %v1830, %v2042
      %v2085 = vadd.f32 %v1831, %v2045
      %v2086 = vadd.f32 %v1832, %v2047
      %v2087 = vadd.f32 %v1833, %v2050
      %v2088 = vadd.f32 %v1834, %v2052
      %v2089 = vadd.f32 %v1835, %v2055
      %v2090 = vadd.f32 %v1836, %v2057
      %2091 = vst [vmem:[#allocation2] sm:$0xff] %v2059
      %2092 = vst [vmem:[#allocation2 + $0x8] sm:$0xff] %v2060
      %2093 = vst [vmem:[#allocation2 + $0x10] sm:$0xff] %v2061
      %2094 = vst [vmem:[#allocation2 + $0x18] sm:$0xff] %v2062
      %2095 = vst [vmem:[#allocation2 + $0x20] sm:$0xff] %v2063
      %2096 = vst [vmem:[#allocation2 + $0x28] sm:$0xff] %v2064
      %2097 = vst [vmem:[#allocation2 + $0x30] sm:$0xff] %v2065
      %2098 = vst [vmem:[#allocation2 + $0x38] sm:$0xff] %v2066
      %2099 = vst [vmem:[#allocation2 + $0x40] sm:$0xff] %v2067
      %2100 = vst [vmem:[#allocation2 + $0x48] sm:$0xff] %v2068
      %2101 = vst [vmem:[#allocation2 + $0x50] sm:$0xff] %v2069
      %2102 = vst [vmem:[#allocation2 + $0x58] sm:$0xff] %v2070
      %2103 = vst [vmem:[#allocation2 + $0x60] sm:$0xff] %v2071
      %2104 = vst [vmem:[#allocation2 + $0x68] sm:$0xff] %v2072
      %2105 = vst [vmem:[#allocation2 + $0x70] sm:$0xff] %v2073
      %2106 = vst [vmem:[#allocation2 + $0x78] sm:$0xff] %v2074
      %2107 = vst [vmem:[#allocation2 + $0x80] sm:$0xff] %v2075
      %2108 = vst [vmem:[#allocation2 + $0x88] sm:$0xff] %v2076
      %2109 = vst [vmem:[#allocation2 + $0x90] sm:$0xff] %v2077
      %2110 = vst [vmem:[#allocation2 + $0x98] sm:$0xff] %v2078
      %2111 = vst [vmem:[#allocation2 + $0xa0] sm:$0xff] %v2079
      %2112 = vst [vmem:[#allocation2 + $0xa8] sm:$0xff] %v2080
      %2113 = vst [vmem:[#allocation2 + $0xb0] sm:$0xff] %v2081
      %2114 = vst [vmem:[#allocation2 + $0xb8] sm:$0xff] %v2082
      %2115 = vst [vmem:[#allocation2 + $0xc0] sm:$0xff] %v2083
      %2116 = vst [vmem:[#allocation2 + $0xc8] sm:$0xff] %v2084
      %2117 = vst [vmem:[#allocation2 + $0xd0] sm:$0xff] %v2085
      %2118 = vst [vmem:[#allocation2 + $0xd8] sm:$0xff] %v2086
      %2119 = vst [vmem:[#allocation2 + $0xe0] sm:$0xff] %v2087
      %2120 = vst [vmem:[#allocation2 + $0xe8] sm:$0xff] %v2088
      %2121 = vst [vmem:[#allocation2 + $0xf0] sm:$0xff] %v2089
      %2122 = vst [vmem:[#allocation2 + $0xf8] sm:$0xff] %v2090
      %v2123 = vld [vmem:[%s1772] sm:$0xf]
      %v2124 = vld [vmem:[%s1772 + $0x4] sm:$0xf]
      %v2125 = vld [vmem:[%s1772 + $0x8] sm:$0x1]
      %v2126 = vld [vmem:[%s1772 + $0xc] sm:$0xf]
      %v2127 = vld [vmem:[%s1772 + $0x10] sm:$0xf]
      %v2128 = vld [vmem:[%s1772 + $0x14] sm:$0x1]
      %v2129 = vld [vmem:[%s1772 + $0x18] sm:$0xf]
      %v2130 = vld [vmem:[%s1772 + $0x1c] sm:$0xf]
      %v2131 = vld [vmem:[%s1772 + $0x20] sm:$0x1]
      %v2132 = vld [vmem:[%s1772 + $0x24] sm:$0xf]
      %v2133 = vld [vmem:[%s1772 + $0x28] sm:$0xf]
      %v2134 = vld [vmem:[%s1772 + $0x2c] sm:$0x1]
      %v2135 = vld [vmem:[%s1772 + $0x30] sm:$0xf]
      %v2136 = vld [vmem:[%s1772 + $0x34] sm:$0xf]
      %v2137 = vld [vmem:[%s1772 + $0x38] sm:$0x1]
      %v2138 = vld [vmem:[%s1772 + $0x3c] sm:$0xf]
      %v2139 = vld [vmem:[%s1772 + $0x40] sm:$0xf]
      %v2140 = vld [vmem:[%s1772 + $0x44] sm:$0x1]
      %v2141 = vld [vmem:[%s1772 + $0x48] sm:$0xf]
      %v2142 = vld [vmem:[%s1772 + $0x4c] sm:$0xf]
      %v2143 = vld [vmem:[%s1772 + $0x50] sm:$0x1]
      %v2144 = vld [vmem:[%s1772 + $0x54] sm:$0xf]
      %v2145 = vld [vmem:[%s1772 + $0x58] sm:$0xf]
      %v2146 = vld [vmem:[%s1772 + $0x5c] sm:$0x1]
      %v2147 = vld [vmem:[%s1772 + $0x60] sm:$0xf]
      %v2148 = vld [vmem:[%s1772 + $0x64] sm:$0xf]
      %v2149 = vld [vmem:[%s1772 + $0x68] sm:$0x1]
      %v2150 = vld [vmem:[%s1772 + $0x6c] sm:$0xf]
      %v2151 = vld [vmem:[%s1772 + $0x70] sm:$0xf]
      %v2152 = vld [vmem:[%s1772 + $0x74] sm:$0x1]
      %v2153 = vld [vmem:[%s1772 + $0x78] sm:$0xf]
      %v2154 = vld [vmem:[%s1772 + $0x7c] sm:$0xf]
      %v2155 = vld [vmem:[%s1772 + $0x80] sm:$0x1]
      %v2156 = vld [vmem:[%s1772 + $0x84] sm:$0xf]
      %v2157 = vld [vmem:[%s1772 + $0x88] sm:$0xf]
      %v2158 = vld [vmem:[%s1772 + $0x8c] sm:$0x1]
      %v2159 = vld [vmem:[%s1772 + $0x90] sm:$0xf]
      %v2160 = vld [vmem:[%s1772 + $0x94] sm:$0xf]
      %v2161 = vld [vmem:[%s1772 + $0x98] sm:$0x1]
      %v2162 = vld [vmem:[%s1772 + $0x9c] sm:$0xf]
      %v2163 = vld [vmem:[%s1772 + $0xa0] sm:$0xf]
      %v2164 = vld [vmem:[%s1772 + $0xa4] sm:$0x1]
      %v2165 = vld [vmem:[%s1772 + $0xa8] sm:$0xf]
      %v2166 = vld [vmem:[%s1772 + $0xac] sm:$0xf]
      %v2167 = vld [vmem:[%s1772 + $0xb0] sm:$0x1]
      %v2168 = vld [vmem:[%s1772 + $0xb4] sm:$0xf]
      %v2169 = vld [vmem:[%s1772 + $0xb8] sm:$0xf]
      %v2170 = vld [vmem:[%s1772 + $0xbc] sm:$0x1]
      %v2172 = vshrl.u32 %v2123, 16
      %v2174 = vrot.slane %v2172, 4
      %v2175 = vshll.u32 %v2123, 16
      %v2177 = vrot.slane %v2175, 5
      %v2178 = vor.u32 %v2174, %v2177
      %v2179 = vrot.slane %v2178, 4
      %v2181 = vshll.u32 %v2124, 16
      %v2183 = vrot.slane %v2181, 5
      %v2184 = vsel %vm604, %v2179, %v2183
      %v2185 = vshrl.u32 %v2124, 16
      %v2187 = vrot.slane %v2185, 4
      %v2188 = vor.u32 %v2187, %v2183
      %v2189 = vrot.slane %v2188, 4
      %v2191 = vshll.u32 %v2125, 16
      %v2193 = vrot.slane %v2191, 5
      %v2194 = vsel %vm604, %v2189, %v2193
      %v2196 = vshrl.u32 %v2126, 16
      %v2198 = vrot.slane %v2196, 4
      %v2199 = vshll.u32 %v2126, 16
      %v2201 = vrot.slane %v2199, 5
      %v2202 = vor.u32 %v2198, %v2201
      %v2203 = vrot.slane %v2202, 4
      %v2205 = vshll.u32 %v2127, 16
      %v2207 = vrot.slane %v2205, 5
      %v2208 = vsel %vm604, %v2203, %v2207
      %v2209 = vshrl.u32 %v2127, 16
      %v2211 = vrot.slane %v2209, 4
      %v2212 = vor.u32 %v2211, %v2207
      %v2213 = vrot.slane %v2212, 4
      %v2215 = vshll.u32 %v2128, 16
      %v2217 = vrot.slane %v2215, 5
      %v2218 = vsel %vm604, %v2213, %v2217
      %v2220 = vshrl.u32 %v2129, 16
      %v2222 = vrot.slane %v2220, 4
      %v2223 = vshll.u32 %v2129, 16
      %v2225 = vrot.slane %v2223, 5
      %v2226 = vor.u32 %v2222, %v2225
      %v2227 = vrot.slane %v2226, 4
      %v2229 = vshll.u32 %v2130, 16
      %v2231 = vrot.slane %v2229, 5
      %v2232 = vsel %vm604, %v2227, %v2231
      %v2233 = vshrl.u32 %v2130, 16
      %v2235 = vrot.slane %v2233, 4
      %v2236 = vor.u32 %v2235, %v2231
      %v2237 = vrot.slane %v2236, 4
      %v2239 = vshll.u32 %v2131, 16
      %v2241 = vrot.slane %v2239, 5
      %v2242 = vsel %vm604, %v2237, %v2241
      %v2244 = vshrl.u32 %v2132, 16
      %v2246 = vrot.slane %v2244, 4
      %v2247 = vshll.u32 %v2132, 16
      %v2249 = vrot.slane %v2247, 5
      %v2250 = vor.u32 %v2246, %v2249
      %v2251 = vrot.slane %v2250, 4
      %v2253 = vshll.u32 %v2133, 16
      %v2255 = vrot.slane %v2253, 5
      %v2256 = vsel %vm604, %v2251, %v2255
      %v2257 = vshrl.u32 %v2133, 16
      %v2259 = vrot.slane %v2257, 4
      %v2260 = vor.u32 %v2259, %v2255
      %v2261 = vrot.slane %v2260, 4
      %v2263 = vshll.u32 %v2134, 16
      %v2265 = vrot.slane %v2263, 5
      %v2266 = vsel %vm604, %v2261, %v2265
      %v2268 = vshrl.u32 %v2135, 16
      %v2270 = vrot.slane %v2268, 4
      %v2271 = vshll.u32 %v2135, 16
      %v2273 = vrot.slane %v2271, 5
      %v2274 = vor.u32 %v2270, %v2273
      %v2275 = vrot.slane %v2274, 4
      %v2277 = vshll.u32 %v2136, 16
      %v2279 = vrot.slane %v2277, 5
      %v2280 = vsel %vm604, %v2275, %v2279
      %v2281 = vshrl.u32 %v2136, 16
      %v2283 = vrot.slane %v2281, 4
      %v2284 = vor.u32 %v2283, %v2279
      %v2285 = vrot.slane %v2284, 4
      %v2287 = vshll.u32 %v2137, 16
      %v2289 = vrot.slane %v2287, 5
      %v2290 = vsel %vm604, %v2285, %v2289
      %v2292 = vshrl.u32 %v2138, 16
      %v2294 = vrot.slane %v2292, 4
      %v2295 = vshll.u32 %v2138, 16
      %v2297 = vrot.slane %v2295, 5
      %v2298 = vor.u32 %v2294, %v2297
      %v2299 = vrot.slane %v2298, 4
      %v2301 = vshll.u32 %v2139, 16
      %v2303 = vrot.slane %v2301, 5
      %v2304 = vsel %vm604, %v2299, %v2303
      %v2305 = vshrl.u32 %v2139, 16
      %v2307 = vrot.slane %v2305, 4
      %v2308 = vor.u32 %v2307, %v2303
      %v2309 = vrot.slane %v2308, 4
      %v2311 = vshll.u32 %v2140, 16
      %v2313 = vrot.slane %v2311, 5
      %v2314 = vsel %vm604, %v2309, %v2313
      %v2316 = vshrl.u32 %v2141, 16
      %v2318 = vrot.slane %v2316, 4
      %v2319 = vshll.u32 %v2141, 16
      %v2321 = vrot.slane %v2319, 5
      %v2322 = vor.u32 %v2318, %v2321
      %v2323 = vrot.slane %v2322, 4
      %v2325 = vshll.u32 %v2142, 16
      %v2327 = vrot.slane %v2325, 5
      %v2328 = vsel %vm604, %v2323, %v2327
      %v2329 = vshrl.u32 %v2142, 16
      %v2331 = vrot.slane %v2329, 4
      %v2332 = vor.u32 %v2331, %v2327
      %v2333 = vrot.slane %v2332, 4
      %v2335 = vshll.u32 %v2143, 16
      %v2337 = vrot.slane %v2335, 5
      %v2338 = vsel %vm604, %v2333, %v2337
      %v2340 = vshrl.u32 %v2144, 16
      %v2342 = vrot.slane %v2340, 4
      %v2343 = vshll.u32 %v2144, 16
      %v2345 = vrot.slane %v2343, 5
      %v2346 = vor.u32 %v2342, %v2345
      %v2347 = vrot.slane %v2346, 4
      %v2349 = vshll.u32 %v2145, 16
      %v2351 = vrot.slane %v2349, 5
      %v2352 = vsel %vm604, %v2347, %v2351
      %v2353 = vshrl.u32 %v2145, 16
      %v2355 = vrot.slane %v2353, 4
      %v2356 = vor.u32 %v2355, %v2351
      %v2357 = vrot.slane %v2356, 4
      %v2359 = vshll.u32 %v2146, 16
      %v2361 = vrot.slane %v2359, 5
      %v2362 = vsel %vm604, %v2357, %v2361
      %v2364 = vshrl.u32 %v2147, 16
      %v2366 = vrot.slane %v2364, 4
      %v2367 = vshll.u32 %v2147, 16
      %v2369 = vrot.slane %v2367, 5
      %v2370 = vor.u32 %v2366, %v2369
      %v2371 = vrot.slane %v2370, 4
      %v2373 = vshll.u32 %v2148, 16
      %v2375 = vrot.slane %v2373, 5
      %v2376 = vsel %vm604, %v2371, %v2375
      %v2377 = vshrl.u32 %v2148, 16
      %v2379 = vrot.slane %v2377, 4
      %v2380 = vor.u32 %v2379, %v2375
      %v2381 = vrot.slane %v2380, 4
      %v2383 = vshll.u32 %v2149, 16
      %v2385 = vrot.slane %v2383, 5
      %v2386 = vsel %vm604, %v2381, %v2385
      %v2388 = vshrl.u32 %v2150, 16
      %v2390 = vrot.slane %v2388, 4
      %v2391 = vshll.u32 %v2150, 16
      %v2393 = vrot.slane %v2391, 5
      %v2394 = vor.u32 %v2390, %v2393
      %v2395 = vrot.slane %v2394, 4
      %v2397 = vshll.u32 %v2151, 16
      %v2399 = vrot.slane %v2397, 5
      %v2400 = vsel %vm604, %v2395, %v2399
      %v2401 = vshrl.u32 %v2151, 16
      %v2403 = vrot.slane %v2401, 4
      %v2404 = vor.u32 %v2403, %v2399
      %v2405 = vrot.slane %v2404, 4
      %v2407 = vshll.u32 %v2152, 16
      %v2409 = vrot.slane %v2407, 5
      %v2410 = vsel %vm604, %v2405, %v2409
      %v2412 = vshrl.u32 %v2153, 16
      %v2414 = vrot.slane %v2412, 4
      %v2415 = vshll.u32 %v2153, 16
      %v2417 = vrot.slane %v2415, 5
      %v2418 = vor.u32 %v2414, %v2417
      %v2419 = vrot.slane %v2418, 4
      %v2421 = vshll.u32 %v2154, 16
      %v2423 = vrot.slane %v2421, 5
      %v2424 = vsel %vm604, %v2419, %v2423
      %v2425 = vshrl.u32 %v2154, 16
      %v2427 = vrot.slane %v2425, 4
      %v2428 = vor.u32 %v2427, %v2423
      %v2429 = vrot.slane %v2428, 4
      %v2431 = vshll.u32 %v2155, 16
      %v2433 = vrot.slane %v2431, 5
      %v2434 = vsel %vm604, %v2429, %v2433
      %v2436 = vshrl.u32 %v2156, 16
      %v2438 = vrot.slane %v2436, 4
      %v2439 = vshll.u32 %v2156, 16
      %v2441 = vrot.slane %v2439, 5
      %v2442 = vor.u32 %v2438, %v2441
      %v2443 = vrot.slane %v2442, 4
      %v2445 = vshll.u32 %v2157, 16
      %v2447 = vrot.slane %v2445, 5
      %v2448 = vsel %vm604, %v2443, %v2447
      %v2449 = vshrl.u32 %v2157, 16
      %v2451 = vrot.slane %v2449, 4
      %v2452 = vor.u32 %v2451, %v2447
      %v2453 = vrot.slane %v2452, 4
      %v2455 = vshll.u32 %v2158, 16
      %v2457 = vrot.slane %v2455, 5
      %v2458 = vsel %vm604, %v2453, %v2457
      %v2460 = vshrl.u32 %v2159, 16
      %v2462 = vrot.slane %v2460, 4
      %v2463 = vshll.u32 %v2159, 16
      %v2465 = vrot.slane %v2463, 5
      %v2466 = vor.u32 %v2462, %v2465
      %v2467 = vrot.slane %v2466, 4
      %v2469 = vshll.u32 %v2160, 16
      %v2471 = vrot.slane %v2469, 5
      %v2472 = vsel %vm604, %v2467, %v2471
      %v2473 = vshrl.u32 %v2160, 16
      %v2475 = vrot.slane %v2473, 4
      %v2476 = vor.u32 %v2475, %v2471
      %v2477 = vrot.slane %v2476, 4
      %v2479 = vshll.u32 %v2161, 16
      %v2481 = vrot.slane %v2479, 5
      %v2482 = vsel %vm604, %v2477, %v2481
      %v2484 = vshrl.u32 %v2162, 16
      %v2486 = vrot.slane %v2484, 4
      %v2487 = vshll.u32 %v2162, 16
      %v2489 = vrot.slane %v2487, 5
      %v2490 = vor.u32 %v2486, %v2489
      %v2491 = vrot.slane %v2490, 4
      %v2493 = vshll.u32 %v2163, 16
      %v2495 = vrot.slane %v2493, 5
      %v2496 = vsel %vm604, %v2491, %v2495
      %v2497 = vshrl.u32 %v2163, 16
      %v2499 = vrot.slane %v2497, 4
      %v2500 = vor.u32 %v2499, %v2495
      %v2501 = vrot.slane %v2500, 4
      %v2503 = vshll.u32 %v2164, 16
      %v2505 = vrot.slane %v2503, 5
      %v2506 = vsel %vm604, %v2501, %v2505
      %v2508 = vshrl.u32 %v2165, 16
      %v2510 = vrot.slane %v2508, 4
      %v2511 = vshll.u32 %v2165, 16
      %v2513 = vrot.slane %v2511, 5
      %v2514 = vor.u32 %v2510, %v2513
      %v2515 = vrot.slane %v2514, 4
      %v2517 = vshll.u32 %v2166, 16
      %v2519 = vrot.slane %v2517, 5
      %v2520 = vsel %vm604, %v2515, %v2519
      %v2521 = vshrl.u32 %v2166, 16
      %v2523 = vrot.slane %v2521, 4
      %v2524 = vor.u32 %v2523, %v2519
      %v2525 = vrot.slane %v2524, 4
      %v2527 = vshll.u32 %v2167, 16
      %v2529 = vrot.slane %v2527, 5
      %v2530 = vsel %vm604, %v2525, %v2529
      %v2532 = vshrl.u32 %v2168, 16
      %v2534 = vrot.slane %v2532, 4
      %v2535 = vshll.u32 %v2168, 16
      %v2537 = vrot.slane %v2535, 5
      %v2538 = vor.u32 %v2534, %v2537
      %v2539 = vrot.slane %v2538, 4
      %v2541 = vshll.u32 %v2169, 16
      %v2543 = vrot.slane %v2541, 5
      %v2544 = vsel %vm604, %v2539, %v2543
      %v2545 = vshrl.u32 %v2169, 16
      %v2547 = vrot.slane %v2545, 4
      %v2548 = vor.u32 %v2547, %v2543
      %v2549 = vrot.slane %v2548, 4
      %v2551 = vshll.u32 %v2170, 16
      %v2553 = vrot.slane %v2551, 5
      %v2554 = vsel %vm604, %v2549, %v2553
      %v2555 = vld [vmem:[#allocation2] sm:$0xff]
      %v2556 = vld [vmem:[#allocation2 + $0x8] sm:$0xff]
      %v2557 = vld [vmem:[#allocation2 + $0x10] sm:$0xff]
      %v2558 = vld [vmem:[#allocation2 + $0x18] sm:$0xff]
      %v2559 = vld [vmem:[#allocation2 + $0x20] sm:$0xff]
      %v2560 = vld [vmem:[#allocation2 + $0x28] sm:$0xff]
      %v2561 = vld [vmem:[#allocation2 + $0x30] sm:$0xff]
      %v2562 = vld [vmem:[#allocation2 + $0x38] sm:$0xff]
      %v2563 = vld [vmem:[#allocation2 + $0x40] sm:$0xff]
      %v2564 = vld [vmem:[#allocation2 + $0x48] sm:$0xff]
      %v2565 = vld [vmem:[#allocation2 + $0x50] sm:$0xff]
      %v2566 = vld [vmem:[#allocation2 + $0x58] sm:$0xff]
      %v2567 = vld [vmem:[#allocation2 + $0x60] sm:$0xff]
      %v2568 = vld [vmem:[#allocation2 + $0x68] sm:$0xff]
      %v2569 = vld [vmem:[#allocation2 + $0x70] sm:$0xff]
      %v2570 = vld [vmem:[#allocation2 + $0x78] sm:$0xff]
      %v2571 = vld [vmem:[#allocation2 + $0x80] sm:$0xff]
      %v2572 = vld [vmem:[#allocation2 + $0x88] sm:$0xff]
      %v2573 = vld [vmem:[#allocation2 + $0x90] sm:$0xff]
      %v2574 = vld [vmem:[#allocation2 + $0x98] sm:$0xff]
      %v2575 = vld [vmem:[#allocation2 + $0xa0] sm:$0xff]
      %v2576 = vld [vmem:[#allocation2 + $0xa8] sm:$0xff]
      %v2577 = vld [vmem:[#allocation2 + $0xb0] sm:$0xff]
      %v2578 = vld [vmem:[#allocation2 + $0xb8] sm:$0xff]
      %v2579 = vld [vmem:[#allocation2 + $0xc0] sm:$0xff]
      %v2580 = vld [vmem:[#allocation2 + $0xc8] sm:$0xff]
      %v2581 = vld [vmem:[#allocation2 + $0xd0] sm:$0xff]
      %v2582 = vld [vmem:[#allocation2 + $0xd8] sm:$0xff]
      %v2583 = vld [vmem:[#allocation2 + $0xe0] sm:$0xff]
      %v2584 = vld [vmem:[#allocation2 + $0xe8] sm:$0xff]
      %v2585 = vld [vmem:[#allocation2 + $0xf0] sm:$0xff]
      %v2586 = vld [vmem:[#allocation2 + $0xf8] sm:$0xff]
      %s2587 = scalar_lea.vmem %s1, 8
      %v2588 = vld [vmem:[%s2587] sm:$0x3]
      %v2589 = vunpack.c.l.b16 %v2184
      %v2590 = vunpack.c.l.b16 %v2194
      %v2591 = vunpack.c.l.b16 %v2208
      %v2592 = vunpack.c.l.b16 %v2218
      %v2593 = vunpack.c.l.b16 %v2232
      %v2594 = vunpack.c.l.b16 %v2242
      %v2595 = vunpack.c.l.b16 %v2256
      %v2596 = vunpack.c.l.b16 %v2266
      %v2597 = vunpack.c.l.b16 %v2280
      %v2598 = vunpack.c.l.b16 %v2290
      %v2599 = vunpack.c.l.b16 %v2304
      %v2600 = vunpack.c.l.b16 %v2314
      %v2601 = vunpack.c.l.b16 %v2328
      %v2602 = vunpack.c.l.b16 %v2338
      %v2603 = vunpack.c.l.b16 %v2352
      %v2604 = vunpack.c.l.b16 %v2362
      %v2605 = vunpack.c.l.b16 %v2376
      %v2606 = vunpack.c.l.b16 %v2386
      %v2607 = vunpack.c.l.b16 %v2400
      %v2608 = vunpack.c.l.b16 %v2410
      %v2609 = vunpack.c.l.b16 %v2424
      %v2610 = vunpack.c.l.b16 %v2434
      %v2611 = vunpack.c.l.b16 %v2448
      %v2612 = vunpack.c.l.b16 %v2458
      %v2613 = vunpack.c.l.b16 %v2472
      %v2614 = vunpack.c.l.b16 %v2482
      %v2615 = vunpack.c.l.b16 %v2496
      %v2616 = vunpack.c.l.b16 %v2506
      %v2617 = vunpack.c.l.b16 %v2520
      %v2618 = vunpack.c.l.b16 %v2530
      %v2619 = vunpack.c.l.b16 %v2544
      %v2620 = vunpack.c.l.b16 %v2554
      %v2621 = vpack.c.b16 %v2590, %v2589
      %v2622 = vpack.c.b16 %v2592, %v2591
      %v2623 = vpack.c.b16 %v2594, %v2593
      %v2624 = vpack.c.b16 %v2596, %v2595
      %v2625 = vpack.c.b16 %v2598, %v2597
      %v2626 = vpack.c.b16 %v2600, %v2599
      %v2627 = vpack.c.b16 %v2602, %v2601
      %v2628 = vpack.c.b16 %v2604, %v2603
      %v2629 = vpack.c.b16 %v2606, %v2605
      %v2630 = vpack.c.b16 %v2608, %v2607
      %v2631 = vpack.c.b16 %v2610, %v2609
      %v2632 = vpack.c.b16 %v2612, %v2611
      %v2633 = vpack.c.b16 %v2614, %v2613
      %v2634 = vpack.c.b16 %v2616, %v2615
      %v2635 = vpack.c.b16 %v2618, %v2617
      %v2636 = vpack.c.b16 %v2620, %v2619
      %v2638 = vsel %vm345, %v2621, 0
      %v2641 = vsel %vm345, %v2622, 0
      %v2644 = vsel %vm345, %v2623, 0
      %v2647 = vsel %vm345, %v2624, 0
      %v2650 = vsel %vm345, %v2625, 0
      %v2653 = vsel %vm345, %v2626, 0
      %v2656 = vsel %vm345, %v2627, 0
      %v2659 = vsel %vm345, %v2628, 0
      %v2662 = vsel %vm345, %v2629, 0
      %v2665 = vsel %vm345, %v2630, 0
      %v2668 = vsel %vm345, %v2631, 0
      %v2671 = vsel %vm345, %v2632, 0
      %v2674 = vsel %vm345, %v2633, 0
      %v2677 = vsel %vm345, %v2634, 0
      %v2680 = vsel %vm345, %v2635, 0
      %v2683 = vsel %vm345, %v2636, 0
      %v2686 = vand.u32 %v2588, %v397
      %2688 = vmatpush.bf16.msra.mxu0 0
      %2689 = vmatpush.bf16.msra.mxu0 0
      %2690 = vmatpush.bf16.msra.mxu0 0
      %2691 = vmatpush.bf16.msra.mxu0 0
      %2692 = vmatpush.bf16.msra.mxu0 0
      %2693 = vmatpush.bf16.msra.mxu0 0
      %2694 = vmatpush.bf16.msra.mxu0 0
      %2695 = vmatpush.bf16.msra.mxu0 %v2686
      %2696 = vmatmul.bf16.gmra.mxu0 %v2638
      %v2697 = vpop.f32.mrf.mxu0
      %v2698 = vadd.f32 0.0, %v2697
      %v2699 = vpop.f32.mrf.mxu0
      %v2700 = vadd.f32 0.0, %v2699
      %2701 = vmatmul.bf16.gmra.mxu0 %v2641
      %v2702 = vpop.f32.mrf.mxu0
      %v2703 = vadd.f32 0.0, %v2702
      %v2704 = vpop.f32.mrf.mxu0
      %v2705 = vadd.f32 0.0, %v2704
      %2706 = vmatmul.bf16.gmra.mxu0 %v2644
      %v2707 = vpop.f32.mrf.mxu0
      %v2708 = vadd.f32 0.0, %v2707
      %v2709 = vpop.f32.mrf.mxu0
      %v2710 = vadd.f32 0.0, %v2709
      %2711 = vmatmul.bf16.gmra.mxu0 %v2647
      %v2712 = vpop.f32.mrf.mxu0
      %v2713 = vadd.f32 0.0, %v2712
      %v2714 = vpop.f32.mrf.mxu0
      %v2715 = vadd.f32 0.0, %v2714
      %2716 = vmatmul.bf16.gmra.mxu0 %v2650
      %v2717 = vpop.f32.mrf.mxu0
      %v2718 = vadd.f32 0.0, %v2717
      %v2719 = vpop.f32.mrf.mxu0
      %v2720 = vadd.f32 0.0, %v2719
      %2721 = vmatmul.bf16.gmra.mxu0 %v2653
      %v2722 = vpop.f32.mrf.mxu0
      %v2723 = vadd.f32 0.0, %v2722
      %v2724 = vpop.f32.mrf.mxu0
      %v2725 = vadd.f32 0.0, %v2724
      %2726 = vmatmul.bf16.gmra.mxu0 %v2656
      %v2727 = vpop.f32.mrf.mxu0
      %v2728 = vadd.f32 0.0, %v2727
      %v2729 = vpop.f32.mrf.mxu0
      %v2730 = vadd.f32 0.0, %v2729
      %2731 = vmatmul.bf16.gmra.mxu0 %v2659
      %v2732 = vpop.f32.mrf.mxu0
      %v2733 = vadd.f32 0.0, %v2732
      %v2734 = vpop.f32.mrf.mxu0
      %v2735 = vadd.f32 0.0, %v2734
      %2736 = vmatmul.bf16.gmra.mxu0 %v2662
      %v2737 = vpop.f32.mrf.mxu0
      %v2738 = vadd.f32 0.0, %v2737
      %v2739 = vpop.f32.mrf.mxu0
      %v2740 = vadd.f32 0.0, %v2739
      %2741 = vmatmul.bf16.gmra.mxu0 %v2665
      %v2742 = vpop.f32.mrf.mxu0
      %v2743 = vadd.f32 0.0, %v2742
      %v2744 = vpop.f32.mrf.mxu0
      %v2745 = vadd.f32 0.0, %v2744
      %2746 = vmatmul.bf16.gmra.mxu0 %v2668
      %v2747 = vpop.f32.mrf.mxu0
      %v2748 = vadd.f32 0.0, %v2747
      %v2749 = vpop.f32.mrf.mxu0
      %v2750 = vadd.f32 0.0, %v2749
      %2751 = vmatmul.bf16.gmra.mxu0 %v2671
      %v2752 = vpop.f32.mrf.mxu0
      %v2753 = vadd.f32 0.0, %v2752
      %v2754 = vpop.f32.mrf.mxu0
      %v2755 = vadd.f32 0.0, %v2754
      %2756 = vmatmul.bf16.gmra.mxu0 %v2674
      %v2757 = vpop.f32.mrf.mxu0
      %v2758 = vadd.f32 0.0, %v2757
      %v2759 = vpop.f32.mrf.mxu0
      %v2760 = vadd.f32 0.0, %v2759
      %2761 = vmatmul.bf16.gmra.mxu0 %v2677
      %v2762 = vpop.f32.mrf.mxu0
      %v2763 = vadd.f32 0.0, %v2762
      %v2764 = vpop.f32.mrf.mxu0
      %v2765 = vadd.f32 0.0, %v2764
      %2766 = vmatmul.bf16.gmra.mxu0 %v2680
      %v2767 = vpop.f32.mrf.mxu0
      %v2768 = vadd.f32 0.0, %v2767
      %v2769 = vpop.f32.mrf.mxu0
      %v2770 = vadd.f32 0.0, %v2769
      %2771 = vmatmul.bf16.gmra.mxu0 %v2683
      %v2772 = vpop.f32.mrf.mxu0
      %v2773 = vadd.f32 0.0, %v2772
      %v2774 = vpop.f32.mrf.mxu0
      %v2775 = vadd.f32 0.0, %v2774
      %2776 = vdwg.mxu0
      %v2777 = vadd.f32 %v2555, %v2698
      %v2778 = vadd.f32 %v2556, %v2700
      %v2779 = vadd.f32 %v2557, %v2703
      %v2780 = vadd.f32 %v2558, %v2705
      %v2781 = vadd.f32 %v2559, %v2708
      %v2782 = vadd.f32 %v2560, %v2710
      %v2783 = vadd.f32 %v2561, %v2713
      %v2784 = vadd.f32 %v2562, %v2715
      %v2785 = vadd.f32 %v2563, %v2718
      %v2786 = vadd.f32 %v2564, %v2720
      %v2787 = vadd.f32 %v2565, %v2723
      %v2788 = vadd.f32 %v2566, %v2725
      %v2789 = vadd.f32 %v2567, %v2728
      %v2790 = vadd.f32 %v2568, %v2730
      %v2791 = vadd.f32 %v2569, %v2733
      %v2792 = vadd.f32 %v2570, %v2735
      %v2793 = vadd.f32 %v2571, %v2738
      %v2794 = vadd.f32 %v2572, %v2740
      %v2795 = vadd.f32 %v2573, %v2743
      %v2796 = vadd.f32 %v2574, %v2745
      %v2797 = vadd.f32 %v2575, %v2748
      %v2798 = vadd.f32 %v2576, %v2750
      %v2799 = vadd.f32 %v2577, %v2753
      %v2800 = vadd.f32 %v2578, %v2755
      %v2801 = vadd.f32 %v2579, %v2758
      %v2802 = vadd.f32 %v2580, %v2760
      %v2803 = vadd.f32 %v2581, %v2763
      %v2804 = vadd.f32 %v2582, %v2765
      %v2805 = vadd.f32 %v2583, %v2768
      %v2806 = vadd.f32 %v2584, %v2770
      %v2807 = vadd.f32 %v2585, %v2773
      %v2808 = vadd.f32 %v2586, %v2775
      %2809 = vst [vmem:[#allocation2] sm:$0xff] %v2777
      %2810 = vst [vmem:[#allocation2 + $0x8] sm:$0xff] %v2778
      %2811 = vst [vmem:[#allocation2 + $0x10] sm:$0xff] %v2779
      %2812 = vst [vmem:[#allocation2 + $0x18] sm:$0xff] %v2780
      %2813 = vst [vmem:[#allocation2 + $0x20] sm:$0xff] %v2781
      %2814 = vst [vmem:[#allocation2 + $0x28] sm:$0xff] %v2782
      %2815 = vst [vmem:[#allocation2 + $0x30] sm:$0xff] %v2783
      %2816 = vst [vmem:[#allocation2 + $0x38] sm:$0xff] %v2784
      %2817 = vst [vmem:[#allocation2 + $0x40] sm:$0xff] %v2785
      %2818 = vst [vmem:[#allocation2 + $0x48] sm:$0xff] %v2786
      %2819 = vst [vmem:[#allocation2 + $0x50] sm:$0xff] %v2787
      %2820 = vst [vmem:[#allocation2 + $0x58] sm:$0xff] %v2788
      %2821 = vst [vmem:[#allocation2 + $0x60] sm:$0xff] %v2789
      %2822 = vst [vmem:[#allocation2 + $0x68] sm:$0xff] %v2790
      %2823 = vst [vmem:[#allocation2 + $0x70] sm:$0xff] %v2791
      %2824 = vst [vmem:[#allocation2 + $0x78] sm:$0xff] %v2792
      %2825 = vst [vmem:[#allocation2 + $0x80] sm:$0xff] %v2793
      %2826 = vst [vmem:[#allocation2 + $0x88] sm:$0xff] %v2794
      %2827 = vst [vmem:[#allocation2 + $0x90] sm:$0xff] %v2795
      %2828 = vst [vmem:[#allocation2 + $0x98] sm:$0xff] %v2796
      %2829 = vst [vmem:[#allocation2 + $0xa0] sm:$0xff] %v2797
      %2830 = vst [vmem:[#allocation2 + $0xa8] sm:$0xff] %v2798
      %2831 = vst [vmem:[#allocation2 + $0xb0] sm:$0xff] %v2799
      %2832 = vst [vmem:[#allocation2 + $0xb8] sm:$0xff] %v2800
      %2833 = vst [vmem:[#allocation2 + $0xc0] sm:$0xff] %v2801
      %2834 = vst [vmem:[#allocation2 + $0xc8] sm:$0xff] %v2802
      %2835 = vst [vmem:[#allocation2 + $0xd0] sm:$0xff] %v2803
      %2836 = vst [vmem:[#allocation2 + $0xd8] sm:$0xff] %v2804
      %2837 = vst [vmem:[#allocation2 + $0xe0] sm:$0xff] %v2805
      %2838 = vst [vmem:[#allocation2 + $0xe8] sm:$0xff] %v2806
      %2839 = vst [vmem:[#allocation2 + $0xf0] sm:$0xff] %v2807
      %2840 = vst [vmem:[#allocation2 + $0xf8] sm:$0xff] %v2808
      %v2841 = vld [vmem:[%s1772] sm:$0xe]
      %v2842 = vld [vmem:[%s1772 + $0x4] sm:$0xf]
      %v2843 = vld [vmem:[%s1772 + $0x8] sm:$0x1]
      %v2844 = vld [vmem:[%s1772 + $0xc] sm:$0xe]
      %v2845 = vld [vmem:[%s1772 + $0x10] sm:$0xf]
      %v2846 = vld [vmem:[%s1772 + $0x14] sm:$0x1]
      %v2847 = vld [vmem:[%s1772 + $0x18] sm:$0xe]
      %v2848 = vld [vmem:[%s1772 + $0x1c] sm:$0xf]
      %v2849 = vld [vmem:[%s1772 + $0x20] sm:$0x1]
      %v2850 = vld [vmem:[%s1772 + $0x24] sm:$0xe]
      %v2851 = vld [vmem:[%s1772 + $0x28] sm:$0xf]
      %v2852 = vld [vmem:[%s1772 + $0x2c] sm:$0x1]
      %v2853 = vld [vmem:[%s1772 + $0x30] sm:$0xe]
      %v2854 = vld [vmem:[%s1772 + $0x34] sm:$0xf]
      %v2855 = vld [vmem:[%s1772 + $0x38] sm:$0x1]
      %v2856 = vld [vmem:[%s1772 + $0x3c] sm:$0xe]
      %v2857 = vld [vmem:[%s1772 + $0x40] sm:$0xf]
      %v2858 = vld [vmem:[%s1772 + $0x44] sm:$0x1]
      %v2859 = vld [vmem:[%s1772 + $0x48] sm:$0xe]
      %v2860 = vld [vmem:[%s1772 + $0x4c] sm:$0xf]
      %v2861 = vld [vmem:[%s1772 + $0x50] sm:$0x1]
      %v2862 = vld [vmem:[%s1772 + $0x54] sm:$0xe]
      %v2863 = vld [vmem:[%s1772 + $0x58] sm:$0xf]
      %v2864 = vld [vmem:[%s1772 + $0x5c] sm:$0x1]
      %v2865 = vld [vmem:[%s1772 + $0x60] sm:$0xe]
      %v2866 = vld [vmem:[%s1772 + $0x64] sm:$0xf]
      %v2867 = vld [vmem:[%s1772 + $0x68] sm:$0x1]
      %v2868 = vld [vmem:[%s1772 + $0x6c] sm:$0xe]
      %v2869 = vld [vmem:[%s1772 + $0x70] sm:$0xf]
      %v2870 = vld [vmem:[%s1772 + $0x74] sm:$0x1]
      %v2871 = vld [vmem:[%s1772 + $0x78] sm:$0xe]
      %v2872 = vld [vmem:[%s1772 + $0x7c] sm:$0xf]
      %v2873 = vld [vmem:[%s1772 + $0x80] sm:$0x1]
      %v2874 = vld [vmem:[%s1772 + $0x84] sm:$0xe]
      %v2875 = vld [vmem:[%s1772 + $0x88] sm:$0xf]
      %v2876 = vld [vmem:[%s1772 + $0x8c] sm:$0x1]
      %v2877 = vld [vmem:[%s1772 + $0x90] sm:$0xe]
      %v2878 = vld [vmem:[%s1772 + $0x94] sm:$0xf]
      %v2879 = vld [vmem:[%s1772 + $0x98] sm:$0x1]
      %v2880 = vld [vmem:[%s1772 + $0x9c] sm:$0xe]
      %v2881 = vld [vmem:[%s1772 + $0xa0] sm:$0xf]
      %v2882 = vld [vmem:[%s1772 + $0xa4] sm:$0x1]
      %v2883 = vld [vmem:[%s1772 + $0xa8] sm:$0xe]
      %v2884 = vld [vmem:[%s1772 + $0xac] sm:$0xf]
      %v2885 = vld [vmem:[%s1772 + $0xb0] sm:$0x1]
      %v2886 = vld [vmem:[%s1772 + $0xb4] sm:$0xe]
      %v2887 = vld [vmem:[%s1772 + $0xb8] sm:$0xf]
      %v2888 = vld [vmem:[%s1772 + $0xbc] sm:$0x1]
      %v2937 = vrot.slane %v2841, 5
      %v2938 = vrot.slane %v2937, 4
      %v2939 = vrot.slane %v2842, 5
      %v2940 = vsel %vm1373, %v2938, %v2939
      %v2941 = vrot.slane %v2939, 4
      %v2942 = vrot.slane %v2843, 5
      %v2943 = vsel %vm1373, %v2941, %v2942
      %v2944 = vrot.slane %v2844, 5
      %v2945 = vrot.slane %v2944, 4
      %v2946 = vrot.slane %v2845, 5
      %v2947 = vsel %vm1373, %v2945, %v2946
      %v2948 = vrot.slane %v2946, 4
      %v2949 = vrot.slane %v2846, 5
      %v2950 = vsel %vm1373, %v2948, %v2949
      %v2951 = vrot.slane %v2847, 5
      %v2952 = vrot.slane %v2951, 4
      %v2953 = vrot.slane %v2848, 5
      %v2954 = vsel %vm1373, %v2952, %v2953
      %v2955 = vrot.slane %v2953, 4
      %v2956 = vrot.slane %v2849, 5
      %v2957 = vsel %vm1373, %v2955, %v2956
      %v2958 = vrot.slane %v2850, 5
      %v2959 = vrot.slane %v2958, 4
      %v2960 = vrot.slane %v2851, 5
      %v2961 = vsel %vm1373, %v2959, %v2960
      %v2962 = vrot.slane %v2960, 4
      %v2963 = vrot.slane %v2852, 5
      %v2964 = vsel %vm1373, %v2962, %v2963
      %v2965 = vrot.slane %v2853, 5
      %v2966 = vrot.slane %v2965, 4
      %v2967 = vrot.slane %v2854, 5
      %v2968 = vsel %vm1373, %v2966, %v2967
      %v2969 = vrot.slane %v2967, 4
      %v2970 = vrot.slane %v2855, 5
      %v2971 = vsel %vm1373, %v2969, %v2970
      %v2972 = vrot.slane %v2856, 5
      %v2973 = vrot.slane %v2972, 4
      %v2974 = vrot.slane %v2857, 5
      %v2975 = vsel %vm1373, %v2973, %v2974
      %v2976 = vrot.slane %v2974, 4
      %v2977 = vrot.slane %v2858, 5
      %v2978 = vsel %vm1373, %v2976, %v2977
      %v2979 = vrot.slane %v2859, 5
      %v2980 = vrot.slane %v2979, 4
      %v2981 = vrot.slane %v2860, 5
      %v2982 = vsel %vm1373, %v2980, %v2981
      %v2983 = vrot.slane %v2981, 4
      %v2984 = vrot.slane %v2861, 5
      %v2985 = vsel %vm1373, %v2983, %v2984
      %v2986 = vrot.slane %v2862, 5
      %v2987 = vrot.slane %v2986, 4
      %v2988 = vrot.slane %v2863, 5
      %v2989 = vsel %vm1373, %v2987, %v2988
      %v2990 = vrot.slane %v2988, 4
      %v2991 = vrot.slane %v2864, 5
      %v2992 = vsel %vm1373, %v2990, %v2991
      %v2993 = vrot.slane %v2865, 5
      %v2994 = vrot.slane %v2993, 4
      %v2995 = vrot.slane %v2866, 5
      %v2996 = vsel %vm1373, %v2994, %v2995
      %v2997 = vrot.slane %v2995, 4
      %v2998 = vrot.slane %v2867, 5
      %v2999 = vsel %vm1373, %v2997, %v2998
      %v3000 = vrot.slane %v2868, 5
      %v3001 = vrot.slane %v3000, 4
      %v3002 = vrot.slane %v2869, 5
      %v3003 = vsel %vm1373, %v3001, %v3002
      %v3004 = vrot.slane %v3002, 4
      %v3005 = vrot.slane %v2870, 5
      %v3006 = vsel %vm1373, %v3004, %v3005
      %v3007 = vrot.slane %v2871, 5
      %v3008 = vrot.slane %v3007, 4
      %v3009 = vrot.slane %v2872, 5
      %v3010 = vsel %vm1373, %v3008, %v3009
      %v3011 = vrot.slane %v3009, 4
      %v3012 = vrot.slane %v2873, 5
      %v3013 = vsel %vm1373, %v3011, %v3012
      %v3014 = vrot.slane %v2874, 5
      %v3015 = vrot.slane %v3014, 4
      %v3016 = vrot.slane %v2875, 5
      %v3017 = vsel %vm1373, %v3015, %v3016
      %v3018 = vrot.slane %v3016, 4
      %v3019 = vrot.slane %v2876, 5
      %v3020 = vsel %vm1373, %v3018, %v3019
      %v3021 = vrot.slane %v2877, 5
      %v3022 = vrot.slane %v3021, 4
      %v3023 = vrot.slane %v2878, 5
      %v3024 = vsel %vm1373, %v3022, %v3023
      %v3025 = vrot.slane %v3023, 4
      %v3026 = vrot.slane %v2879, 5
      %v3027 = vsel %vm1373, %v3025, %v3026
      %v3028 = vrot.slane %v2880, 5
      %v3029 = vrot.slane %v3028, 4
      %v3030 = vrot.slane %v2881, 5
      %v3031 = vsel %vm1373, %v3029, %v3030
      %v3032 = vrot.slane %v3030, 4
      %v3033 = vrot.slane %v2882, 5
      %v3034 = vsel %vm1373, %v3032, %v3033
      %v3035 = vrot.slane %v2883, 5
      %v3036 = vrot.slane %v3035, 4
      %v3037 = vrot.slane %v2884, 5
      %v3038 = vsel %vm1373, %v3036, %v3037
      %v3039 = vrot.slane %v3037, 4
      %v3040 = vrot.slane %v2885, 5
      %v3041 = vsel %vm1373, %v3039, %v3040
      %v3042 = vrot.slane %v2886, 5
      %v3043 = vrot.slane %v3042, 4
      %v3044 = vrot.slane %v2887, 5
      %v3045 = vsel %vm1373, %v3043, %v3044
      %v3046 = vrot.slane %v3044, 4
      %v3047 = vrot.slane %v2888, 5
      %v3048 = vsel %vm1373, %v3046, %v3047
      %v3049 = vld [vmem:[#allocation2] sm:$0xff]
      %v3050 = vld [vmem:[#allocation2 + $0x8] sm:$0xff]
      %v3051 = vld [vmem:[#allocation2 + $0x10] sm:$0xff]
      %v3052 = vld [vmem:[#allocation2 + $0x18] sm:$0xff]
      %v3053 = vld [vmem:[#allocation2 + $0x20] sm:$0xff]
      %v3054 = vld [vmem:[#allocation2 + $0x28] sm:$0xff]
      %v3055 = vld [vmem:[#allocation2 + $0x30] sm:$0xff]
      %v3056 = vld [vmem:[#allocation2 + $0x38] sm:$0xff]
      %v3057 = vld [vmem:[#allocation2 + $0x40] sm:$0xff]
      %v3058 = vld [vmem:[#allocation2 + $0x48] sm:$0xff]
      %v3059 = vld [vmem:[#allocation2 + $0x50] sm:$0xff]
      %v3060 = vld [vmem:[#allocation2 + $0x58] sm:$0xff]
      %v3061 = vld [vmem:[#allocation2 + $0x60] sm:$0xff]
      %v3062 = vld [vmem:[#allocation2 + $0x68] sm:$0xff]
      %v3063 = vld [vmem:[#allocation2 + $0x70] sm:$0xff]
      %v3064 = vld [vmem:[#allocation2 + $0x78] sm:$0xff]
      %v3065 = vld [vmem:[#allocation2 + $0x80] sm:$0xff]
      %v3066 = vld [vmem:[#allocation2 + $0x88] sm:$0xff]
      %v3067 = vld [vmem:[#allocation2 + $0x90] sm:$0xff]
      %v3068 = vld [vmem:[#allocation2 + $0x98] sm:$0xff]
      %v3069 = vld [vmem:[#allocation2 + $0xa0] sm:$0xff]
      %v3070 = vld [vmem:[#allocation2 + $0xa8] sm:$0xff]
      %v3071 = vld [vmem:[#allocation2 + $0xb0] sm:$0xff]
      %v3072 = vld [vmem:[#allocation2 + $0xb8] sm:$0xff]
      %v3073 = vld [vmem:[#allocation2 + $0xc0] sm:$0xff]
      %v3074 = vld [vmem:[#allocation2 + $0xc8] sm:$0xff]
      %v3075 = vld [vmem:[#allocation2 + $0xd0] sm:$0xff]
      %v3076 = vld [vmem:[#allocation2 + $0xd8] sm:$0xff]
      %v3077 = vld [vmem:[#allocation2 + $0xe0] sm:$0xff]
      %v3078 = vld [vmem:[#allocation2 + $0xe8] sm:$0xff]
      %v3079 = vld [vmem:[#allocation2 + $0xf0] sm:$0xff]
      %v3080 = vld [vmem:[#allocation2 + $0xf8] sm:$0xff]
      %s3081 = scalar_lea.vmem %s1, 10
      %v3082 = vld [vmem:[%s3081] sm:$0x3]
      %v3083 = vunpack.c.l.b16 %v2940
      %v3084 = vunpack.c.l.b16 %v2943
      %v3085 = vunpack.c.l.b16 %v2947
      %v3086 = vunpack.c.l.b16 %v2950
      %v3087 = vunpack.c.l.b16 %v2954
      %v3088 = vunpack.c.l.b16 %v2957
      %v3089 = vunpack.c.l.b16 %v2961
      %v3090 = vunpack.c.l.b16 %v2964
      %v3091 = vunpack.c.l.b16 %v2968
      %v3092 = vunpack.c.l.b16 %v2971
      %v3093 = vunpack.c.l.b16 %v2975
      %v3094 = vunpack.c.l.b16 %v2978
      %v3095 = vunpack.c.l.b16 %v2982
      %v3096 = vunpack.c.l.b16 %v2985
      %v3097 = vunpack.c.l.b16 %v2989
      %v3098 = vunpack.c.l.b16 %v2992
      %v3099 = vunpack.c.l.b16 %v2996
      %v3100 = vunpack.c.l.b16 %v2999
      %v3101 = vunpack.c.l.b16 %v3003
      %v3102 = vunpack.c.l.b16 %v3006
      %v3103 = vunpack.c.l.b16 %v3010
      %v3104 = vunpack.c.l.b16 %v3013
      %v3105 = vunpack.c.l.b16 %v3017
      %v3106 = vunpack.c.l.b16 %v3020
      %v3107 = vunpack.c.l.b16 %v3024
      %v3108 = vunpack.c.l.b16 %v3027
      %v3109 = vunpack.c.l.b16 %v3031
      %v3110 = vunpack.c.l.b16 %v3034
      %v3111 = vunpack.c.l.b16 %v3038
      %v3112 = vunpack.c.l.b16 %v3041
      %v3113 = vunpack.c.l.b16 %v3045
      %v3114 = vunpack.c.l.b16 %v3048
      %v3115 = vpack.c.b16 %v3084, %v3083
      %v3116 = vpack.c.b16 %v3086, %v3085
      %v3117 = vpack.c.b16 %v3088, %v3087
      %v3118 = vpack.c.b16 %v3090, %v3089
      %v3119 = vpack.c.b16 %v3092, %v3091
      %v3120 = vpack.c.b16 %v3094, %v3093
      %v3121 = vpack.c.b16 %v3096, %v3095
      %v3122 = vpack.c.b16 %v3098, %v3097
      %v3123 = vpack.c.b16 %v3100, %v3099
      %v3124 = vpack.c.b16 %v3102, %v3101
      %v3125 = vpack.c.b16 %v3104, %v3103
      %v3126 = vpack.c.b16 %v3106, %v3105
      %v3127 = vpack.c.b16 %v3108, %v3107
      %v3128 = vpack.c.b16 %v3110, %v3109
      %v3129 = vpack.c.b16 %v3112, %v3111
      %v3130 = vpack.c.b16 %v3114, %v3113
      %v3132 = vsel %vm345, %v3115, 0
      %v3135 = vsel %vm345, %v3116, 0
      %v3138 = vsel %vm345, %v3117, 0
      %v3141 = vsel %vm345, %v3118, 0
      %v3144 = vsel %vm345, %v3119, 0
      %v3147 = vsel %vm345, %v3120, 0
      %v3150 = vsel %vm345, %v3121, 0
      %v3153 = vsel %vm345, %v3122, 0
      %v3156 = vsel %vm345, %v3123, 0
      %v3159 = vsel %vm345, %v3124, 0
      %v3162 = vsel %vm345, %v3125, 0
      %v3165 = vsel %vm345, %v3126, 0
      %v3168 = vsel %vm345, %v3127, 0
      %v3171 = vsel %vm345, %v3128, 0
      %v3174 = vsel %vm345, %v3129, 0
      %v3177 = vsel %vm345, %v3130, 0
      %v3180 = vand.u32 %v3082, %v397
      %3182 = vmatpush.bf16.msra.mxu0 0
      %3183 = vmatpush.bf16.msra.mxu0 0
      %3184 = vmatpush.bf16.msra.mxu0 0
      %3185 = vmatpush.bf16.msra.mxu0 0
      %3186 = vmatpush.bf16.msra.mxu0 0
      %3187 = vmatpush.bf16.msra.mxu0 0
      %3188 = vmatpush.bf16.msra.mxu0 0
      %3189 = vmatpush.bf16.msra.mxu0 %v3180
      %3190 = vmatmul.bf16.gmra.mxu0 %v3132
      %v3191 = vpop.f32.mrf.mxu0
      %v3192 = vadd.f32 0.0, %v3191
      %v3193 = vpop.f32.mrf.mxu0
      %v3194 = vadd.f32 0.0, %v3193
      %3195 = vmatmul.bf16.gmra.mxu0 %v3135
      %v3196 = vpop.f32.mrf.mxu0
      %v3197 = vadd.f32 0.0, %v3196
      %v3198 = vpop.f32.mrf.mxu0
      %v3199 = vadd.f32 0.0, %v3198
      %3200 = vmatmul.bf16.gmra.mxu0 %v3138
      %v3201 = vpop.f32.mrf.mxu0
      %v3202 = vadd.f32 0.0, %v3201
      %v3203 = vpop.f32.mrf.mxu0
      %v3204 = vadd.f32 0.0, %v3203
      %3205 = vmatmul.bf16.gmra.mxu0 %v3141
      %v3206 = vpop.f32.mrf.mxu0
      %v3207 = vadd.f32 0.0, %v3206
      %v3208 = vpop.f32.mrf.mxu0
      %v3209 = vadd.f32 0.0, %v3208
      %3210 = vmatmul.bf16.gmra.mxu0 %v3144
      %v3211 = vpop.f32.mrf.mxu0
      %v3212 = vadd.f32 0.0, %v3211
      %v3213 = vpop.f32.mrf.mxu0
      %v3214 = vadd.f32 0.0, %v3213
      %3215 = vmatmul.bf16.gmra.mxu0 %v3147
      %v3216 = vpop.f32.mrf.mxu0
      %v3217 = vadd.f32 0.0, %v3216
      %v3218 = vpop.f32.mrf.mxu0
      %v3219 = vadd.f32 0.0, %v3218
      %3220 = vmatmul.bf16.gmra.mxu0 %v3150
      %v3221 = vpop.f32.mrf.mxu0
      %v3222 = vadd.f32 0.0, %v3221
      %v3223 = vpop.f32.mrf.mxu0
      %v3224 = vadd.f32 0.0, %v3223
      %3225 = vmatmul.bf16.gmra.mxu0 %v3153
      %v3226 = vpop.f32.mrf.mxu0
      %v3227 = vadd.f32 0.0, %v3226
      %v3228 = vpop.f32.mrf.mxu0
      %v3229 = vadd.f32 0.0, %v3228
      %3230 = vmatmul.bf16.gmra.mxu0 %v3156
      %v3231 = vpop.f32.mrf.mxu0
      %v3232 = vadd.f32 0.0, %v3231
      %v3233 = vpop.f32.mrf.mxu0
      %v3234 = vadd.f32 0.0, %v3233
      %3235 = vmatmul.bf16.gmra.mxu0 %v3159
      %v3236 = vpop.f32.mrf.mxu0
      %v3237 = vadd.f32 0.0, %v3236
      %v3238 = vpop.f32.mrf.mxu0
      %v3239 = vadd.f32 0.0, %v3238
      %3240 = vmatmul.bf16.gmra.mxu0 %v3162
      %v3241 = vpop.f32.mrf.mxu0
      %v3242 = vadd.f32 0.0, %v3241
      %v3243 = vpop.f32.mrf.mxu0
      %v3244 = vadd.f32 0.0, %v3243
      %3245 = vmatmul.bf16.gmra.mxu0 %v3165
      %v3246 = vpop.f32.mrf.mxu0
      %v3247 = vadd.f32 0.0, %v3246
      %v3248 = vpop.f32.mrf.mxu0
      %v3249 = vadd.f32 0.0, %v3248
      %3250 = vmatmul.bf16.gmra.mxu0 %v3168
      %v3251 = vpop.f32.mrf.mxu0
      %v3252 = vadd.f32 0.0, %v3251
      %v3253 = vpop.f32.mrf.mxu0
      %v3254 = vadd.f32 0.0, %v3253
      %3255 = vmatmul.bf16.gmra.mxu0 %v3171
      %v3256 = vpop.f32.mrf.mxu0
      %v3257 = vadd.f32 0.0, %v3256
      %v3258 = vpop.f32.mrf.mxu0
      %v3259 = vadd.f32 0.0, %v3258
      %3260 = vmatmul.bf16.gmra.mxu0 %v3174
      %v3261 = vpop.f32.mrf.mxu0
      %v3262 = vadd.f32 0.0, %v3261
      %v3263 = vpop.f32.mrf.mxu0
      %v3264 = vadd.f32 0.0, %v3263
      %3265 = vmatmul.bf16.gmra.mxu0 %v3177
      %v3266 = vpop.f32.mrf.mxu0
      %v3267 = vadd.f32 0.0, %v3266
      %v3268 = vpop.f32.mrf.mxu0
      %v3269 = vadd.f32 0.0, %v3268
      %3270 = vdwg.mxu0
      %v3271 = vadd.f32 %v3049, %v3192
      %v3272 = vadd.f32 %v3050, %v3194
      %v3273 = vadd.f32 %v3051, %v3197
      %v3274 = vadd.f32 %v3052, %v3199
      %v3275 = vadd.f32 %v3053, %v3202
      %v3276 = vadd.f32 %v3054, %v3204
      %v3277 = vadd.f32 %v3055, %v3207
      %v3278 = vadd.f32 %v3056, %v3209
      %v3279 = vadd.f32 %v3057, %v3212
      %v3280 = vadd.f32 %v3058, %v3214
      %v3281 = vadd.f32 %v3059, %v3217
      %v3282 = vadd.f32 %v3060, %v3219
      %v3283 = vadd.f32 %v3061, %v3222
      %v3284 = vadd.f32 %v3062, %v3224
      %v3285 = vadd.f32 %v3063, %v3227
      %v3286 = vadd.f32 %v3064, %v3229
      %v3287 = vadd.f32 %v3065, %v3232
      %v3288 = vadd.f32 %v3066, %v3234
      %v3289 = vadd.f32 %v3067, %v3237
      %v3290 = vadd.f32 %v3068, %v3239
      %v3291 = vadd.f32 %v3069, %v3242
      %v3292 = vadd.f32 %v3070, %v3244
      %v3293 = vadd.f32 %v3071, %v3247
      %v3294 = vadd.f32 %v3072, %v3249
      %v3295 = vadd.f32 %v3073, %v3252
      %v3296 = vadd.f32 %v3074, %v3254
      %v3297 = vadd.f32 %v3075, %v3257
      %v3298 = vadd.f32 %v3076, %v3259
      %v3299 = vadd.f32 %v3077, %v3262
      %v3300 = vadd.f32 %v3078, %v3264
      %v3301 = vadd.f32 %v3079, %v3267
      %v3302 = vadd.f32 %v3080, %v3269
      %3303 = vst [vmem:[#allocation2] sm:$0xff] %v3271
      %3304 = vst [vmem:[#allocation2 + $0x8] sm:$0xff] %v3272
      %3305 = vst [vmem:[#allocation2 + $0x10] sm:$0xff] %v3273
      %3306 = vst [vmem:[#allocation2 + $0x18] sm:$0xff] %v3274
      %3307 = vst [vmem:[#allocation2 + $0x20] sm:$0xff] %v3275
      %3308 = vst [vmem:[#allocation2 + $0x28] sm:$0xff] %v3276
      %3309 = vst [vmem:[#allocation2 + $0x30] sm:$0xff] %v3277
      %3310 = vst [vmem:[#allocation2 + $0x38] sm:$0xff] %v3278
      %3311 = vst [vmem:[#allocation2 + $0x40] sm:$0xff] %v3279
      %3312 = vst [vmem:[#allocation2 + $0x48] sm:$0xff] %v3280
      %3313 = vst [vmem:[#allocation2 + $0x50] sm:$0xff] %v3281
      %3314 = vst [vmem:[#allocation2 + $0x58] sm:$0xff] %v3282
      %3315 = vst [vmem:[#allocation2 + $0x60] sm:$0xff] %v3283
      %3316 = vst [vmem:[#allocation2 + $0x68] sm:$0xff] %v3284
      %3317 = vst [vmem:[#allocation2 + $0x70] sm:$0xff] %v3285
      %3318 = vst [vmem:[#allocation2 + $0x78] sm:$0xff] %v3286
      %3319 = vst [vmem:[#allocation2 + $0x80] sm:$0xff] %v3287
      %3320 = vst [vmem:[#allocation2 + $0x88] sm:$0xff] %v3288
      %3321 = vst [vmem:[#allocation2 + $0x90] sm:$0xff] %v3289
      %3322 = vst [vmem:[#allocation2 + $0x98] sm:$0xff] %v3290
      %3323 = vst [vmem:[#allocation2 + $0xa0] sm:$0xff] %v3291
      %3324 = vst [vmem:[#allocation2 + $0xa8] sm:$0xff] %v3292
      %3325 = vst [vmem:[#allocation2 + $0xb0] sm:$0xff] %v3293
      %3326 = vst [vmem:[#allocation2 + $0xb8] sm:$0xff] %v3294
      %3327 = vst [vmem:[#allocation2 + $0xc0] sm:$0xff] %v3295
      %3328 = vst [vmem:[#allocation2 + $0xc8] sm:$0xff] %v3296
      %3329 = vst [vmem:[#allocation2 + $0xd0] sm:$0xff] %v3297
      %3330 = vst [vmem:[#allocation2 + $0xd8] sm:$0xff] %v3298
      %3331 = vst [vmem:[#allocation2 + $0xe0] sm:$0xff] %v3299
      %3332 = vst [vmem:[#allocation2 + $0xe8] sm:$0xff] %v3300
      %3333 = vst [vmem:[#allocation2 + $0xf0] sm:$0xff] %v3301
      %3334 = vst [vmem:[#allocation2 + $0xf8] sm:$0xff] %v3302
      %s3335 = scalar_lea.vmem %s163, 24
      %v3336 = vld [vmem:[%s3335] sm:$0xf]
      %v3337 = vld [vmem:[%s3335 + $0x4] sm:$0xf]
      %v3338 = vld [vmem:[%s3335 + $0xc] sm:$0xf]
      %v3339 = vld [vmem:[%s3335 + $0x10] sm:$0xf]
      %v3340 = vld [vmem:[%s3335 + $0x18] sm:$0xf]
      %v3341 = vld [vmem:[%s3335 + $0x1c] sm:$0xf]
      %v3342 = vld [vmem:[%s3335 + $0x24] sm:$0xf]
      %v3343 = vld [vmem:[%s3335 + $0x28] sm:$0xf]
      %v3344 = vld [vmem:[%s3335 + $0x30] sm:$0xf]
      %v3345 = vld [vmem:[%s3335 + $0x34] sm:$0xf]
      %v3346 = vld [vmem:[%s3335 + $0x3c] sm:$0xf]
      %v3347 = vld [vmem:[%s3335 + $0x40] sm:$0xf]
      %v3348 = vld [vmem:[%s3335 + $0x48] sm:$0xf]
      %v3349 = vld [vmem:[%s3335 + $0x4c] sm:$0xf]
      %v3350 = vld [vmem:[%s3335 + $0x54] sm:$0xf]
      %v3351 = vld [vmem:[%s3335 + $0x58] sm:$0xf]
      %v3352 = vld [vmem:[%s3335 + $0x60] sm:$0xf]
      %v3353 = vld [vmem:[%s3335 + $0x64] sm:$0xf]
      %v3354 = vld [vmem:[%s3335 + $0x6c] sm:$0xf]
      %v3355 = vld [vmem:[%s3335 + $0x70] sm:$0xf]
      %v3356 = vld [vmem:[%s3335 + $0x78] sm:$0xf]
      %v3357 = vld [vmem:[%s3335 + $0x7c] sm:$0xf]
      %v3358 = vld [vmem:[%s3335 + $0x84] sm:$0xf]
      %v3359 = vld [vmem:[%s3335 + $0x88] sm:$0xf]
      %v3360 = vld [vmem:[%s3335 + $0x90] sm:$0xf]
      %v3361 = vld [vmem:[%s3335 + $0x94] sm:$0xf]
      %v3362 = vld [vmem:[%s3335 + $0x9c] sm:$0xf]
      %v3363 = vld [vmem:[%s3335 + $0xa0] sm:$0xf]
      %v3364 = vld [vmem:[%s3335 + $0xa8] sm:$0xf]
      %v3365 = vld [vmem:[%s3335 + $0xac] sm:$0xf]
      %v3366 = vld [vmem:[%s3335 + $0xb4] sm:$0xf]
      %v3367 = vld [vmem:[%s3335 + $0xb8] sm:$0xf]
      %v3368 = vld [vmem:[#allocation2] sm:$0xff]
      %v3369 = vld [vmem:[#allocation2 + $0x8] sm:$0xff]
      %v3370 = vld [vmem:[#allocation2 + $0x10] sm:$0xff]
      %v3371 = vld [vmem:[#allocation2 + $0x18] sm:$0xff]
      %v3372 = vld [vmem:[#allocation2 + $0x20] sm:$0xff]
      %v3373 = vld [vmem:[#allocation2 + $0x28] sm:$0xff]
      %v3374 = vld [vmem:[#allocation2 + $0x30] sm:$0xff]
      %v3375 = vld [vmem:[#allocation2 + $0x38] sm:$0xff]
      %v3376 = vld [vmem:[#allocation2 + $0x40] sm:$0xff]
      %v3377 = vld [vmem:[#allocation2 + $0x48] sm:$0xff]
      %v3378 = vld [vmem:[#allocation2 + $0x50] sm:$0xff]
      %v3379 = vld [vmem:[#allocation2 + $0x58] sm:$0xff]
      %v3380 = vld [vmem:[#allocation2 + $0x60] sm:$0xff]
      %v3381 = vld [vmem:[#allocation2 + $0x68] sm:$0xff]
      %v3382 = vld [vmem:[#allocation2 + $0x70] sm:$0xff]
      %v3383 = vld [vmem:[#allocation2 + $0x78] sm:$0xff]
      %v3384 = vld [vmem:[#allocation2 + $0x80] sm:$0xff]
      %v3385 = vld [vmem:[#allocation2 + $0x88] sm:$0xff]
      %v3386 = vld [vmem:[#allocation2 + $0x90] sm:$0xff]
      %v3387 = vld [vmem:[#allocation2 + $0x98] sm:$0xff]
      %v3388 = vld [vmem:[#allocation2 + $0xa0] sm:$0xff]
      %v3389 = vld [vmem:[#allocation2 + $0xa8] sm:$0xff]
      %v3390 = vld [vmem:[#allocation2 + $0xb0] sm:$0xff]
      %v3391 = vld [vmem:[#allocation2 + $0xb8] sm:$0xff]
      %v3392 = vld [vmem:[#allocation2 + $0xc0] sm:$0xff]
      %v3393 = vld [vmem:[#allocation2 + $0xc8] sm:$0xff]
      %v3394 = vld [vmem:[#allocation2 + $0xd0] sm:$0xff]
      %v3395 = vld [vmem:[#allocation2 + $0xd8] sm:$0xff]
      %v3396 = vld [vmem:[#allocation2 + $0xe0] sm:$0xff]
      %v3397 = vld [vmem:[#allocation2 + $0xe8] sm:$0xff]
      %v3398 = vld [vmem:[#allocation2 + $0xf0] sm:$0xff]
      %v3399 = vld [vmem:[#allocation2 + $0xf8] sm:$0xff]
      %s3400 = scalar_lea.vmem %s1, 12
      %v3401 = vld [vmem:[%s3400] sm:$0x3]
      %v3434 = vunpack.c.l.b16 %v3336
      %v3435 = vunpack.c.l.b16 %v3337
      %v3436 = vunpack.c.l.b16 %v3338
      %v3437 = vunpack.c.l.b16 %v3339
      %v3438 = vunpack.c.l.b16 %v3340
      %v3439 = vunpack.c.l.b16 %v3341
      %v3440 = vunpack.c.l.b16 %v3342
      %v3441 = vunpack.c.l.b16 %v3343
      %v3442 = vunpack.c.l.b16 %v3344
      %v3443 = vunpack.c.l.b16 %v3345
      %v3444 = vunpack.c.l.b16 %v3346
      %v3445 = vunpack.c.l.b16 %v3347
      %v3446 = vunpack.c.l.b16 %v3348
      %v3447 = vunpack.c.l.b16 %v3349
      %v3448 = vunpack.c.l.b16 %v3350
      %v3449 = vunpack.c.l.b16 %v3351
      %v3450 = vunpack.c.l.b16 %v3352
      %v3451 = vunpack.c.l.b16 %v3353
      %v3452 = vunpack.c.l.b16 %v3354
      %v3453 = vunpack.c.l.b16 %v3355
      %v3454 = vunpack.c.l.b16 %v3356
      %v3455 = vunpack.c.l.b16 %v3357
      %v3456 = vunpack.c.l.b16 %v3358
      %v3457 = vunpack.c.l.b16 %v3359
      %v3458 = vunpack.c.l.b16 %v3360
      %v3459 = vunpack.c.l.b16 %v3361
      %v3460 = vunpack.c.l.b16 %v3362
      %v3461 = vunpack.c.l.b16 %v3363
      %v3462 = vunpack.c.l.b16 %v3364
      %v3463 = vunpack.c.l.b16 %v3365
      %v3464 = vunpack.c.l.b16 %v3366
      %v3465 = vunpack.c.l.b16 %v3367
      %v3466 = vpack.c.b16 %v3435, %v3434
      %v3467 = vpack.c.b16 %v3437, %v3436
      %v3468 = vpack.c.b16 %v3439, %v3438
      %v3469 = vpack.c.b16 %v3441, %v3440
      %v3470 = vpack.c.b16 %v3443, %v3442
      %v3471 = vpack.c.b16 %v3445, %v3444
      %v3472 = vpack.c.b16 %v3447, %v3446
      %v3473 = vpack.c.b16 %v3449, %v3448
      %v3474 = vpack.c.b16 %v3451, %v3450
      %v3475 = vpack.c.b16 %v3453, %v3452
      %v3476 = vpack.c.b16 %v3455, %v3454
      %v3477 = vpack.c.b16 %v3457, %v3456
      %v3478 = vpack.c.b16 %v3459, %v3458
      %v3479 = vpack.c.b16 %v3461, %v3460
      %v3480 = vpack.c.b16 %v3463, %v3462
      %v3481 = vpack.c.b16 %v3465, %v3464
      %v3483 = vsel %vm345, %v3466, 0
      %v3486 = vsel %vm345, %v3467, 0
      %v3489 = vsel %vm345, %v3468, 0
      %v3492 = vsel %vm345, %v3469, 0
      %v3495 = vsel %vm345, %v3470, 0
      %v3498 = vsel %vm345, %v3471, 0
      %v3501 = vsel %vm345, %v3472, 0
      %v3504 = vsel %vm345, %v3473, 0
      %v3507 = vsel %vm345, %v3474, 0
      %v3510 = vsel %vm345, %v3475, 0
      %v3513 = vsel %vm345, %v3476, 0
      %v3516 = vsel %vm345, %v3477, 0
      %v3519 = vsel %vm345, %v3478, 0
      %v3522 = vsel %vm345, %v3479, 0
      %v3525 = vsel %vm345, %v3480, 0
      %v3528 = vsel %vm345, %v3481, 0
      %v3531 = vand.u32 %v3401, %v397
      %3533 = vmatpush.bf16.msra.mxu0 0
      %3534 = vmatpush.bf16.msra.mxu0 0
      %3535 = vmatpush.bf16.msra.mxu0 0
      %3536 = vmatpush.bf16.msra.mxu0 0
      %3537 = vmatpush.bf16.msra.mxu0 0
      %3538 = vmatpush.bf16.msra.mxu0 0
      %3539 = vmatpush.bf16.msra.mxu0 0
      %3540 = vmatpush.bf16.msra.mxu0 %v3531
      %3541 = vmatmul.bf16.gmra.mxu0 %v3483
      %v3542 = vpop.f32.mrf.mxu0
      %v3543 = vadd.f32 0.0, %v3542
      %v3544 = vpop.f32.mrf.mxu0
      %v3545 = vadd.f32 0.0, %v3544
      %3546 = vmatmul.bf16.gmra.mxu0 %v3486
      %v3547 = vpop.f32.mrf.mxu0
      %v3548 = vadd.f32 0.0, %v3547
      %v3549 = vpop.f32.mrf.mxu0
      %v3550 = vadd.f32 0.0, %v3549
      %3551 = vmatmul.bf16.gmra.mxu0 %v3489
      %v3552 = vpop.f32.mrf.mxu0
      %v3553 = vadd.f32 0.0, %v3552
      %v3554 = vpop.f32.mrf.mxu0
      %v3555 = vadd.f32 0.0, %v3554
      %3556 = vmatmul.bf16.gmra.mxu0 %v3492
      %v3557 = vpop.f32.mrf.mxu0
      %v3558 = vadd.f32 0.0, %v3557
      %v3559 = vpop.f32.mrf.mxu0
      %v3560 = vadd.f32 0.0, %v3559
      %3561 = vmatmul.bf16.gmra.mxu0 %v3495
      %v3562 = vpop.f32.mrf.mxu0
      %v3563 = vadd.f32 0.0, %v3562
      %v3564 = vpop.f32.mrf.mxu0
      %v3565 = vadd.f32 0.0, %v3564
      %3566 = vmatmul.bf16.gmra.mxu0 %v3498
      %v3567 = vpop.f32.mrf.mxu0
      %v3568 = vadd.f32 0.0, %v3567
      %v3569 = vpop.f32.mrf.mxu0
      %v3570 = vadd.f32 0.0, %v3569
      %3571 = vmatmul.bf16.gmra.mxu0 %v3501
      %v3572 = vpop.f32.mrf.mxu0
      %v3573 = vadd.f32 0.0, %v3572
      %v3574 = vpop.f32.mrf.mxu0
      %v3575 = vadd.f32 0.0, %v3574
      %3576 = vmatmul.bf16.gmra.mxu0 %v3504
      %v3577 = vpop.f32.mrf.mxu0
      %v3578 = vadd.f32 0.0, %v3577
      %v3579 = vpop.f32.mrf.mxu0
      %v3580 = vadd.f32 0.0, %v3579
      %3581 = vmatmul.bf16.gmra.mxu0 %v3507
      %v3582 = vpop.f32.mrf.mxu0
      %v3583 = vadd.f32 0.0, %v3582
      %v3584 = vpop.f32.mrf.mxu0
      %v3585 = vadd.f32 0.0, %v3584
      %3586 = vmatmul.bf16.gmra.mxu0 %v3510
      %v3587 = vpop.f32.mrf.mxu0
      %v3588 = vadd.f32 0.0, %v3587
      %v3589 = vpop.f32.mrf.mxu0
      %v3590 = vadd.f32 0.0, %v3589
      %3591 = vmatmul.bf16.gmra.mxu0 %v3513
      %v3592 = vpop.f32.mrf.mxu0
      %v3593 = vadd.f32 0.0, %v3592
      %v3594 = vpop.f32.mrf.mxu0
      %v3595 = vadd.f32 0.0, %v3594
      %3596 = vmatmul.bf16.gmra.mxu0 %v3516
      %v3597 = vpop.f32.mrf.mxu0
      %v3598 = vadd.f32 0.0, %v3597
      %v3599 = vpop.f32.mrf.mxu0
      %v3600 = vadd.f32 0.0, %v3599
      %3601 = vmatmul.bf16.gmra.mxu0 %v3519
      %v3602 = vpop.f32.mrf.mxu0
      %v3603 = vadd.f32 0.0, %v3602
      %v3604 = vpop.f32.mrf.mxu0
      %v3605 = vadd.f32 0.0, %v3604
      %3606 = vmatmul.bf16.gmra.mxu0 %v3522
      %v3607 = vpop.f32.mrf.mxu0
      %v3608 = vadd.f32 0.0, %v3607
      %v3609 = vpop.f32.mrf.mxu0
      %v3610 = vadd.f32 0.0, %v3609
      %3611 = vmatmul.bf16.gmra.mxu0 %v3525
      %v3612 = vpop.f32.mrf.mxu0
      %v3613 = vadd.f32 0.0, %v3612
      %v3614 = vpop.f32.mrf.mxu0
      %v3615 = vadd.f32 0.0, %v3614
      %3616 = vmatmul.bf16.gmra.mxu0 %v3528
      %v3617 = vpop.f32.mrf.mxu0
      %v3618 = vadd.f32 0.0, %v3617
      %v3619 = vpop.f32.mrf.mxu0
      %v3620 = vadd.f32 0.0, %v3619
      %3621 = vdwg.mxu0
      %v3622 = vadd.f32 %v3368, %v3543
      %v3623 = vadd.f32 %v3369, %v3545
      %v3624 = vadd.f32 %v3370, %v3548
      %v3625 = vadd.f32 %v3371, %v3550
      %v3626 = vadd.f32 %v3372, %v3553
      %v3627 = vadd.f32 %v3373, %v3555
      %v3628 = vadd.f32 %v3374, %v3558
      %v3629 = vadd.f32 %v3375, %v3560
      %v3630 = vadd.f32 %v3376, %v3563
      %v3631 = vadd.f32 %v3377, %v3565
      %v3632 = vadd.f32 %v3378, %v3568
      %v3633 = vadd.f32 %v3379, %v3570
      %v3634 = vadd.f32 %v3380, %v3573
      %v3635 = vadd.f32 %v3381, %v3575
      %v3636 = vadd.f32 %v3382, %v3578
      %v3637 = vadd.f32 %v3383, %v3580
      %v3638 = vadd.f32 %v3384, %v3583
      %v3639 = vadd.f32 %v3385, %v3585
      %v3640 = vadd.f32 %v3386, %v3588
      %v3641 = vadd.f32 %v3387, %v3590
      %v3642 = vadd.f32 %v3388, %v3593
      %v3643 = vadd.f32 %v3389, %v3595
      %v3644 = vadd.f32 %v3390, %v3598
      %v3645 = vadd.f32 %v3391, %v3600
      %v3646 = vadd.f32 %v3392, %v3603
      %v3647 = vadd.f32 %v3393, %v3605
      %v3648 = vadd.f32 %v3394, %v3608
      %v3649 = vadd.f32 %v3395, %v3610
      %v3650 = vadd.f32 %v3396, %v3613
      %v3651 = vadd.f32 %v3397, %v3615
      %v3652 = vadd.f32 %v3398, %v3618
      %v3653 = vadd.f32 %v3399, %v3620
      %3654 = vst [vmem:[#allocation2] sm:$0xff] %v3622
      %3655 = vst [vmem:[#allocation2 + $0x8] sm:$0xff] %v3623
      %3656 = vst [vmem:[#allocation2 + $0x10] sm:$0xff] %v3624
      %3657 = vst [vmem:[#allocation2 + $0x18] sm:$0xff] %v3625
      %3658 = vst [vmem:[#allocation2 + $0x20] sm:$0xff] %v3626
      %3659 = vst [vmem:[#allocation2 + $0x28] sm:$0xff] %v3627
      %3660 = vst [vmem:[#allocation2 + $0x30] sm:$0xff] %v3628
      %3661 = vst [vmem:[#allocation2 + $0x38] sm:$0xff] %v3629
      %3662 = vst [vmem:[#allocation2 + $0x40] sm:$0xff] %v3630
      %3663 = vst [vmem:[#allocation2 + $0x48] sm:$0xff] %v3631
      %3664 = vst [vmem:[#allocation2 + $0x50] sm:$0xff] %v3632
      %3665 = vst [vmem:[#allocation2 + $0x58] sm:$0xff] %v3633
      %3666 = vst [vmem:[#allocation2 + $0x60] sm:$0xff] %v3634
      %3667 = vst [vmem:[#allocation2 + $0x68] sm:$0xff] %v3635
      %3668 = vst [vmem:[#allocation2 + $0x70] sm:$0xff] %v3636
      %3669 = vst [vmem:[#allocation2 + $0x78] sm:$0xff] %v3637
      %3670 = vst [vmem:[#allocation2 + $0x80] sm:$0xff] %v3638
      %3671 = vst [vmem:[#allocation2 + $0x88] sm:$0xff] %v3639
      %3672 = vst [vmem:[#allocation2 + $0x90] sm:$0xff] %v3640
      %3673 = vst [vmem:[#allocation2 + $0x98] sm:$0xff] %v3641
      %3674 = vst [vmem:[#allocation2 + $0xa0] sm:$0xff] %v3642
      %3675 = vst [vmem:[#allocation2 + $0xa8] sm:$0xff] %v3643
      %3676 = vst [vmem:[#allocation2 + $0xb0] sm:$0xff] %v3644
      %3677 = vst [vmem:[#allocation2 + $0xb8] sm:$0xff] %v3645
      %3678 = vst [vmem:[#allocation2 + $0xc0] sm:$0xff] %v3646
      %3679 = vst [vmem:[#allocation2 + $0xc8] sm:$0xff] %v3647
      %3680 = vst [vmem:[#allocation2 + $0xd0] sm:$0xff] %v3648
      %3681 = vst [vmem:[#allocation2 + $0xd8] sm:$0xff] %v3649
      %3682 = vst [vmem:[#allocation2 + $0xe0] sm:$0xff] %v3650
      %3683 = vst [vmem:[#allocation2 + $0xe8] sm:$0xff] %v3651
      %3684 = vst [vmem:[#allocation2 + $0xf0] sm:$0xff] %v3652
      %3685 = vst [vmem:[#allocation2 + $0xf8] sm:$0xff] %v3653
      %v3686 = vld [vmem:[%s3335] sm:$0xf]
      %v3687 = vld [vmem:[%s3335 + $0x4] sm:$0xf]
      %v3688 = vld [vmem:[%s3335 + $0x8] sm:$0x1]
      %v3689 = vld [vmem:[%s3335 + $0xc] sm:$0xf]
      %v3690 = vld [vmem:[%s3335 + $0x10] sm:$0xf]
      %v3691 = vld [vmem:[%s3335 + $0x14] sm:$0x1]
      %v3692 = vld [vmem:[%s3335 + $0x18] sm:$0xf]
      %v3693 = vld [vmem:[%s3335 + $0x1c] sm:$0xf]
      %v3694 = vld [vmem:[%s3335 + $0x20] sm:$0x1]
      %v3695 = vld [vmem:[%s3335 + $0x24] sm:$0xf]
      %v3696 = vld [vmem:[%s3335 + $0x28] sm:$0xf]
      %v3697 = vld [vmem:[%s3335 + $0x2c] sm:$0x1]
      %v3698 = vld [vmem:[%s3335 + $0x30] sm:$0xf]
      %v3699 = vld [vmem:[%s3335 + $0x34] sm:$0xf]
      %v3700 = vld [vmem:[%s3335 + $0x38] sm:$0x1]
      %v3701 = vld [vmem:[%s3335 + $0x3c] sm:$0xf]
      %v3702 = vld [vmem:[%s3335 + $0x40] sm:$0xf]
      %v3703 = vld [vmem:[%s3335 + $0x44] sm:$0x1]
      %v3704 = vld [vmem:[%s3335 + $0x48] sm:$0xf]
      %v3705 = vld [vmem:[%s3335 + $0x4c] sm:$0xf]
      %v3706 = vld [vmem:[%s3335 + $0x50] sm:$0x1]
      %v3707 = vld [vmem:[%s3335 + $0x54] sm:$0xf]
      %v3708 = vld [vmem:[%s3335 + $0x58] sm:$0xf]
      %v3709 = vld [vmem:[%s3335 + $0x5c] sm:$0x1]
      %v3710 = vld [vmem:[%s3335 + $0x60] sm:$0xf]
      %v3711 = vld [vmem:[%s3335 + $0x64] sm:$0xf]
      %v3712 = vld [vmem:[%s3335 + $0x68] sm:$0x1]
      %v3713 = vld [vmem:[%s3335 + $0x6c] sm:$0xf]
      %v3714 = vld [vmem:[%s3335 + $0x70] sm:$0xf]
      %v3715 = vld [vmem:[%s3335 + $0x74] sm:$0x1]
      %v3716 = vld [vmem:[%s3335 + $0x78] sm:$0xf]
      %v3717 = vld [vmem:[%s3335 + $0x7c] sm:$0xf]
      %v3718 = vld [vmem:[%s3335 + $0x80] sm:$0x1]
      %v3719 = vld [vmem:[%s3335 + $0x84] sm:$0xf]
      %v3720 = vld [vmem:[%s3335 + $0x88] sm:$0xf]
      %v3721 = vld [vmem:[%s3335 + $0x8c] sm:$0x1]
      %v3722 = vld [vmem:[%s3335 + $0x90] sm:$0xf]
      %v3723 = vld [vmem:[%s3335 + $0x94] sm:$0xf]
      %v3724 = vld [vmem:[%s3335 + $0x98] sm:$0x1]
      %v3725 = vld [vmem:[%s3335 + $0x9c] sm:$0xf]
      %v3726 = vld [vmem:[%s3335 + $0xa0] sm:$0xf]
      %v3727 = vld [vmem:[%s3335 + $0xa4] sm:$0x1]
      %v3728 = vld [vmem:[%s3335 + $0xa8] sm:$0xf]
      %v3729 = vld [vmem:[%s3335 + $0xac] sm:$0xf]
      %v3730 = vld [vmem:[%s3335 + $0xb0] sm:$0x1]
      %v3731 = vld [vmem:[%s3335 + $0xb4] sm:$0xf]
      %v3732 = vld [vmem:[%s3335 + $0xb8] sm:$0xf]
      %v3733 = vld [vmem:[%s3335 + $0xbc] sm:$0x1]
      %v3735 = vshrl.u32 %v3686, 16
      %v3737 = vrot.slane %v3735, 4
      %v3738 = vshll.u32 %v3686, 16
      %v3740 = vrot.slane %v3738, 5
      %v3741 = vor.u32 %v3737, %v3740
      %v3742 = vrot.slane %v3741, 4
      %v3744 = vshll.u32 %v3687, 16
      %v3746 = vrot.slane %v3744, 5
      %v3747 = vsel %vm604, %v3742, %v3746
      %v3748 = vshrl.u32 %v3687, 16
      %v3750 = vrot.slane %v3748, 4
      %v3751 = vor.u32 %v3750, %v3746
      %v3752 = vrot.slane %v3751, 4
      %v3754 = vshll.u32 %v3688, 16
      %v3756 = vrot.slane %v3754, 5
      %v3757 = vsel %vm604, %v3752, %v3756
      %v3759 = vshrl.u32 %v3689, 16
      %v3761 = vrot.slane %v3759, 4
      %v3762 = vshll.u32 %v3689, 16
      %v3764 = vrot.slane %v3762, 5
      %v3765 = vor.u32 %v3761, %v3764
      %v3766 = vrot.slane %v3765, 4
      %v3768 = vshll.u32 %v3690, 16
      %v3770 = vrot.slane %v3768, 5
      %v3771 = vsel %vm604, %v3766, %v3770
      %v3772 = vshrl.u32 %v3690, 16
      %v3774 = vrot.slane %v3772, 4
      %v3775 = vor.u32 %v3774, %v3770
      %v3776 = vrot.slane %v3775, 4
      %v3778 = vshll.u32 %v3691, 16
      %v3780 = vrot.slane %v3778, 5
      %v3781 = vsel %vm604, %v3776, %v3780
      %v3783 = vshrl.u32 %v3692, 16
      %v3785 = vrot.slane %v3783, 4
      %v3786 = vshll.u32 %v3692, 16
      %v3788 = vrot.slane %v3786, 5
      %v3789 = vor.u32 %v3785, %v3788
      %v3790 = vrot.slane %v3789, 4
      %v3792 = vshll.u32 %v3693, 16
      %v3794 = vrot.slane %v3792, 5
      %v3795 = vsel %vm604, %v3790, %v3794
      %v3796 = vshrl.u32 %v3693, 16
      %v3798 = vrot.slane %v3796, 4
      %v3799 = vor.u32 %v3798, %v3794
      %v3800 = vrot.slane %v3799, 4
      %v3802 = vshll.u32 %v3694, 16
      %v3804 = vrot.slane %v3802, 5
      %v3805 = vsel %vm604, %v3800, %v3804
      %v3807 = vshrl.u32 %v3695, 16
      %v3809 = vrot.slane %v3807, 4
      %v3810 = vshll.u32 %v3695, 16
      %v3812 = vrot.slane %v3810, 5
      %v3813 = vor.u32 %v3809, %v3812
      %v3814 = vrot.slane %v3813, 4
      %v3816 = vshll.u32 %v3696, 16
      %v3818 = vrot.slane %v3816, 5
      %v3819 = vsel %vm604, %v3814, %v3818
      %v3820 = vshrl.u32 %v3696, 16
      %v3822 = vrot.slane %v3820, 4
      %v3823 = vor.u32 %v3822, %v3818
      %v3824 = vrot.slane %v3823, 4
      %v3826 = vshll.u32 %v3697, 16
      %v3828 = vrot.slane %v3826, 5
      %v3829 = vsel %vm604, %v3824, %v3828
      %v3831 = vshrl.u32 %v3698, 16
      %v3833 = vrot.slane %v3831, 4
      %v3834 = vshll.u32 %v3698, 16
      %v3836 = vrot.slane %v3834, 5
      %v3837 = vor.u32 %v3833, %v3836
      %v3838 = vrot.slane %v3837, 4
      %v3840 = vshll.u32 %v3699, 16
      %v3842 = vrot.slane %v3840, 5
      %v3843 = vsel %vm604, %v3838, %v3842
      %v3844 = vshrl.u32 %v3699, 16
      %v3846 = vrot.slane %v3844, 4
      %v3847 = vor.u32 %v3846, %v3842
      %v3848 = vrot.slane %v3847, 4
      %v3850 = vshll.u32 %v3700, 16
      %v3852 = vrot.slane %v3850, 5
      %v3853 = vsel %vm604, %v3848, %v3852
      %v3855 = vshrl.u32 %v3701, 16
      %v3857 = vrot.slane %v3855, 4
      %v3858 = vshll.u32 %v3701, 16
      %v3860 = vrot.slane %v3858, 5
      %v3861 = vor.u32 %v3857, %v3860
      %v3862 = vrot.slane %v3861, 4
      %v3864 = vshll.u32 %v3702, 16
      %v3866 = vrot.slane %v3864, 5
      %v3867 = vsel %vm604, %v3862, %v3866
      %v3868 = vshrl.u32 %v3702, 16
      %v3870 = vrot.slane %v3868, 4
      %v3871 = vor.u32 %v3870, %v3866
      %v3872 = vrot.slane %v3871, 4
      %v3874 = vshll.u32 %v3703, 16
      %v3876 = vrot.slane %v3874, 5
      %v3877 = vsel %vm604, %v3872, %v3876
      %v3879 = vshrl.u32 %v3704, 16
      %v3881 = vrot.slane %v3879, 4
      %v3882 = vshll.u32 %v3704, 16
      %v3884 = vrot.slane %v3882, 5
      %v3885 = vor.u32 %v3881, %v3884
      %v3886 = vrot.slane %v3885, 4
      %v3888 = vshll.u32 %v3705, 16
      %v3890 = vrot.slane %v3888, 5
      %v3891 = vsel %vm604, %v3886, %v3890
      %v3892 = vshrl.u32 %v3705, 16
      %v3894 = vrot.slane %v3892, 4
      %v3895 = vor.u32 %v3894, %v3890
      %v3896 = vrot.slane %v3895, 4
      %v3898 = vshll.u32 %v3706, 16
      %v3900 = vrot.slane %v3898, 5
      %v3901 = vsel %vm604, %v3896, %v3900
      %v3903 = vshrl.u32 %v3707, 16
      %v3905 = vrot.slane %v3903, 4
      %v3906 = vshll.u32 %v3707, 16
      %v3908 = vrot.slane %v3906, 5
      %v3909 = vor.u32 %v3905, %v3908
      %v3910 = vrot.slane %v3909, 4
      %v3912 = vshll.u32 %v3708, 16
      %v3914 = vrot.slane %v3912, 5
      %v3915 = vsel %vm604, %v3910, %v3914
      %v3916 = vshrl.u32 %v3708, 16
      %v3918 = vrot.slane %v3916, 4
      %v3919 = vor.u32 %v3918, %v3914
      %v3920 = vrot.slane %v3919, 4
      %v3922 = vshll.u32 %v3709, 16
      %v3924 = vrot.slane %v3922, 5
      %v3925 = vsel %vm604, %v3920, %v3924
      %v3927 = vshrl.u32 %v3710, 16
      %v3929 = vrot.slane %v3927, 4
      %v3930 = vshll.u32 %v3710, 16
      %v3932 = vrot.slane %v3930, 5
      %v3933 = vor.u32 %v3929, %v3932
      %v3934 = vrot.slane %v3933, 4
      %v3936 = vshll.u32 %v3711, 16
      %v3938 = vrot.slane %v3936, 5
      %v3939 = vsel %vm604, %v3934, %v3938
      %v3940 = vshrl.u32 %v3711, 16
      %v3942 = vrot.slane %v3940, 4
      %v3943 = vor.u32 %v3942, %v3938
      %v3944 = vrot.slane %v3943, 4
      %v3946 = vshll.u32 %v3712, 16
      %v3948 = vrot.slane %v3946, 5
      %v3949 = vsel %vm604, %v3944, %v3948
      %v3951 = vshrl.u32 %v3713, 16
      %v3953 = vrot.slane %v3951, 4
      %v3954 = vshll.u32 %v3713, 16
      %v3956 = vrot.slane %v3954, 5
      %v3957 = vor.u32 %v3953, %v3956
      %v3958 = vrot.slane %v3957, 4
      %v3960 = vshll.u32 %v3714, 16
      %v3962 = vrot.slane %v3960, 5
      %v3963 = vsel %vm604, %v3958, %v3962
      %v3964 = vshrl.u32 %v3714, 16
      %v3966 = vrot.slane %v3964, 4
      %v3967 = vor.u32 %v3966, %v3962
      %v3968 = vrot.slane %v3967, 4
      %v3970 = vshll.u32 %v3715, 16
      %v3972 = vrot.slane %v3970, 5
      %v3973 = vsel %vm604, %v3968, %v3972
      %v3975 = vshrl.u32 %v3716, 16
      %v3977 = vrot.slane %v3975, 4
      %v3978 = vshll.u32 %v3716, 16
      %v3980 = vrot.slane %v3978, 5
      %v3981 = vor.u32 %v3977, %v3980
      %v3982 = vrot.slane %v3981, 4
      %v3984 = vshll.u32 %v3717, 16
      %v3986 = vrot.slane %v3984, 5
      %v3987 = vsel %vm604, %v3982, %v3986
      %v3988 = vshrl.u32 %v3717, 16
      %v3990 = vrot.slane %v3988, 4
      %v3991 = vor.u32 %v3990, %v3986
      %v3992 = vrot.slane %v3991, 4
      %v3994 = vshll.u32 %v3718, 16
      %v3996 = vrot.slane %v3994, 5
      %v3997 = vsel %vm604, %v3992, %v3996
      %v3999 = vshrl.u32 %v3719, 16
      %v4001 = vrot.slane %v3999, 4
      %v4002 = vshll.u32 %v3719, 16
      %v4004 = vrot.slane %v4002, 5
      %v4005 = vor.u32 %v4001, %v4004
      %v4006 = vrot.slane %v4005, 4
      %v4008 = vshll.u32 %v3720, 16
      %v4010 = vrot.slane %v4008, 5
      %v4011 = vsel %vm604, %v4006, %v4010
      %v4012 = vshrl.u32 %v3720, 16
      %v4014 = vrot.slane %v4012, 4
      %v4015 = vor.u32 %v4014, %v4010
      %v4016 = vrot.slane %v4015, 4
      %v4018 = vshll.u32 %v3721, 16
      %v4020 = vrot.slane %v4018, 5
      %v4021 = vsel %vm604, %v4016, %v4020
      %v4023 = vshrl.u32 %v3722, 16
      %v4025 = vrot.slane %v4023, 4
      %v4026 = vshll.u32 %v3722, 16
      %v4028 = vrot.slane %v4026, 5
      %v4029 = vor.u32 %v4025, %v4028
      %v4030 = vrot.slane %v4029, 4
      %v4032 = vshll.u32 %v3723, 16
      %v4034 = vrot.slane %v4032, 5
      %v4035 = vsel %vm604, %v4030, %v4034
      %v4036 = vshrl.u32 %v3723, 16
      %v4038 = vrot.slane %v4036, 4
      %v4039 = vor.u32 %v4038, %v4034
      %v4040 = vrot.slane %v4039, 4
      %v4042 = vshll.u32 %v3724, 16
      %v4044 = vrot.slane %v4042, 5
      %v4045 = vsel %vm604, %v4040, %v4044
      %v4047 = vshrl.u32 %v3725, 16
      %v4049 = vrot.slane %v4047, 4
      %v4050 = vshll.u32 %v3725, 16
      %v4052 = vrot.slane %v4050, 5
      %v4053 = vor.u32 %v4049, %v4052
      %v4054 = vrot.slane %v4053, 4
      %v4056 = vshll.u32 %v3726, 16
      %v4058 = vrot.slane %v4056, 5
      %v4059 = vsel %vm604, %v4054, %v4058
      %v4060 = vshrl.u32 %v3726, 16
      %v4062 = vrot.slane %v4060, 4
      %v4063 = vor.u32 %v4062, %v4058
      %v4064 = vrot.slane %v4063, 4
      %v4066 = vshll.u32 %v3727, 16
      %v4068 = vrot.slane %v4066, 5
      %v4069 = vsel %vm604, %v4064, %v4068
      %v4071 = vshrl.u32 %v3728, 16
      %v4073 = vrot.slane %v4071, 4
      %v4074 = vshll.u32 %v3728, 16
      %v4076 = vrot.slane %v4074, 5
      %v4077 = vor.u32 %v4073, %v4076
      %v4078 = vrot.slane %v4077, 4
      %v4080 = vshll.u32 %v3729, 16
      %v4082 = vrot.slane %v4080, 5
      %v4083 = vsel %vm604, %v4078, %v4082
      %v4084 = vshrl.u32 %v3729, 16
      %v4086 = vrot.slane %v4084, 4
      %v4087 = vor.u32 %v4086, %v4082
      %v4088 = vrot.slane %v4087, 4
      %v4090 = vshll.u32 %v3730, 16
      %v4092 = vrot.slane %v4090, 5
      %v4093 = vsel %vm604, %v4088, %v4092
      %v4095 = vshrl.u32 %v3731, 16
      %v4097 = vrot.slane %v4095, 4
      %v4098 = vshll.u32 %v3731, 16
      %v4100 = vrot.slane %v4098, 5
      %v4101 = vor.u32 %v4097, %v4100
      %v4102 = vrot.slane %v4101, 4
      %v4104 = vshll.u32 %v3732, 16
      %v4106 = vrot.slane %v4104, 5
      %v4107 = vsel %vm604, %v4102, %v4106
      %v4108 = vshrl.u32 %v3732, 16
      %v4110 = vrot.slane %v4108, 4
      %v4111 = vor.u32 %v4110, %v4106
      %v4112 = vrot.slane %v4111, 4
      %v4114 = vshll.u32 %v3733, 16
      %v4116 = vrot.slane %v4114, 5
      %v4117 = vsel %vm604, %v4112, %v4116
      %v4118 = vld [vmem:[#allocation2] sm:$0xff]
      %v4119 = vld [vmem:[#allocation2 + $0x8] sm:$0xff]
      %v4120 = vld [vmem:[#allocation2 + $0x10] sm:$0xff]
      %v4121 = vld [vmem:[#allocation2 + $0x18] sm:$0xff]
      %v4122 = vld [vmem:[#allocation2 + $0x20] sm:$0xff]
      %v4123 = vld [vmem:[#allocation2 + $0x28] sm:$0xff]
      %v4124 = vld [vmem:[#allocation2 + $0x30] sm:$0xff]
      %v4125 = vld [vmem:[#allocation2 + $0x38] sm:$0xff]
      %v4126 = vld [vmem:[#allocation2 + $0x40] sm:$0xff]
      %v4127 = vld [vmem:[#allocation2 + $0x48] sm:$0xff]
      %v4128 = vld [vmem:[#allocation2 + $0x50] sm:$0xff]
      %v4129 = vld [vmem:[#allocation2 + $0x58] sm:$0xff]
      %v4130 = vld [vmem:[#allocation2 + $0x60] sm:$0xff]
      %v4131 = vld [vmem:[#allocation2 + $0x68] sm:$0xff]
      %v4132 = vld [vmem:[#allocation2 + $0x70] sm:$0xff]
      %v4133 = vld [vmem:[#allocation2 + $0x78] sm:$0xff]
      %v4134 = vld [vmem:[#allocation2 + $0x80] sm:$0xff]
      %v4135 = vld [vmem:[#allocation2 + $0x88] sm:$0xff]
      %v4136 = vld [vmem:[#allocation2 + $0x90] sm:$0xff]
      %v4137 = vld [vmem:[#allocation2 + $0x98] sm:$0xff]
      %v4138 = vld [vmem:[#allocation2 + $0xa0] sm:$0xff]
      %v4139 = vld [vmem:[#allocation2 + $0xa8] sm:$0xff]
      %v4140 = vld [vmem:[#allocation2 + $0xb0] sm:$0xff]
      %v4141 = vld [vmem:[#allocation2 + $0xb8] sm:$0xff]
      %v4142 = vld [vmem:[#allocation2 + $0xc0] sm:$0xff]
      %v4143 = vld [vmem:[#allocation2 + $0xc8] sm:$0xff]
      %v4144 = vld [vmem:[#allocation2 + $0xd0] sm:$0xff]
      %v4145 = vld [vmem:[#allocation2 + $0xd8] sm:$0xff]
      %v4146 = vld [vmem:[#allocation2 + $0xe0] sm:$0xff]
      %v4147 = vld [vmem:[#allocation2 + $0xe8] sm:$0xff]
      %v4148 = vld [vmem:[#allocation2 + $0xf0] sm:$0xff]
      %v4149 = vld [vmem:[#allocation2 + $0xf8] sm:$0xff]
      %s4150 = scalar_lea.vmem %s1, 14
      %v4151 = vld [vmem:[%s4150] sm:$0x3]
      %v4152 = vunpack.c.l.b16 %v3747
      %v4153 = vunpack.c.l.b16 %v3757
      %v4154 = vunpack.c.l.b16 %v3771
      %v4155 = vunpack.c.l.b16 %v3781
      %v4156 = vunpack.c.l.b16 %v3795
      %v4157 = vunpack.c.l.b16 %v3805
      %v4158 = vunpack.c.l.b16 %v3819
      %v4159 = vunpack.c.l.b16 %v3829
      %v4160 = vunpack.c.l.b16 %v3843
      %v4161 = vunpack.c.l.b16 %v3853
      %v4162 = vunpack.c.l.b16 %v3867
      %v4163 = vunpack.c.l.b16 %v3877
      %v4164 = vunpack.c.l.b16 %v3891
      %v4165 = vunpack.c.l.b16 %v3901
      %v4166 = vunpack.c.l.b16 %v3915
      %v4167 = vunpack.c.l.b16 %v3925
      %v4168 = vunpack.c.l.b16 %v3939
      %v4169 = vunpack.c.l.b16 %v3949
      %v4170 = vunpack.c.l.b16 %v3963
      %v4171 = vunpack.c.l.b16 %v3973
      %v4172 = vunpack.c.l.b16 %v3987
      %v4173 = vunpack.c.l.b16 %v3997
      %v4174 = vunpack.c.l.b16 %v4011
      %v4175 = vunpack.c.l.b16 %v4021
      %v4176 = vunpack.c.l.b16 %v4035
      %v4177 = vunpack.c.l.b16 %v4045
      %v4178 = vunpack.c.l.b16 %v4059
      %v4179 = vunpack.c.l.b16 %v4069
      %v4180 = vunpack.c.l.b16 %v4083
      %v4181 = vunpack.c.l.b16 %v4093
      %v4182 = vunpack.c.l.b16 %v4107
      %v4183 = vunpack.c.l.b16 %v4117
      %v4184 = vpack.c.b16 %v4153, %v4152
      %v4185 = vpack.c.b16 %v4155, %v4154
      %v4186 = vpack.c.b16 %v4157, %v4156
      %v4187 = vpack.c.b16 %v4159, %v4158
      %v4188 = vpack.c.b16 %v4161, %v4160
      %v4189 = vpack.c.b16 %v4163, %v4162
      %v4190 = vpack.c.b16 %v4165, %v4164
      %v4191 = vpack.c.b16 %v4167, %v4166
      %v4192 = vpack.c.b16 %v4169, %v4168
      %v4193 = vpack.c.b16 %v4171, %v4170
      %v4194 = vpack.c.b16 %v4173, %v4172
      %v4195 = vpack.c.b16 %v4175, %v4174
      %v4196 = vpack.c.b16 %v4177, %v4176
      %v4197 = vpack.c.b16 %v4179, %v4178
      %v4198 = vpack.c.b16 %v4181, %v4180
      %v4199 = vpack.c.b16 %v4183, %v4182
      %v4201 = vsel %vm345, %v4184, 0
      %v4204 = vsel %vm345, %v4185, 0
      %v4207 = vsel %vm345, %v4186, 0
      %v4210 = vsel %vm345, %v4187, 0
      %v4213 = vsel %vm345, %v4188, 0
      %v4216 = vsel %vm345, %v4189, 0
      %v4219 = vsel %vm345, %v4190, 0
      %v4222 = vsel %vm345, %v4191, 0
      %v4225 = vsel %vm345, %v4192, 0
      %v4228 = vsel %vm345, %v4193, 0
      %v4231 = vsel %vm345, %v4194, 0
      %v4234 = vsel %vm345, %v4195, 0
      %v4237 = vsel %vm345, %v4196, 0
      %v4240 = vsel %vm345, %v4197, 0
      %v4243 = vsel %vm345, %v4198, 0
      %v4246 = vsel %vm345, %v4199, 0
      %v4249 = vand.u32 %v4151, %v397
      %4251 = vmatpush.bf16.msra.mxu0 0
      %4252 = vmatpush.bf16.msra.mxu0 0
      %4253 = vmatpush.bf16.msra.mxu0 0
      %4254 = vmatpush.bf16.msra.mxu0 0
      %4255 = vmatpush.bf16.msra.mxu0 0
      %4256 = vmatpush.bf16.msra.mxu0 0
      %4257 = vmatpush.bf16.msra.mxu0 0
      %4258 = vmatpush.bf16.msra.mxu0 %v4249
      %4259 = vmatmul.bf16.gmra.mxu0 %v4201
      %v4260 = vpop.f32.mrf.mxu0
      %v4261 = vadd.f32 0.0, %v4260
      %v4262 = vpop.f32.mrf.mxu0
      %v4263 = vadd.f32 0.0, %v4262
      %4264 = vmatmul.bf16.gmra.mxu0 %v4204
      %v4265 = vpop.f32.mrf.mxu0
      %v4266 = vadd.f32 0.0, %v4265
      %v4267 = vpop.f32.mrf.mxu0
      %v4268 = vadd.f32 0.0, %v4267
      %4269 = vmatmul.bf16.gmra.mxu0 %v4207
      %v4270 = vpop.f32.mrf.mxu0
      %v4271 = vadd.f32 0.0, %v4270
      %v4272 = vpop.f32.mrf.mxu0
      %v4273 = vadd.f32 0.0, %v4272
      %4274 = vmatmul.bf16.gmra.mxu0 %v4210
      %v4275 = vpop.f32.mrf.mxu0
      %v4276 = vadd.f32 0.0, %v4275
      %v4277 = vpop.f32.mrf.mxu0
      %v4278 = vadd.f32 0.0, %v4277
      %4279 = vmatmul.bf16.gmra.mxu0 %v4213
      %v4280 = vpop.f32.mrf.mxu0
      %v4281 = vadd.f32 0.0, %v4280
      %v4282 = vpop.f32.mrf.mxu0
      %v4283 = vadd.f32 0.0, %v4282
      %4284 = vmatmul.bf16.gmra.mxu0 %v4216
      %v4285 = vpop.f32.mrf.mxu0
      %v4286 = vadd.f32 0.0, %v4285
      %v4287 = vpop.f32.mrf.mxu0
      %v4288 = vadd.f32 0.0, %v4287
      %4289 = vmatmul.bf16.gmra.mxu0 %v4219
      %v4290 = vpop.f32.mrf.mxu0
      %v4291 = vadd.f32 0.0, %v4290
      %v4292 = vpop.f32.mrf.mxu0
      %v4293 = vadd.f32 0.0, %v4292
      %4294 = vmatmul.bf16.gmra.mxu0 %v4222
      %v4295 = vpop.f32.mrf.mxu0
      %v4296 = vadd.f32 0.0, %v4295
      %v4297 = vpop.f32.mrf.mxu0
      %v4298 = vadd.f32 0.0, %v4297
      %4299 = vmatmul.bf16.gmra.mxu0 %v4225
      %v4300 = vpop.f32.mrf.mxu0
      %v4301 = vadd.f32 0.0, %v4300
      %v4302 = vpop.f32.mrf.mxu0
      %v4303 = vadd.f32 0.0, %v4302
      %4304 = vmatmul.bf16.gmra.mxu0 %v4228
      %v4305 = vpop.f32.mrf.mxu0
      %v4306 = vadd.f32 0.0, %v4305
      %v4307 = vpop.f32.mrf.mxu0
      %v4308 = vadd.f32 0.0, %v4307
      %4309 = vmatmul.bf16.gmra.mxu0 %v4231
      %v4310 = vpop.f32.mrf.mxu0
      %v4311 = vadd.f32 0.0, %v4310
      %v4312 = vpop.f32.mrf.mxu0
      %v4313 = vadd.f32 0.0, %v4312
      %4314 = vmatmul.bf16.gmra.mxu0 %v4234
      %v4315 = vpop.f32.mrf.mxu0
      %v4316 = vadd.f32 0.0, %v4315
      %v4317 = vpop.f32.mrf.mxu0
      %v4318 = vadd.f32 0.0, %v4317
      %4319 = vmatmul.bf16.gmra.mxu0 %v4237
      %v4320 = vpop.f32.mrf.mxu0
      %v4321 = vadd.f32 0.0, %v4320
      %v4322 = vpop.f32.mrf.mxu0
      %v4323 = vadd.f32 0.0, %v4322
      %4324 = vmatmul.bf16.gmra.mxu0 %v4240
      %v4325 = vpop.f32.mrf.mxu0
      %v4326 = vadd.f32 0.0, %v4325
      %v4327 = vpop.f32.mrf.mxu0
      %v4328 = vadd.f32 0.0, %v4327
      %4329 = vmatmul.bf16.gmra.mxu0 %v4243
      %v4330 = vpop.f32.mrf.mxu0
      %v4331 = vadd.f32 0.0, %v4330
      %v4332 = vpop.f32.mrf.mxu0
      %v4333 = vadd.f32 0.0, %v4332
      %4334 = vmatmul.bf16.gmra.mxu0 %v4246
      %v4335 = vpop.f32.mrf.mxu0
      %v4336 = vadd.f32 0.0, %v4335
      %v4337 = vpop.f32.mrf.mxu0
      %v4338 = vadd.f32 0.0, %v4337
      %4339 = vdwg.mxu0
      %v4340 = vadd.f32 %v4118, %v4261
      %v4341 = vadd.f32 %v4119, %v4263
      %v4342 = vadd.f32 %v4120, %v4266
      %v4343 = vadd.f32 %v4121, %v4268
      %v4344 = vadd.f32 %v4122, %v4271
      %v4345 = vadd.f32 %v4123, %v4273
      %v4346 = vadd.f32 %v4124, %v4276
      %v4347 = vadd.f32 %v4125, %v4278
      %v4348 = vadd.f32 %v4126, %v4281
      %v4349 = vadd.f32 %v4127, %v4283
      %v4350 = vadd.f32 %v4128, %v4286
      %v4351 = vadd.f32 %v4129, %v4288
      %v4352 = vadd.f32 %v4130, %v4291
      %v4353 = vadd.f32 %v4131, %v4293
      %v4354 = vadd.f32 %v4132, %v4296
      %v4355 = vadd.f32 %v4133, %v4298
      %v4356 = vadd.f32 %v4134, %v4301
      %v4357 = vadd.f32 %v4135, %v4303
      %v4358 = vadd.f32 %v4136, %v4306
      %v4359 = vadd.f32 %v4137, %v4308
      %v4360 = vadd.f32 %v4138, %v4311
      %v4361 = vadd.f32 %v4139, %v4313
      %v4362 = vadd.f32 %v4140, %v4316
      %v4363 = vadd.f32 %v4141, %v4318
      %v4364 = vadd.f32 %v4142, %v4321
      %v4365 = vadd.f32 %v4143, %v4323
      %v4366 = vadd.f32 %v4144, %v4326
      %v4367 = vadd.f32 %v4145, %v4328
      %v4368 = vadd.f32 %v4146, %v4331
      %v4369 = vadd.f32 %v4147, %v4333
      %v4370 = vadd.f32 %v4148, %v4336
      %v4371 = vadd.f32 %v4149, %v4338
      %4372 = vst [vmem:[#allocation2] sm:$0xff] %v4340
      %4373 = vst [vmem:[#allocation2 + $0x8] sm:$0xff] %v4341
      %4374 = vst [vmem:[#allocation2 + $0x10] sm:$0xff] %v4342
      %4375 = vst [vmem:[#allocation2 + $0x18] sm:$0xff] %v4343
      %4376 = vst [vmem:[#allocation2 + $0x20] sm:$0xff] %v4344
      %4377 = vst [vmem:[#allocation2 + $0x28] sm:$0xff] %v4345
      %4378 = vst [vmem:[#allocation2 + $0x30] sm:$0xff] %v4346
      %4379 = vst [vmem:[#allocation2 + $0x38] sm:$0xff] %v4347
      %4380 = vst [vmem:[#allocation2 + $0x40] sm:$0xff] %v4348
      %4381 = vst [vmem:[#allocation2 + $0x48] sm:$0xff] %v4349
      %4382 = vst [vmem:[#allocation2 + $0x50] sm:$0xff] %v4350
      %4383 = vst [vmem:[#allocation2 + $0x58] sm:$0xff] %v4351
      %4384 = vst [vmem:[#allocation2 + $0x60] sm:$0xff] %v4352
      %4385 = vst [vmem:[#allocation2 + $0x68] sm:$0xff] %v4353
      %4386 = vst [vmem:[#allocation2 + $0x70] sm:$0xff] %v4354
      %4387 = vst [vmem:[#allocation2 + $0x78] sm:$0xff] %v4355
      %4388 = vst [vmem:[#allocation2 + $0x80] sm:$0xff] %v4356
      %4389 = vst [vmem:[#allocation2 + $0x88] sm:$0xff] %v4357
      %4390 = vst [vmem:[#allocation2 + $0x90] sm:$0xff] %v4358
      %4391 = vst [vmem:[#allocation2 + $0x98] sm:$0xff] %v4359
      %4392 = vst [vmem:[#allocation2 + $0xa0] sm:$0xff] %v4360
      %4393 = vst [vmem:[#allocation2 + $0xa8] sm:$0xff] %v4361
      %4394 = vst [vmem:[#allocation2 + $0xb0] sm:$0xff] %v4362
      %4395 = vst [vmem:[#allocation2 + $0xb8] sm:$0xff] %v4363
      %4396 = vst [vmem:[#allocation2 + $0xc0] sm:$0xff] %v4364
      %4397 = vst [vmem:[#allocation2 + $0xc8] sm:$0xff] %v4365
      %4398 = vst [vmem:[#allocation2 + $0xd0] sm:$0xff] %v4366
      %4399 = vst [vmem:[#allocation2 + $0xd8] sm:$0xff] %v4367
      %4400 = vst [vmem:[#allocation2 + $0xe0] sm:$0xff] %v4368
      %4401 = vst [vmem:[#allocation2 + $0xe8] sm:$0xff] %v4369
      %4402 = vst [vmem:[#allocation2 + $0xf0] sm:$0xff] %v4370
      %4403 = vst [vmem:[#allocation2 + $0xf8] sm:$0xff] %v4371
      %v4404 = vld [vmem:[%s3335] sm:$0xe]
      %v4405 = vld [vmem:[%s3335 + $0x4] sm:$0xf]
      %v4406 = vld [vmem:[%s3335 + $0x8] sm:$0x1]
      %v4407 = vld [vmem:[%s3335 + $0xc] sm:$0xe]
      %v4408 = vld [vmem:[%s3335 + $0x10] sm:$0xf]
      %v4409 = vld [vmem:[%s3335 + $0x14] sm:$0x1]
      %v4410 = vld [vmem:[%s3335 + $0x18] sm:$0xe]
      %v4411 = vld [vmem:[%s3335 + $0x1c] sm:$0xf]
      %v4412 = vld [vmem:[%s3335 + $0x20] sm:$0x1]
      %v4413 = vld [vmem:[%s3335 + $0x24] sm:$0xe]
      %v4414 = vld [vmem:[%s3335 + $0x28] sm:$0xf]
      %v4415 = vld [vmem:[%s3335 + $0x2c] sm:$0x1]
      %v4416 = vld [vmem:[%s3335 + $0x30] sm:$0xe]
      %v4417 = vld [vmem:[%s3335 + $0x34] sm:$0xf]
      %v4418 = vld [vmem:[%s3335 + $0x38] sm:$0x1]
      %v4419 = vld [vmem:[%s3335 + $0x3c] sm:$0xe]
      %v4420 = vld [vmem:[%s3335 + $0x40] sm:$0xf]
      %v4421 = vld [vmem:[%s3335 + $0x44] sm:$0x1]
      %v4422 = vld [vmem:[%s3335 + $0x48] sm:$0xe]
      %v4423 = vld [vmem:[%s3335 + $0x4c] sm:$0xf]
      %v4424 = vld [vmem:[%s3335 + $0x50] sm:$0x1]
      %v4425 = vld [vmem:[%s3335 + $0x54] sm:$0xe]
      %v4426 = vld [vmem:[%s3335 + $0x58] sm:$0xf]
      %v4427 = vld [vmem:[%s3335 + $0x5c] sm:$0x1]
      %v4428 = vld [vmem:[%s3335 + $0x60] sm:$0xe]
      %v4429 = vld [vmem:[%s3335 + $0x64] sm:$0xf]
      %v4430 = vld [vmem:[%s3335 + $0x68] sm:$0x1]
      %v4431 = vld [vmem:[%s3335 + $0x6c] sm:$0xe]
      %v4432 = vld [vmem:[%s3335 + $0x70] sm:$0xf]
      %v4433 = vld [vmem:[%s3335 + $0x74] sm:$0x1]
      %v4434 = vld [vmem:[%s3335 + $0x78] sm:$0xe]
      %v4435 = vld [vmem:[%s3335 + $0x7c] sm:$0xf]
      %v4436 = vld [vmem:[%s3335 + $0x80] sm:$0x1]
      %v4437 = vld [vmem:[%s3335 + $0x84] sm:$0xe]
      %v4438 = vld [vmem:[%s3335 + $0x88] sm:$0xf]
      %v4439 = vld [vmem:[%s3335 + $0x8c] sm:$0x1]
      %v4440 = vld [vmem:[%s3335 + $0x90] sm:$0xe]
      %v4441 = vld [vmem:[%s3335 + $0x94] sm:$0xf]
      %v4442 = vld [vmem:[%s3335 + $0x98] sm:$0x1]
      %v4443 = vld [vmem:[%s3335 + $0x9c] sm:$0xe]
      %v4444 = vld [vmem:[%s3335 + $0xa0] sm:$0xf]
      %v4445 = vld [vmem:[%s3335 + $0xa4] sm:$0x1]
      %v4446 = vld [vmem:[%s3335 + $0xa8] sm:$0xe]
      %v4447 = vld [vmem:[%s3335 + $0xac] sm:$0xf]
      %v4448 = vld [vmem:[%s3335 + $0xb0] sm:$0x1]
      %v4449 = vld [vmem:[%s3335 + $0xb4] sm:$0xe]
      %v4450 = vld [vmem:[%s3335 + $0xb8] sm:$0xf]
      %v4451 = vld [vmem:[%s3335 + $0xbc] sm:$0x1]
      %v4500 = vrot.slane %v4404, 5
      %v4501 = vrot.slane %v4500, 4
      %v4502 = vrot.slane %v4405, 5
      %v4503 = vsel %vm1373, %v4501, %v4502
      %v4504 = vrot.slane %v4502, 4
      %v4505 = vrot.slane %v4406, 5
      %v4506 = vsel %vm1373, %v4504, %v4505
      %v4507 = vrot.slane %v4407, 5
      %v4508 = vrot.slane %v4507, 4
      %v4509 = vrot.slane %v4408, 5
      %v4510 = vsel %vm1373, %v4508, %v4509
      %v4511 = vrot.slane %v4509, 4
      %v4512 = vrot.slane %v4409, 5
      %v4513 = vsel %vm1373, %v4511, %v4512
      %v4514 = vrot.slane %v4410, 5
      %v4515 = vrot.slane %v4514, 4
      %v4516 = vrot.slane %v4411, 5
      %v4517 = vsel %vm1373, %v4515, %v4516
      %v4518 = vrot.slane %v4516, 4
      %v4519 = vrot.slane %v4412, 5
      %v4520 = vsel %vm1373, %v4518, %v4519
      %v4521 = vrot.slane %v4413, 5
      %v4522 = vrot.slane %v4521, 4
      %v4523 = vrot.slane %v4414, 5
      %v4524 = vsel %vm1373, %v4522, %v4523
      %v4525 = vrot.slane %v4523, 4
      %v4526 = vrot.slane %v4415, 5
      %v4527 = vsel %vm1373, %v4525, %v4526
      %v4528 = vrot.slane %v4416, 5
      %v4529 = vrot.slane %v4528, 4
      %v4530 = vrot.slane %v4417, 5
      %v4531 = vsel %vm1373, %v4529, %v4530
      %v4532 = vrot.slane %v4530, 4
      %v4533 = vrot.slane %v4418, 5
      %v4534 = vsel %vm1373, %v4532, %v4533
      %v4535 = vrot.slane %v4419, 5
      %v4536 = vrot.slane %v4535, 4
      %v4537 = vrot.slane %v4420, 5
      %v4538 = vsel %vm1373, %v4536, %v4537
      %v4539 = vrot.slane %v4537, 4
      %v4540 = vrot.slane %v4421, 5
      %v4541 = vsel %vm1373, %v4539, %v4540
      %v4542 = vrot.slane %v4422, 5
      %v4543 = vrot.slane %v4542, 4
      %v4544 = vrot.slane %v4423, 5
      %v4545 = vsel %vm1373, %v4543, %v4544
      %v4546 = vrot.slane %v4544, 4
      %v4547 = vrot.slane %v4424, 5
      %v4548 = vsel %vm1373, %v4546, %v4547
      %v4549 = vrot.slane %v4425, 5
      %v4550 = vrot.slane %v4549, 4
      %v4551 = vrot.slane %v4426, 5
      %v4552 = vsel %vm1373, %v4550, %v4551
      %v4553 = vrot.slane %v4551, 4
      %v4554 = vrot.slane %v4427, 5
      %v4555 = vsel %vm1373, %v4553, %v4554
      %v4556 = vrot.slane %v4428, 5
      %v4557 = vrot.slane %v4556, 4
      %v4558 = vrot.slane %v4429, 5
      %v4559 = vsel %vm1373, %v4557, %v4558
      %v4560 = vrot.slane %v4558, 4
      %v4561 = vrot.slane %v4430, 5
      %v4562 = vsel %vm1373, %v4560, %v4561
      %v4563 = vrot.slane %v4431, 5
      %v4564 = vrot.slane %v4563, 4
      %v4565 = vrot.slane %v4432, 5
      %v4566 = vsel %vm1373, %v4564, %v4565
      %v4567 = vrot.slane %v4565, 4
      %v4568 = vrot.slane %v4433, 5
      %v4569 = vsel %vm1373, %v4567, %v4568
      %v4570 = vrot.slane %v4434, 5
      %v4571 = vrot.slane %v4570, 4
      %v4572 = vrot.slane %v4435, 5
      %v4573 = vsel %vm1373, %v4571, %v4572
      %v4574 = vrot.slane %v4572, 4
      %v4575 = vrot.slane %v4436, 5
      %v4576 = vsel %vm1373, %v4574, %v4575
      %v4577 = vrot.slane %v4437, 5
      %v4578 = vrot.slane %v4577, 4
      %v4579 = vrot.slane %v4438, 5
      %v4580 = vsel %vm1373, %v4578, %v4579
      %v4581 = vrot.slane %v4579, 4
      %v4582 = vrot.slane %v4439, 5
      %v4583 = vsel %vm1373, %v4581, %v4582
      %v4584 = vrot.slane %v4440, 5
      %v4585 = vrot.slane %v4584, 4
      %v4586 = vrot.slane %v4441, 5
      %v4587 = vsel %vm1373, %v4585, %v4586
      %v4588 = vrot.slane %v4586, 4
      %v4589 = vrot.slane %v4442, 5
      %v4590 = vsel %vm1373, %v4588, %v4589
      %v4591 = vrot.slane %v4443, 5
      %v4592 = vrot.slane %v4591, 4
      %v4593 = vrot.slane %v4444, 5
      %v4594 = vsel %vm1373, %v4592, %v4593
      %v4595 = vrot.slane %v4593, 4
      %v4596 = vrot.slane %v4445, 5
      %v4597 = vsel %vm1373, %v4595, %v4596
      %v4598 = vrot.slane %v4446, 5
      %v4599 = vrot.slane %v4598, 4
      %v4600 = vrot.slane %v4447, 5
      %v4601 = vsel %vm1373, %v4599, %v4600
      %v4602 = vrot.slane %v4600, 4
      %v4603 = vrot.slane %v4448, 5
      %v4604 = vsel %vm1373, %v4602, %v4603
      %v4605 = vrot.slane %v4449, 5
      %v4606 = vrot.slane %v4605, 4
      %v4607 = vrot.slane %v4450, 5
      %v4608 = vsel %vm1373, %v4606, %v4607
      %v4609 = vrot.slane %v4607, 4
      %v4610 = vrot.slane %v4451, 5
      %v4611 = vsel %vm1373, %v4609, %v4610
      %v4612 = vld [vmem:[#allocation2] sm:$0xff]
      %v4613 = vld [vmem:[#allocation2 + $0x8] sm:$0xff]
      %v4614 = vld [vmem:[#allocation2 + $0x10] sm:$0xff]
      %v4615 = vld [vmem:[#allocation2 + $0x18] sm:$0xff]
      %v4616 = vld [vmem:[#allocation2 + $0x20] sm:$0xff]
      %v4617 = vld [vmem:[#allocation2 + $0x28] sm:$0xff]
      %v4618 = vld [vmem:[#allocation2 + $0x30] sm:$0xff]
      %v4619 = vld [vmem:[#allocation2 + $0x38] sm:$0xff]
      %v4620 = vld [vmem:[#allocation2 + $0x40] sm:$0xff]
      %v4621 = vld [vmem:[#allocation2 + $0x48] sm:$0xff]
      %v4622 = vld [vmem:[#allocation2 + $0x50] sm:$0xff]
      %v4623 = vld [vmem:[#allocation2 + $0x58] sm:$0xff]
      %v4624 = vld [vmem:[#allocation2 + $0x60] sm:$0xff]
      %v4625 = vld [vmem:[#allocation2 + $0x68] sm:$0xff]
      %v4626 = vld [vmem:[#allocation2 + $0x70] sm:$0xff]
      %v4627 = vld [vmem:[#allocation2 + $0x78] sm:$0xff]
      %v4628 = vld [vmem:[#allocation2 + $0x80] sm:$0xff]
      %v4629 = vld [vmem:[#allocation2 + $0x88] sm:$0xff]
      %v4630 = vld [vmem:[#allocation2 + $0x90] sm:$0xff]
      %v4631 = vld [vmem:[#allocation2 + $0x98] sm:$0xff]
      %v4632 = vld [vmem:[#allocation2 + $0xa0] sm:$0xff]
      %v4633 = vld [vmem:[#allocation2 + $0xa8] sm:$0xff]
      %v4634 = vld [vmem:[#allocation2 + $0xb0] sm:$0xff]
      %v4635 = vld [vmem:[#allocation2 + $0xb8] sm:$0xff]
      %v4636 = vld [vmem:[#allocation2 + $0xc0] sm:$0xff]
      %v4637 = vld [vmem:[#allocation2 + $0xc8] sm:$0xff]
      %v4638 = vld [vmem:[#allocation2 + $0xd0] sm:$0xff]
      %v4639 = vld [vmem:[#allocation2 + $0xd8] sm:$0xff]
      %v4640 = vld [vmem:[#allocation2 + $0xe0] sm:$0xff]
      %v4641 = vld [vmem:[#allocation2 + $0xe8] sm:$0xff]
      %v4642 = vld [vmem:[#allocation2 + $0xf0] sm:$0xff]
      %v4643 = vld [vmem:[#allocation2 + $0xf8] sm:$0xff]
      %s4644 = scalar_lea.vmem %s1, 16
      %v4645 = vld [vmem:[%s4644] sm:$0x3]
      %v4646 = vunpack.c.l.b16 %v4503
      %v4647 = vunpack.c.l.b16 %v4506
      %v4648 = vunpack.c.l.b16 %v4510
      %v4649 = vunpack.c.l.b16 %v4513
      %v4650 = vunpack.c.l.b16 %v4517
      %v4651 = vunpack.c.l.b16 %v4520
      %v4652 = vunpack.c.l.b16 %v4524
      %v4653 = vunpack.c.l.b16 %v4527
      %v4654 = vunpack.c.l.b16 %v4531
      %v4655 = vunpack.c.l.b16 %v4534
      %v4656 = vunpack.c.l.b16 %v4538
      %v4657 = vunpack.c.l.b16 %v4541
      %v4658 = vunpack.c.l.b16 %v4545
      %v4659 = vunpack.c.l.b16 %v4548
      %v4660 = vunpack.c.l.b16 %v4552
      %v4661 = vunpack.c.l.b16 %v4555
      %v4662 = vunpack.c.l.b16 %v4559
      %v4663 = vunpack.c.l.b16 %v4562
      %v4664 = vunpack.c.l.b16 %v4566
      %v4665 = vunpack.c.l.b16 %v4569
      %v4666 = vunpack.c.l.b16 %v4573
      %v4667 = vunpack.c.l.b16 %v4576
      %v4668 = vunpack.c.l.b16 %v4580
      %v4669 = vunpack.c.l.b16 %v4583
      %v4670 = vunpack.c.l.b16 %v4587
      %v4671 = vunpack.c.l.b16 %v4590
      %v4672 = vunpack.c.l.b16 %v4594
      %v4673 = vunpack.c.l.b16 %v4597
      %v4674 = vunpack.c.l.b16 %v4601
      %v4675 = vunpack.c.l.b16 %v4604
      %v4676 = vunpack.c.l.b16 %v4608
      %v4677 = vunpack.c.l.b16 %v4611
      %v4678 = vpack.c.b16 %v4647, %v4646
      %v4679 = vpack.c.b16 %v4649, %v4648
      %v4680 = vpack.c.b16 %v4651, %v4650
      %v4681 = vpack.c.b16 %v4653, %v4652
      %v4682 = vpack.c.b16 %v4655, %v4654
      %v4683 = vpack.c.b16 %v4657, %v4656
      %v4684 = vpack.c.b16 %v4659, %v4658
      %v4685 = vpack.c.b16 %v4661, %v4660
      %v4686 = vpack.c.b16 %v4663, %v4662
      %v4687 = vpack.c.b16 %v4665, %v4664
      %v4688 = vpack.c.b16 %v4667, %v4666
      %v4689 = vpack.c.b16 %v4669, %v4668
      %v4690 = vpack.c.b16 %v4671, %v4670
      %v4691 = vpack.c.b16 %v4673, %v4672
      %v4692 = vpack.c.b16 %v4675, %v4674
      %v4693 = vpack.c.b16 %v4677, %v4676
      %v4695 = vsel %vm345, %v4678, 0
      %v4698 = vsel %vm345, %v4679, 0
      %v4701 = vsel %vm345, %v4680, 0
      %v4704 = vsel %vm345, %v4681, 0
      %v4707 = vsel %vm345, %v4682, 0
      %v4710 = vsel %vm345, %v4683, 0
      %v4713 = vsel %vm345, %v4684, 0
      %v4716 = vsel %vm345, %v4685, 0
      %v4719 = vsel %vm345, %v4686, 0
      %v4722 = vsel %vm345, %v4687, 0
      %v4725 = vsel %vm345, %v4688, 0
      %v4728 = vsel %vm345, %v4689, 0
      %v4731 = vsel %vm345, %v4690, 0
      %v4734 = vsel %vm345, %v4691, 0
      %v4737 = vsel %vm345, %v4692, 0
      %v4740 = vsel %vm345, %v4693, 0
      %v4743 = vand.u32 %v4645, %v397
      %4745 = vmatpush.bf16.msra.mxu0 0
      %4746 = vmatpush.bf16.msra.mxu0 0
      %4747 = vmatpush.bf16.msra.mxu0 0
      %4748 = vmatpush.bf16.msra.mxu0 0
      %4749 = vmatpush.bf16.msra.mxu0 0
      %4750 = vmatpush.bf16.msra.mxu0 0
      %4751 = vmatpush.bf16.msra.mxu0 0
      %4752 = vmatpush.bf16.msra.mxu0 %v4743
      %4753 = vmatmul.bf16.gmra.mxu0 %v4695
      %v4754 = vpop.f32.mrf.mxu0
      %v4755 = vadd.f32 0.0, %v4754
      %v4756 = vpop.f32.mrf.mxu0
      %v4757 = vadd.f32 0.0, %v4756
      %4758 = vmatmul.bf16.gmra.mxu0 %v4698
      %v4759 = vpop.f32.mrf.mxu0
      %v4760 = vadd.f32 0.0, %v4759
      %v4761 = vpop.f32.mrf.mxu0
      %v4762 = vadd.f32 0.0, %v4761
      %4763 = vmatmul.bf16.gmra.mxu0 %v4701
      %v4764 = vpop.f32.mrf.mxu0
      %v4765 = vadd.f32 0.0, %v4764
      %v4766 = vpop.f32.mrf.mxu0
      %v4767 = vadd.f32 0.0, %v4766
      %4768 = vmatmul.bf16.gmra.mxu0 %v4704
      %v4769 = vpop.f32.mrf.mxu0
      %v4770 = vadd.f32 0.0, %v4769
      %v4771 = vpop.f32.mrf.mxu0
      %v4772 = vadd.f32 0.0, %v4771
      %4773 = vmatmul.bf16.gmra.mxu0 %v4707
      %v4774 = vpop.f32.mrf.mxu0
      %v4775 = vadd.f32 0.0, %v4774
      %v4776 = vpop.f32.mrf.mxu0
      %v4777 = vadd.f32 0.0, %v4776
      %4778 = vmatmul.bf16.gmra.mxu0 %v4710
      %v4779 = vpop.f32.mrf.mxu0
      %v4780 = vadd.f32 0.0, %v4779
      %v4781 = vpop.f32.mrf.mxu0
      %v4782 = vadd.f32 0.0, %v4781
      %4783 = vmatmul.bf16.gmra.mxu0 %v4713
      %v4784 = vpop.f32.mrf.mxu0
      %v4785 = vadd.f32 0.0, %v4784
      %v4786 = vpop.f32.mrf.mxu0
      %v4787 = vadd.f32 0.0, %v4786
      %4788 = vmatmul.bf16.gmra.mxu0 %v4716
      %v4789 = vpop.f32.mrf.mxu0
      %v4790 = vadd.f32 0.0, %v4789
      %v4791 = vpop.f32.mrf.mxu0
      %v4792 = vadd.f32 0.0, %v4791
      %4793 = vmatmul.bf16.gmra.mxu0 %v4719
      %v4794 = vpop.f32.mrf.mxu0
      %v4795 = vadd.f32 0.0, %v4794
      %v4796 = vpop.f32.mrf.mxu0
      %v4797 = vadd.f32 0.0, %v4796
      %4798 = vmatmul.bf16.gmra.mxu0 %v4722
      %v4799 = vpop.f32.mrf.mxu0
      %v4800 = vadd.f32 0.0, %v4799
      %v4801 = vpop.f32.mrf.mxu0
      %v4802 = vadd.f32 0.0, %v4801
      %4803 = vmatmul.bf16.gmra.mxu0 %v4725
      %v4804 = vpop.f32.mrf.mxu0
      %v4805 = vadd.f32 0.0, %v4804
      %v4806 = vpop.f32.mrf.mxu0
      %v4807 = vadd.f32 0.0, %v4806
      %4808 = vmatmul.bf16.gmra.mxu0 %v4728
      %v4809 = vpop.f32.mrf.mxu0
      %v4810 = vadd.f32 0.0, %v4809
      %v4811 = vpop.f32.mrf.mxu0
      %v4812 = vadd.f32 0.0, %v4811
      %4813 = vmatmul.bf16.gmra.mxu0 %v4731
      %v4814 = vpop.f32.mrf.mxu0
      %v4815 = vadd.f32 0.0, %v4814
      %v4816 = vpop.f32.mrf.mxu0
      %v4817 = vadd.f32 0.0, %v4816
      %4818 = vmatmul.bf16.gmra.mxu0 %v4734
      %v4819 = vpop.f32.mrf.mxu0
      %v4820 = vadd.f32 0.0, %v4819
      %v4821 = vpop.f32.mrf.mxu0
      %v4822 = vadd.f32 0.0, %v4821
      %4823 = vmatmul.bf16.gmra.mxu0 %v4737
      %v4824 = vpop.f32.mrf.mxu0
      %v4825 = vadd.f32 0.0, %v4824
      %v4826 = vpop.f32.mrf.mxu0
      %v4827 = vadd.f32 0.0, %v4826
      %4828 = vmatmul.bf16.gmra.mxu0 %v4740
      %v4829 = vpop.f32.mrf.mxu0
      %v4830 = vadd.f32 0.0, %v4829
      %v4831 = vpop.f32.mrf.mxu0
      %v4832 = vadd.f32 0.0, %v4831
      %4833 = vdwg.mxu0
      %v4834 = vadd.f32 %v4612, %v4755
      %v4835 = vadd.f32 %v4613, %v4757
      %v4836 = vadd.f32 %v4614, %v4760
      %v4837 = vadd.f32 %v4615, %v4762
      %v4838 = vadd.f32 %v4616, %v4765
      %v4839 = vadd.f32 %v4617, %v4767
      %v4840 = vadd.f32 %v4618, %v4770
      %v4841 = vadd.f32 %v4619, %v4772
      %v4842 = vadd.f32 %v4620, %v4775
      %v4843 = vadd.f32 %v4621, %v4777
      %v4844 = vadd.f32 %v4622, %v4780
      %v4845 = vadd.f32 %v4623, %v4782
      %v4846 = vadd.f32 %v4624, %v4785
      %v4847 = vadd.f32 %v4625, %v4787
      %v4848 = vadd.f32 %v4626, %v4790
      %v4849 = vadd.f32 %v4627, %v4792
      %v4850 = vadd.f32 %v4628, %v4795
      %v4851 = vadd.f32 %v4629, %v4797
      %v4852 = vadd.f32 %v4630, %v4800
      %v4853 = vadd.f32 %v4631, %v4802
      %v4854 = vadd.f32 %v4632, %v4805
      %v4855 = vadd.f32 %v4633, %v4807
      %v4856 = vadd.f32 %v4634, %v4810
      %v4857 = vadd.f32 %v4635, %v4812
      %v4858 = vadd.f32 %v4636, %v4815
      %v4859 = vadd.f32 %v4637, %v4817
      %v4860 = vadd.f32 %v4638, %v4820
      %v4861 = vadd.f32 %v4639, %v4822
      %v4862 = vadd.f32 %v4640, %v4825
      %v4863 = vadd.f32 %v4641, %v4827
      %v4864 = vadd.f32 %v4642, %v4830
      %v4865 = vadd.f32 %v4643, %v4832
      %4866 = vst [vmem:[#allocation2] sm:$0xff] %v4834
      %4867 = vst [vmem:[#allocation2 + $0x8] sm:$0xff] %v4835
      %4868 = vst [vmem:[#allocation2 + $0x10] sm:$0xff] %v4836
      %4869 = vst [vmem:[#allocation2 + $0x18] sm:$0xff] %v4837
      %4870 = vst [vmem:[#allocation2 + $0x20] sm:$0xff] %v4838
      %4871 = vst [vmem:[#allocation2 + $0x28] sm:$0xff] %v4839
      %4872 = vst [vmem:[#allocation2 + $0x30] sm:$0xff] %v4840
      %4873 = vst [vmem:[#allocation2 + $0x38] sm:$0xff] %v4841
      %4874 = vst [vmem:[#allocation2 + $0x40] sm:$0xff] %v4842
      %4875 = vst [vmem:[#allocation2 + $0x48] sm:$0xff] %v4843
      %4876 = vst [vmem:[#allocation2 + $0x50] sm:$0xff] %v4844
      %4877 = vst [vmem:[#allocation2 + $0x58] sm:$0xff] %v4845
      %4878 = vst [vmem:[#allocation2 + $0x60] sm:$0xff] %v4846
      %4879 = vst [vmem:[#allocation2 + $0x68] sm:$0xff] %v4847
      %4880 = vst [vmem:[#allocation2 + $0x70] sm:$0xff] %v4848
      %4881 = vst [vmem:[#allocation2 + $0x78] sm:$0xff] %v4849
      %4882 = vst [vmem:[#allocation2 + $0x80] sm:$0xff] %v4850
      %4883 = vst [vmem:[#allocation2 + $0x88] sm:$0xff] %v4851
      %4884 = vst [vmem:[#allocation2 + $0x90] sm:$0xff] %v4852
      %4885 = vst [vmem:[#allocation2 + $0x98] sm:$0xff] %v4853
      %4886 = vst [vmem:[#allocation2 + $0xa0] sm:$0xff] %v4854
      %4887 = vst [vmem:[#allocation2 + $0xa8] sm:$0xff] %v4855
      %4888 = vst [vmem:[#allocation2 + $0xb0] sm:$0xff] %v4856
      %4889 = vst [vmem:[#allocation2 + $0xb8] sm:$0xff] %v4857
      %4890 = vst [vmem:[#allocation2 + $0xc0] sm:$0xff] %v4858
      %4891 = vst [vmem:[#allocation2 + $0xc8] sm:$0xff] %v4859
      %4892 = vst [vmem:[#allocation2 + $0xd0] sm:$0xff] %v4860
      %4893 = vst [vmem:[#allocation2 + $0xd8] sm:$0xff] %v4861
      %4894 = vst [vmem:[#allocation2 + $0xe0] sm:$0xff] %v4862
      %4895 = vst [vmem:[#allocation2 + $0xe8] sm:$0xff] %v4863
      %4896 = vst [vmem:[#allocation2 + $0xf0] sm:$0xff] %v4864
      %4897 = vst [vmem:[#allocation2 + $0xf8] sm:$0xff] %v4865
      %v4898 = vld [vmem:[#allocation2] sm:$0xff]
      %v4899 = vld [vmem:[#allocation2 + $0x8] sm:$0xff]
      %v4900 = vld [vmem:[#allocation2 + $0x10] sm:$0xff]
      %v4901 = vld [vmem:[#allocation2 + $0x18] sm:$0xff]
      %v4902 = vld [vmem:[#allocation2 + $0x20] sm:$0xff]
      %v4903 = vld [vmem:[#allocation2 + $0x28] sm:$0xff]
      %v4904 = vld [vmem:[#allocation2 + $0x30] sm:$0xff]
      %v4905 = vld [vmem:[#allocation2 + $0x38] sm:$0xff]
      %v4906 = vld [vmem:[#allocation2 + $0x40] sm:$0xff]
      %v4907 = vld [vmem:[#allocation2 + $0x48] sm:$0xff]
      %v4908 = vld [vmem:[#allocation2 + $0x50] sm:$0xff]
      %v4909 = vld [vmem:[#allocation2 + $0x58] sm:$0xff]
      %v4910 = vld [vmem:[#allocation2 + $0x60] sm:$0xff]
      %v4911 = vld [vmem:[#allocation2 + $0x68] sm:$0xff]
      %v4912 = vld [vmem:[#allocation2 + $0x70] sm:$0xff]
      %v4913 = vld [vmem:[#allocation2 + $0x78] sm:$0xff]
      %v4914 = vld [vmem:[#allocation2 + $0x80] sm:$0xff]
      %v4915 = vld [vmem:[#allocation2 + $0x88] sm:$0xff]
      %v4916 = vld [vmem:[#allocation2 + $0x90] sm:$0xff]
      %v4917 = vld [vmem:[#allocation2 + $0x98] sm:$0xff]
      %v4918 = vld [vmem:[#allocation2 + $0xa0] sm:$0xff]
      %v4919 = vld [vmem:[#allocation2 + $0xa8] sm:$0xff]
      %v4920 = vld [vmem:[#allocation2 + $0xb0] sm:$0xff]
      %v4921 = vld [vmem:[#allocation2 + $0xb8] sm:$0xff]
      %v4922 = vld [vmem:[#allocation2 + $0xc0] sm:$0xff]
      %v4923 = vld [vmem:[#allocation2 + $0xc8] sm:$0xff]
      %v4924 = vld [vmem:[#allocation2 + $0xd0] sm:$0xff]
      %v4925 = vld [vmem:[#allocation2 + $0xd8] sm:$0xff]
      %v4926 = vld [vmem:[#allocation2 + $0xe0] sm:$0xff]
      %v4927 = vld [vmem:[#allocation2 + $0xe8] sm:$0xff]
      %v4928 = vld [vmem:[#allocation2 + $0xf0] sm:$0xff]
      %v4929 = vld [vmem:[#allocation2 + $0xf8] sm:$0xff]
      %v4930 = vmax.f32 %v4898, 0.0
      %v4931 = vmax.f32 %v4899, 0.0
      %v4932 = vmax.f32 %v4900, 0.0
      %v4933 = vmax.f32 %v4901, 0.0
      %v4934 = vmax.f32 %v4902, 0.0
      %v4935 = vmax.f32 %v4903, 0.0
      %v4936 = vmax.f32 %v4904, 0.0
      %v4937 = vmax.f32 %v4905, 0.0
      %v4938 = vmax.f32 %v4906, 0.0
      %v4939 = vmax.f32 %v4907, 0.0
      %v4940 = vmax.f32 %v4908, 0.0
      %v4941 = vmax.f32 %v4909, 0.0
      %v4942 = vmax.f32 %v4910, 0.0
      %v4943 = vmax.f32 %v4911, 0.0
      %v4944 = vmax.f32 %v4912, 0.0
      %v4945 = vmax.f32 %v4913, 0.0
      %v4946 = vmax.f32 %v4914, 0.0
      %v4947 = vmax.f32 %v4915, 0.0
      %v4948 = vmax.f32 %v4916, 0.0
      %v4949 = vmax.f32 %v4917, 0.0
      %v4950 = vmax.f32 %v4918, 0.0
      %v4951 = vmax.f32 %v4919, 0.0
      %v4952 = vmax.f32 %v4920, 0.0
      %v4953 = vmax.f32 %v4921, 0.0
      %v4954 = vmax.f32 %v4922, 0.0
      %v4955 = vmax.f32 %v4923, 0.0
      %v4956 = vmax.f32 %v4924, 0.0
      %v4957 = vmax.f32 %v4925, 0.0
      %v4958 = vmax.f32 %v4926, 0.0
      %v4959 = vmax.f32 %v4927, 0.0
      %v4960 = vmax.f32 %v4928, 0.0
      %v4961 = vmax.f32 %v4929, 0.0
      %v4962 = vadd.f32 %v4930, %v4931
      %v4963 = vadd.f32 %v4962, %v4932
      %v4964 = vadd.f32 %v4963, %v4933
      %v4965 = vadd.f32 %v4964, %v4934
      %v4966 = vadd.f32 %v4965, %v4935
      %v4967 = vadd.f32 %v4966, %v4936
      %v4968 = vadd.f32 %v4967, %v4937
      %v4969 = vadd.f32 %v4968, %v4938
      %v4970 = vadd.f32 %v4969, %v4939
      %v4971 = vadd.f32 %v4970, %v4940
      %v4972 = vadd.f32 %v4971, %v4941
      %v4973 = vadd.f32 %v4972, %v4942
      %v4974 = vadd.f32 %v4973, %v4943
      %v4975 = vadd.f32 %v4974, %v4944
      %v4976 = vadd.f32 %v4975, %v4945
      %v4977 = vadd.f32 %v4976, %v4946
      %v4978 = vadd.f32 %v4977, %v4947
      %v4979 = vadd.f32 %v4978, %v4948
      %v4980 = vadd.f32 %v4979, %v4949
      %v4981 = vadd.f32 %v4980, %v4950
      %v4982 = vadd.f32 %v4981, %v4951
      %v4983 = vadd.f32 %v4982, %v4952
      %v4984 = vadd.f32 %v4983, %v4953
      %v4985 = vadd.f32 %v4984, %v4954
      %v4986 = vadd.f32 %v4985, %v4955
      %v4987 = vadd.f32 %v4986, %v4956
      %v4988 = vadd.f32 %v4987, %v4957
      %v4989 = vadd.f32 %v4988, %v4958
      %v4990 = vadd.f32 %v4989, %v4959
      %v4991 = vadd.f32 %v4990, %v4960
      %v4992 = vadd.f32 %v4991, %v4961
      %v4993 = vrot.slane %v4992, 4
      %v4994 = vadd.f32 %v4992, %v4993
      %v4995 = vrot.slane %v4994, 2
      %v4996 = vadd.f32 %v4994, %v4995
      %v4997 = vrot.slane %v4996, 1
      %v4998 = vadd.f32 %v4996, %v4997
      %v4999 = vrcp.pop 256.0
      %v5000 = vmul.f32 256.0, %v4999
      %v5001 = vsub.f32 1.0, %v5000
      %v5002 = vmul.f32 %v4999, %v5001
      %v5003 = vadd.f32 %v4999, %v5002
      %vm5004 = vweird.f32 %v4999
      %v5005 = vsel %vm5004, %v4999, %v5003
      %v5006 = vmul.f32 %v4998, %v5005
      %v5007 = vld [vmem:[%s2] sm:$0xf]
      %v5008 = vld [vmem:[%s2 + $0x4] sm:$0xf]
      %v5009 = vld [vmem:[%s2 + $0x8] sm:$0xf]
      %v5010 = vld [vmem:[%s2 + $0xc] sm:$0xf]
      %v5011 = vld [vmem:[%s2 + $0x10] sm:$0xf]
      %v5012 = vld [vmem:[%s2 + $0x14] sm:$0xf]
      %v5013 = vld [vmem:[%s2 + $0x18] sm:$0xf]
      %v5014 = vld [vmem:[%s2 + $0x1c] sm:$0xf]
      %v5015 = vld [vmem:[%s2 + $0x20] sm:$0xf]
      %v5016 = vld [vmem:[%s2 + $0x24] sm:$0xf]
      %v5017 = vld [vmem:[%s2 + $0x28] sm:$0xf]
      %v5018 = vld [vmem:[%s2 + $0x2c] sm:$0xf]
      %v5019 = vld [vmem:[%s2 + $0x30] sm:$0xf]
      %v5020 = vld [vmem:[%s2 + $0x34] sm:$0xf]
      %v5021 = vld [vmem:[%s2 + $0x38] sm:$0xf]
      %v5022 = vld [vmem:[%s2 + $0x3c] sm:$0xf]
      %v5023 = vunpack.c.l.bf16 %v5007
      %v5024 = vunpack.c.l.bf16 %v5008
      %v5025 = vunpack.c.l.bf16 %v5009
      %v5026 = vunpack.c.l.bf16 %v5010
      %v5027 = vunpack.c.l.bf16 %v5011
      %v5028 = vunpack.c.l.bf16 %v5012
      %v5029 = vunpack.c.l.bf16 %v5013
      %v5030 = vunpack.c.l.bf16 %v5014
      %v5031 = vunpack.c.l.bf16 %v5015
      %v5032 = vunpack.c.l.bf16 %v5016
      %v5033 = vunpack.c.l.bf16 %v5017
      %v5034 = vunpack.c.l.bf16 %v5018
      %v5035 = vunpack.c.l.bf16 %v5019
      %v5036 = vunpack.c.l.bf16 %v5020
      %v5037 = vunpack.c.l.bf16 %v5021
      %v5038 = vunpack.c.l.bf16 %v5022
      %5039 = vmatpush.msra.mxu0 %v5038
      %5040 = vmatpush.msra.mxu0 %v5037
      %5041 = vmatpush.msra.mxu0 %v5036
      %5042 = vmatpush.msra.mxu0 %v5035
      %5043 = vmatpush.msra.mxu0 %v5034
      %5044 = vmatpush.msra.mxu0 %v5033
      %5045 = vmatpush.msra.mxu0 %v5032
      %5046 = vmatpush.msra.mxu0 %v5031
      %5047 = vmatpush.msra.mxu0 %v5030
      %5048 = vmatpush.msra.mxu0 %v5029
      %5049 = vmatpush.msra.mxu0 %v5028
      %5050 = vmatpush.msra.mxu0 %v5027
      %5051 = vmatpush.msra.mxu0 %v5026
      %5052 = vmatpush.msra.mxu0 %v5025
      %5053 = vmatpush.msra.mxu0 %v5024
      %5054 = vmatpush.msra.mxu0 %v5023
      %5055 = vmatmul.f32.gmra.mxu0 %v5006
      %v5056 = vpop.f32.mrf.mxu0
      %v5057 = vadd.f32 0.0, %v5056
      %5058 = vdwg.mxu0
      %5059 = vst [vmem:[%s166] sm:$0x1] %v5057
      %p5060 = scmp.lt.s32.totalorder %s14, 1
      %s5061 = scalar_select %p5060, %s14, 1
      %s5062 = scalar_lea.vmem %s3, %s5061
      // Predicated region
      $region33: #{encoder_cnn_forward.2} parent=31 // pred_check
        %p5063 = pneg %p100
      $region34: #{encoder_cnn_forward.2} parent=31 // pred_check_branch
        %5065 = sbr.rel (%p5063) target = $region36
      $region35: #{encoder_cnn_forward.2} parent=31 // pred_region
        _
      $region36: #{encoder_cnn_forward.2} parent=31 // pred_fallthru
        _
    $region32: #{encoder_cnn_forward.2} parent=5 // pred_fallthru
      _
    %p5066 = scmp.le.s32.totalorder 2, %s9
    // Predicated region
    $region37: #{encoder_cnn_forward.2} parent=5 // pred_check
      %p5067 = pneg %p5066
    $region38: #{encoder_cnn_forward.2} parent=5 // pred_check_branch
      %5069 = sbr.rel (%p5067) target = $region40
    $region39: #{encoder_cnn_forward.2} parent=5 // pred_region
      %s5070 = ssub.s32 %s9, 2
      // Predicated region
      $region41: #{encoder_cnn_forward.2} parent=39 // pred_check
        %p5071 = pneg %p106
      $region42: #{encoder_cnn_forward.2} parent=39 // pred_check_branch
        %5073 = sbr.rel (%p5071) target = $region44
      $region43: #{encoder_cnn_forward.2} parent=39 // pred_region
        %p5074 = scmp.lt.s32.totalorder %s15, 1
        %s5075 = scalar_select %p5074, %s15, 1
        %s5076 = scalar_lea.vmem %s3, %s5075
      $region44: #{encoder_cnn_forward.2} parent=39 // pred_fallthru
        _
    $region40: #{encoder_cnn_forward.2} parent=5 // pred_fallthru
      _
  $region6: #{encoder_cnn_forward.2} parent=0 // loop_footer
    %s13 = sadd.s32 1, %s9
  $region7: #{encoder_cnn_forward.2} parent=0 // loop_footer_branch
    %8 = sbr.rel target = $region3
  $region8: #{encoder_cnn_forward.2} parent=0 // loop_exit
    _

</llo_original>
